<compile_context>
chip_gen: v7x
topology: tpu7x:2x2x1
jax: 0.10.0
libtpu: 0.0.40
codegen_flags: <defaults>
</compile_context>

<pallas_src>
import numpy as np
import jax
import jax.numpy as jnp
from jax.experimental import pallas as pl
from jax.experimental.pallas import tpu as pltpu

# Module hyper-parameters (defaults from the PyTorch __init__)
D_MODEL = 128
D_HEAD = 128
NUM_HEADS = 8
D_FF = 512
LOGIT_CLAMP = 5.0
LN_EPS = 1e-5

# Test sizes
N_NODES = 8
BATCH = 4


def mha_kernel(feat_ref, adj_ref,
               wqkv_ref, wo_ref,
               g1_ref, b1_ref,
               w1_ref, bf1_ref, w2_ref, bf2_ref,
               g2_ref, b2_ref,
               out_ref):
    h = feat_ref[0]                       # (N, D_MODEL) f32
    adj = adj_ref[0]                      # (N_dst, N_src) f32
    mask = (adj > 0.0)[None, :, :]        # (1, N_dst, N_src) broadcast over heads

    hd = NUM_HEADS * D_HEAD
    hb = h.astype(jnp.bfloat16)

    # Fused Q/K/V projection: one MXU pass (bf16 operands, f32 accumulation).
    qkv = jnp.dot(hb, wqkv_ref[...], preferred_element_type=jnp.float32)   # (N, 3*H*Dh)
    q = qkv[:, 0:hd].astype(jnp.bfloat16)
    k = qkv[:, hd:2 * hd].astype(jnp.bfloat16)
    v = qkv[:, 2 * hd:3 * hd].astype(jnp.bfloat16)

    # Head-major (H, N, Dh) views: each head slice is a whole (N, 128) lane tile,
    # so the restack is pure tile placement (no lane/sublane shuffles).
    qh = jnp.stack([q[:, i * D_HEAD:(i + 1) * D_HEAD] for i in range(NUM_HEADS)], axis=0)
    kh = jnp.stack([k[:, i * D_HEAD:(i + 1) * D_HEAD] for i in range(NUM_HEADS)], axis=0)
    vh = jnp.stack([v[:, i * D_HEAD:(i + 1) * D_HEAD] for i in range(NUM_HEADS)], axis=0)

    # Batched logits for all heads at once: (H, N_dst, N_src).
    scale = 1.0 / np.sqrt(D_HEAD)
    logits = jnp.einsum('hnd,hmd->hnm', qh, kh,
                        preferred_element_type=jnp.float32) * scale
    logits = jnp.clip(logits, -LOGIT_CLAMP, LOGIT_CLAMP)

    # Single masked edge-softmax pass over the src axis (f32 VPU/EUP math).
    logits = jnp.where(mask, logits, -1e30)
    mx = jnp.max(logits, axis=-1, keepdims=True)
    e = jnp.exp(logits - mx)
    e = jnp.where(mask, e, 0.0)
    denom = jnp.sum(e, axis=-1, keepdims=True)
    inv = pl.reciprocal(jnp.where(denom > 0.0, denom, 1.0), approx=True)
    w = e * inv                                                   # (H, N, N); isolated dst -> 0 row

    # Batched aggregation over incoming edges, then ONE fused W_o matmul (K = H*Dh).
    av = jnp.einsum('hnm,hmd->hnd', w.astype(jnp.bfloat16), vh,
                    preferred_element_type=jnp.float32)           # (H, N, Dh)
    av_all = jnp.concatenate([av[i] for i in range(NUM_HEADS)], axis=-1)   # (N, H*Dh)
    uh = jnp.dot(av_all.astype(jnp.bfloat16), wo_ref[...],
                 preferred_element_type=jnp.float32)              # (N, D_MODEL)

    # Residual + LayerNorm 1 (f32)
    x1 = h + uh
    mu1 = jnp.mean(x1, axis=-1, keepdims=True)
    var1 = jnp.mean((x1 - mu1) ** 2, axis=-1, keepdims=True)
    x1n = (x1 - mu1) * jax.lax.rsqrt(var1 + LN_EPS) * g1_ref[...] + b1_ref[...]

    # FFN: Linear -> ReLU -> Linear (bf16 operands, f32 accumulation / bias / ReLU)
    hid = jnp.dot(x1n.astype(jnp.bfloat16), w1_ref[...],
                  preferred_element_type=jnp.float32) + bf1_ref[...]
    hid = jnp.maximum(hid, 0.0)
    ffn = jnp.dot(hid.astype(jnp.bfloat16), w2_ref[...],
                  preferred_element_type=jnp.float32) + bf2_ref[...]

    # Residual + LayerNorm 2 (f32)
    x2 = x1n + ffn
    mu2 = jnp.mean(x2, axis=-1, keepdims=True)
    var2 = jnp.mean((x2 - mu2) ** 2, axis=-1, keepdims=True)
    out_ref[0] = (x2 - mu2) * jax.lax.rsqrt(var2 + LN_EPS) * g2_ref[...] + b2_ref[...]


def multi_head_attention(feat, adj, params):
    """feat: (B, N, D_MODEL) f32, adj: (B, N, N) f32; params in PyTorch (out, in) layout."""
    B, N, _ = feat.shape
    hd = NUM_HEADS * D_HEAD

    # Host-side weight prep (one-time): fuse + pre-transpose to (in, out), cast to bf16.
    wqkv_t = jnp.concatenate(
        [params["wq"].T, params["wk"].T, params["wv"].T], axis=1).astype(jnp.bfloat16)  # (D, 3*H*Dh)
    wo_t = params["wo"].T.astype(jnp.bfloat16)    # (H*Dh, D)
    w1_t = params["w1"].T.astype(jnp.bfloat16)    # (D, D_FF)
    w2_t = params["w2"].T.astype(jnp.bfloat16)    # (D_FF, D)

    in_specs = [
        pl.BlockSpec((1, N, D_MODEL), lambda b: (b, 0, 0)),   # feat  (per-graph block)
        pl.BlockSpec((1, N, N), lambda b: (b, 0, 0)),         # adj   (per-graph block)
        pl.BlockSpec((D_MODEL, 3 * hd), lambda b: (0, 0)),    # wqkv_t (VMEM-resident)
        pl.BlockSpec((hd, D_MODEL), lambda b: (0, 0)),        # wo_t
        pl.BlockSpec((1, D_MODEL), lambda b: (0, 0)),         # g1
        pl.BlockSpec((1, D_MODEL), lambda b: (0, 0)),         # b1
        pl.BlockSpec((D_MODEL, D_FF), lambda b: (0, 0)),      # w1_t
        pl.BlockSpec((1, D_FF), lambda b: (0, 0)),            # bf1
        pl.BlockSpec((D_FF, D_MODEL), lambda b: (0, 0)),      # w2_t
        pl.BlockSpec((1, D_MODEL), lambda b: (0, 0)),         # bf2
        pl.BlockSpec((1, D_MODEL), lambda b: (0, 0)),         # g2
        pl.BlockSpec((1, D_MODEL), lambda b: (0, 0)),         # b2
    ]
    out_specs = pl.BlockSpec((1, N, D_MODEL), lambda b: (b, 0, 0))

    return pl.pallas_call(
        mha_kernel,
        out_shape=jax.ShapeDtypeStruct((B, N, D_MODEL), jnp.float32),
        grid=(B,),
        in_specs=in_specs,
        out_specs=out_specs,
        compiler_params=pltpu.CompilerParams(
            dimension_semantics=("parallel",)),
    )(feat, adj, wqkv_t, wo_t,
      params["g1"], params["b1"],
      w1_t, params["bf1"], w2_t, params["bf2"],
      params["g2"], params["b2"])


def reference(feat, adj, params):
    """Pure-JAX f32 reference matching the DGL forward semantics (single graph)."""
    h = feat
    q = h @ params["wq"].T
    k = h @ params["wk"].T
    v = h @ params["wv"].T
    qh = q.reshape(N_NODES, NUM_HEADS, D_HEAD)
    kh = k.reshape(N_NODES, NUM_HEADS, D_HEAD)
    vh = v.reshape(N_NODES, NUM_HEADS, D_HEAD)
    logits = jnp.einsum("nhd,mhd->hnm", qh, kh) / np.sqrt(D_HEAD)
    logits = jnp.clip(logits, -LOGIT_CLAMP, LOGIT_CLAMP)
    mask = (adj > 0.0)[None]
    logits = jnp.where(mask, logits, -1e30)
    e = jnp.exp(logits - logits.max(-1, keepdims=True))
    e = jnp.where(mask, e, 0.0)
    den = e.sum(-1, keepdims=True)
    w = e / jnp.where(den > 0, den, 1.0)
    av = jnp.einsum("hnm,mhd->nhd", w, vh).reshape(N_NODES, NUM_HEADS * D_HEAD)
    uh = av @ params["wo"].T
    x1 = h + uh
    mu = x1.mean(-1, keepdims=True)
    var = ((x1 - mu) ** 2).mean(-1, keepdims=True)
    x1n = (x1 - mu) / jnp.sqrt(var + LN_EPS) * params["g1"] + params["b1"]
    ffn = jnp.maximum(x1n @ params["w1"].T + params["bf1"], 0.0) @ params["w2"].T + params["bf2"]
    x2 = x1n + ffn
    mu2 = x2.mean(-1, keepdims=True)
    var2 = ((x2 - mu2) ** 2).mean(-1, keepdims=True)
    return (x2 - mu2) / jnp.sqrt(var2 + LN_EPS) * params["g2"] + params["b2"]


def init_params(key):
    ks = jax.random.split(key, 8)
    hd = NUM_HEADS * D_HEAD
    s = 0.05
    return {
        "wq": jax.random.normal(ks[0], (hd, D_MODEL), jnp.float32) * s,
        "wk": jax.random.normal(ks[1], (hd, D_MODEL), jnp.float32) * s,
        "wv": jax.random.normal(ks[2], (hd, D_MODEL), jnp.float32) * s,
        "wo": jax.random.normal(ks[3], (D_MODEL, hd), jnp.float32) * s,
        "g1": jnp.ones((1, D_MODEL), jnp.float32),
        "b1": jnp.zeros((1, D_MODEL), jnp.float32),
        "w1": jax.random.normal(ks[4], (D_FF, D_MODEL), jnp.float32) * s,
        "bf1": jax.random.normal(ks[5], (1, D_FF), jnp.float32) * s,
        "w2": jax.random.normal(ks[6], (D_MODEL, D_FF), jnp.float32) * s,
        "bf2": jax.random.normal(ks[7], (1, D_MODEL), jnp.float32) * s,
        "g2": jnp.ones((1, D_MODEL), jnp.float32),
        "b2": jnp.zeros((1, D_MODEL), jnp.float32),
    }


if __name__ == "__main__":
    key = jax.random.PRNGKey(0)
    k_feat, k_adj, k_par = jax.random.split(key, 3)

    feat = jax.random.normal(k_feat, (BATCH, N_NODES, D_MODEL), jnp.float32)
    # Random directed graphs + self loops (every node has >= 1 incoming edge).
    adj = (jax.random.uniform(k_adj, (BATCH, N_NODES, N_NODES)) < 0.5).astype(jnp.float32)
    adj = jnp.maximum(adj, jnp.eye(N_NODES, dtype=jnp.float32)[None])

    params = init_params(k_par)

    out = multi_head_attention(feat, adj, params)
    out = jax.block_until_ready(out)

    ref = jax.vmap(lambda f, a: reference(f, a, params))(feat, adj)
    # bf16 MXU operands (f32 accumulation) => relaxed tolerance vs the pure-f32 reference.
    np.testing.assert_allclose(np.asarray(out), np.asarray(ref), rtol=5e-2, atol=5e-2)

    print("KERNEL_OK")
</pallas_src>

<mosaic_0001>
module attributes {stable_mosaic.version = 11 : i64} {
  func.func @mha_kernel(%arg0: i32, %arg1: memref<1x8x128xf32, #tpu.memory_space<vmem>>, %arg2: memref<1x8x8xf32, #tpu.memory_space<vmem>>, %arg3: memref<128x3072xbf16, #tpu.memory_space<vmem>>, %arg4: memref<1024x128xbf16, #tpu.memory_space<vmem>>, %arg5: memref<1x128xf32, #tpu.memory_space<vmem>>, %arg6: memref<1x128xf32, #tpu.memory_space<vmem>>, %arg7: memref<128x512xbf16, #tpu.memory_space<vmem>>, %arg8: memref<1x512xf32, #tpu.memory_space<vmem>>, %arg9: memref<512x128xbf16, #tpu.memory_space<vmem>>, %arg10: memref<1x128xf32, #tpu.memory_space<vmem>>, %arg11: memref<1x128xf32, #tpu.memory_space<vmem>>, %arg12: memref<1x128xf32, #tpu.memory_space<vmem>>, %arg13: memref<1x8x128xf32, #tpu.memory_space<vmem>>) attributes {dimension_semantics = [#tpu.dimension_semantics<parallel>], iteration_bounds = array<i64: 4>, scalar_prefetch = 0 : i64, scratch_operands = 0 : i64, tpu.core_type = #tpu.core_type<tc>, window_params = [{transform_indices = @transform_0, window_bounds = array<i64: 1, 8, 128>}, {transform_indices = @transform_1, window_bounds = array<i64: 1, 8, 8>}, {pipeline_mode = #tpu.pipeline_mode<synchronous>, transform_indices = @transform_2, window_bounds = array<i64: 128, 3072>}, {pipeline_mode = #tpu.pipeline_mode<synchronous>, transform_indices = @transform_3, window_bounds = array<i64: 1024, 128>}, {pipeline_mode = #tpu.pipeline_mode<synchronous>, transform_indices = @transform_4, window_bounds = array<i64: 1, 128>}, {pipeline_mode = #tpu.pipeline_mode<synchronous>, transform_indices = @transform_5, window_bounds = array<i64: 1, 128>}, {pipeline_mode = #tpu.pipeline_mode<synchronous>, transform_indices = @transform_6, window_bounds = array<i64: 128, 512>}, {pipeline_mode = #tpu.pipeline_mode<synchronous>, transform_indices = @transform_7, window_bounds = array<i64: 1, 512>}, {pipeline_mode = #tpu.pipeline_mode<synchronous>, transform_indices = @transform_8, window_bounds = array<i64: 512, 128>}, {pipeline_mode = #tpu.pipeline_mode<synchronous>, transform_indices = @transform_9, window_bounds = array<i64: 1, 128>}, {pipeline_mode = #tpu.pipeline_mode<synchronous>, transform_indices = @transform_10, window_bounds = array<i64: 1, 128>}, {pipeline_mode = #tpu.pipeline_mode<synchronous>, transform_indices = @transform_11, window_bounds = array<i64: 1, 128>}, {transform_indices = @transform_12, window_bounds = array<i64: 1, 8, 128>}]} {
    %c0 = arith.constant 0 : index
    %c0_0 = arith.constant 0 : index
    %c0_1 = arith.constant 0 : index
    %0 = vector.load %arg1[%c0, %c0_0, %c0_1] : memref<1x8x128xf32, #tpu.memory_space<vmem>>, vector<1x8x128xf32>
    %1 = vector.shape_cast %0 : vector<1x8x128xf32> to vector<8x128xf32>
    %c0_2 = arith.constant 0 : index
    %c0_3 = arith.constant 0 : index
    %c0_4 = arith.constant 0 : index
    %2 = vector.load %arg2[%c0_2, %c0_3, %c0_4] : memref<1x8x8xf32, #tpu.memory_space<vmem>>, vector<1x8x8xf32>
    %3 = vector.shape_cast %2 : vector<1x8x8xf32> to vector<8x8xf32>
    %cst = arith.constant 0.000000e+00 : f32
    %4 = vector.broadcast %cst : f32 to vector<8x8xf32>
    %5 = arith.cmpf ogt, %3, %4 : vector<8x8xf32>
    %6 = vector.shape_cast %5 : vector<8x8xi1> to vector<1x8x8xi1>
    %7 = arith.truncf %1 : vector<8x128xf32> to vector<8x128xbf16>
    %c0_5 = arith.constant 0 : index
    %c0_6 = arith.constant 0 : index
    %8 = vector.load %arg3[%c0_5, %c0_6] : memref<128x3072xbf16, #tpu.memory_space<vmem>>, vector<128x3072xbf16>
    %cst_7 = arith.constant dense<0.000000e+00> : vector<8x3072xf32>
    %9 = tpu.matmul %7, %8, %cst_7 {dimension_numbers = #tpu.dot_dimension_numbers<[1], [0], [0], [1], [0, 0, 1, 1], [], []>} : vector<8x128xbf16>, vector<128x3072xbf16>, vector<8x3072xf32> -> vector<8x3072xf32>
    %10 = vector.extract_strided_slice %9 {offsets = [0, 0], sizes = [8, 1024], strides = [1, 1]} : vector<8x3072xf32> to vector<8x1024xf32>
    %11 = arith.truncf %10 : vector<8x1024xf32> to vector<8x1024xbf16>
    %12 = vector.extract_strided_slice %9 {offsets = [0, 1024], sizes = [8, 1024], strides = [1, 1]} : vector<8x3072xf32> to vector<8x1024xf32>
    %13 = arith.truncf %12 : vector<8x1024xf32> to vector<8x1024xbf16>
    %14 = vector.extract_strided_slice %9 {offsets = [0, 2048], sizes = [8, 1024], strides = [1, 1]} : vector<8x3072xf32> to vector<8x1024xf32>
    %15 = arith.truncf %14 : vector<8x1024xf32> to vector<8x1024xbf16>
    %16 = vector.extract_strided_slice %11 {offsets = [0, 0], sizes = [8, 128], strides = [1, 1]} : vector<8x1024xbf16> to vector<8x128xbf16>
    %17 = vector.extract_strided_slice %11 {offsets = [0, 128], sizes = [8, 128], strides = [1, 1]} : vector<8x1024xbf16> to vector<8x128xbf16>
    %18 = vector.extract_strided_slice %11 {offsets = [0, 256], sizes = [8, 128], strides = [1, 1]} : vector<8x1024xbf16> to vector<8x128xbf16>
    %19 = vector.extract_strided_slice %11 {offsets = [0, 384], sizes = [8, 128], strides = [1, 1]} : vector<8x1024xbf16> to vector<8x128xbf16>
    %20 = vector.extract_strided_slice %11 {offsets = [0, 512], sizes = [8, 128], strides = [1, 1]} : vector<8x1024xbf16> to vector<8x128xbf16>
    %21 = vector.extract_strided_slice %11 {offsets = [0, 640], sizes = [8, 128], strides = [1, 1]} : vector<8x1024xbf16> to vector<8x128xbf16>
    %22 = vector.extract_strided_slice %11 {offsets = [0, 768], sizes = [8, 128], strides = [1, 1]} : vector<8x1024xbf16> to vector<8x128xbf16>
    %23 = vector.extract_strided_slice %11 {offsets = [0, 896], sizes = [8, 128], strides = [1, 1]} : vector<8x1024xbf16> to vector<8x128xbf16>
    %24 = vector.shape_cast %16 : vector<8x128xbf16> to vector<1x8x128xbf16>
    %25 = vector.shape_cast %17 : vector<8x128xbf16> to vector<1x8x128xbf16>
    %26 = vector.shape_cast %18 : vector<8x128xbf16> to vector<1x8x128xbf16>
    %27 = vector.shape_cast %19 : vector<8x128xbf16> to vector<1x8x128xbf16>
    %28 = vector.shape_cast %20 : vector<8x128xbf16> to vector<1x8x128xbf16>
    %29 = vector.shape_cast %21 : vector<8x128xbf16> to vector<1x8x128xbf16>
    %30 = vector.shape_cast %22 : vector<8x128xbf16> to vector<1x8x128xbf16>
    %31 = vector.shape_cast %23 : vector<8x128xbf16> to vector<1x8x128xbf16>
    %32 = tpu.concatenate %24, %25, %26, %27, %28, %29, %30, %31 in 0 : vector<1x8x128xbf16>, vector<1x8x128xbf16>, vector<1x8x128xbf16>, vector<1x8x128xbf16>, vector<1x8x128xbf16>, vector<1x8x128xbf16>, vector<1x8x128xbf16>, vector<1x8x128xbf16> -> vector<8x8x128xbf16>
    %33 = vector.extract_strided_slice %13 {offsets = [0, 0], sizes = [8, 128], strides = [1, 1]} : vector<8x1024xbf16> to vector<8x128xbf16>
    %34 = vector.extract_strided_slice %13 {offsets = [0, 128], sizes = [8, 128], strides = [1, 1]} : vector<8x1024xbf16> to vector<8x128xbf16>
    %35 = vector.extract_strided_slice %13 {offsets = [0, 256], sizes = [8, 128], strides = [1, 1]} : vector<8x1024xbf16> to vector<8x128xbf16>
    %36 = vector.extract_strided_slice %13 {offsets = [0, 384], sizes = [8, 128], strides = [1, 1]} : vector<8x1024xbf16> to vector<8x128xbf16>
    %37 = vector.extract_strided_slice %13 {offsets = [0, 512], sizes = [8, 128], strides = [1, 1]} : vector<8x1024xbf16> to vector<8x128xbf16>
    %38 = vector.extract_strided_slice %13 {offsets = [0, 640], sizes = [8, 128], strides = [1, 1]} : vector<8x1024xbf16> to vector<8x128xbf16>
    %39 = vector.extract_strided_slice %13 {offsets = [0, 768], sizes = [8, 128], strides = [1, 1]} : vector<8x1024xbf16> to vector<8x128xbf16>
    %40 = vector.extract_strided_slice %13 {offsets = [0, 896], sizes = [8, 128], strides = [1, 1]} : vector<8x1024xbf16> to vector<8x128xbf16>
    %41 = vector.shape_cast %33 : vector<8x128xbf16> to vector<1x8x128xbf16>
    %42 = vector.shape_cast %34 : vector<8x128xbf16> to vector<1x8x128xbf16>
    %43 = vector.shape_cast %35 : vector<8x128xbf16> to vector<1x8x128xbf16>
    %44 = vector.shape_cast %36 : vector<8x128xbf16> to vector<1x8x128xbf16>
    %45 = vector.shape_cast %37 : vector<8x128xbf16> to vector<1x8x128xbf16>
    %46 = vector.shape_cast %38 : vector<8x128xbf16> to vector<1x8x128xbf16>
    %47 = vector.shape_cast %39 : vector<8x128xbf16> to vector<1x8x128xbf16>
    %48 = vector.shape_cast %40 : vector<8x128xbf16> to vector<1x8x128xbf16>
    %49 = tpu.concatenate %41, %42, %43, %44, %45, %46, %47, %48 in 0 : vector<1x8x128xbf16>, vector<1x8x128xbf16>, vector<1x8x128xbf16>, vector<1x8x128xbf16>, vector<1x8x128xbf16>, vector<1x8x128xbf16>, vector<1x8x128xbf16>, vector<1x8x128xbf16> -> vector<8x8x128xbf16>
    %50 = vector.extract_strided_slice %15 {offsets = [0, 0], sizes = [8, 128], strides = [1, 1]} : vector<8x1024xbf16> to vector<8x128xbf16>
    %51 = vector.extract_strided_slice %15 {offsets = [0, 128], sizes = [8, 128], strides = [1, 1]} : vector<8x1024xbf16> to vector<8x128xbf16>
    %52 = vector.extract_strided_slice %15 {offsets = [0, 256], sizes = [8, 128], strides = [1, 1]} : vector<8x1024xbf16> to vector<8x128xbf16>
    %53 = vector.extract_strided_slice %15 {offsets = [0, 384], sizes = [8, 128], strides = [1, 1]} : vector<8x1024xbf16> to vector<8x128xbf16>
    %54 = vector.extract_strided_slice %15 {offsets = [0, 512], sizes = [8, 128], strides = [1, 1]} : vector<8x1024xbf16> to vector<8x128xbf16>
    %55 = vector.extract_strided_slice %15 {offsets = [0, 640], sizes = [8, 128], strides = [1, 1]} : vector<8x1024xbf16> to vector<8x128xbf16>
    %56 = vector.extract_strided_slice %15 {offsets = [0, 768], sizes = [8, 128], strides = [1, 1]} : vector<8x1024xbf16> to vector<8x128xbf16>
    %57 = vector.extract_strided_slice %15 {offsets = [0, 896], sizes = [8, 128], strides = [1, 1]} : vector<8x1024xbf16> to vector<8x128xbf16>
    %58 = vector.shape_cast %50 : vector<8x128xbf16> to vector<1x8x128xbf16>
    %59 = vector.shape_cast %51 : vector<8x128xbf16> to vector<1x8x128xbf16>
    %60 = vector.shape_cast %52 : vector<8x128xbf16> to vector<1x8x128xbf16>
    %61 = vector.shape_cast %53 : vector<8x128xbf16> to vector<1x8x128xbf16>
    %62 = vector.shape_cast %54 : vector<8x128xbf16> to vector<1x8x128xbf16>
    %63 = vector.shape_cast %55 : vector<8x128xbf16> to vector<1x8x128xbf16>
    %64 = vector.shape_cast %56 : vector<8x128xbf16> to vector<1x8x128xbf16>
    %65 = vector.shape_cast %57 : vector<8x128xbf16> to vector<1x8x128xbf16>
    %66 = tpu.concatenate %58, %59, %60, %61, %62, %63, %64, %65 in 0 : vector<1x8x128xbf16>, vector<1x8x128xbf16>, vector<1x8x128xbf16>, vector<1x8x128xbf16>, vector<1x8x128xbf16>, vector<1x8x128xbf16>, vector<1x8x128xbf16>, vector<1x8x128xbf16> -> vector<8x8x128xbf16>
    "tpu.trace_start"() <{level = 10 : i32, message = "hnd,hmd->hnm"}> : () -> ()
    %cst_8 = arith.constant dense<0.000000e+00> : vector<8x8x8xf32>
    %67 = tpu.matmul %32, %49, %cst_8 {dimension_numbers = #tpu.dot_dimension_numbers<[2], [2], [1], [1], [0, 0, 0, 1, 1, 1], [0], [0]>} : vector<8x8x128xbf16>, vector<8x8x128xbf16>, vector<8x8x8xf32> -> vector<8x8x8xf32>
    "tpu.trace_stop"() : () -> ()
    %cst_9 = arith.constant 0.0883883461 : f32
    %68 = vector.broadcast %cst_9 : f32 to vector<8x8x8xf32>
    %69 = arith.mulf %67, %68 : vector<8x8x8xf32>
    %cst_10 = arith.constant -5.000000e+00 : f32
    %cst_11 = arith.constant 5.000000e+00 : f32
    %70 = vector.broadcast %cst_10 : f32 to vector<8x8x8xf32>
    %71 = arith.maximumf %70, %69 : vector<8x8x8xf32>
    %72 = vector.broadcast %cst_11 : f32 to vector<8x8x8xf32>
    %73 = arith.minimumf %72, %71 : vector<8x8x8xf32>
    %cst_12 = arith.constant -1.000000e+30 : f32
    %74 = vector.shape_cast %6 : vector<1x8x8xi1> to vector<1x8x8xi1>
    %75 = vector.broadcast %74 : vector<1x8x8xi1> to vector<8x8x8xi1>
    %76 = vector.broadcast %cst_12 : f32 to vector<8x8x8xf32>
    %77 = arith.select %75, %73, %76 : vector<8x8x8xi1>, vector<8x8x8xf32>
    %cst_13 = arith.constant dense<0xFF800000> : vector<8x8xf32>
    %78 = vector.multi_reduction <maximumf>, %77, %cst_13 [2] : vector<8x8x8xf32> to vector<8x8xf32>
    %79 = vector.shape_cast %78 : vector<8x8xf32> to vector<8x8x1xf32>
    %80 = vector.broadcast %79 : vector<8x8x1xf32> to vector<8x8x8xf32>
    %81 = arith.subf %77, %80 : vector<8x8x8xf32>
    %82 = math.exp %81 : vector<8x8x8xf32>
    %cst_14 = arith.constant 0.000000e+00 : f32
    %83 = vector.shape_cast %6 : vector<1x8x8xi1> to vector<1x8x8xi1>
    %84 = vector.broadcast %83 : vector<1x8x8xi1> to vector<8x8x8xi1>
    %85 = vector.broadcast %cst_14 : f32 to vector<8x8x8xf32>
    %86 = arith.select %84, %82, %85 : vector<8x8x8xi1>, vector<8x8x8xf32>
    %cst_15 = arith.constant dense<0.000000e+00> : vector<8x8xf32>
    %87 = vector.multi_reduction <add>, %86, %cst_15 [2] : vector<8x8x8xf32> to vector<8x8xf32>
    %88 = vector.shape_cast %87 : vector<8x8xf32> to vector<8x8x1xf32>
    %cst_16 = arith.constant 0.000000e+00 : f32
    %89 = vector.broadcast %cst_16 : f32 to vector<8x8x1xf32>
    %90 = arith.cmpf ogt, %88, %89 : vector<8x8x1xf32>
    %cst_17 = arith.constant 1.000000e+00 : f32
    %91 = vector.broadcast %cst_17 : f32 to vector<8x8x1xf32>
    %92 = arith.select %90, %88, %91 : vector<8x8x1xi1>, vector<8x8x1xf32>
    %93 = tpu.reciprocal %92 {approx = true} : vector<8x8x1xf32> -> vector<8x8x1xf32>
    %94 = vector.broadcast %93 : vector<8x8x1xf32> to vector<8x8x8xf32>
    %95 = arith.mulf %86, %94 : vector<8x8x8xf32>
    %96 = arith.truncf %95 : vector<8x8x8xf32> to vector<8x8x8xbf16>
    "tpu.trace_start"() <{level = 10 : i32, message = "hnm,hmd->hnd"}> : () -> ()
    %cst_18 = arith.constant dense<0.000000e+00> : vector<8x8x128xf32>
    %97 = tpu.matmul %96, %66, %cst_18 {dimension_numbers = #tpu.dot_dimension_numbers<[2], [1], [1], [2], [0, 0, 0, 1, 1, 2], [0], [0]>} : vector<8x8x8xbf16>, vector<8x8x128xbf16>, vector<8x8x128xf32> -> vector<8x8x128xf32>
    "tpu.trace_stop"() : () -> ()
    %98 = vector.extract_strided_slice %97 {offsets = [0, 0, 0], sizes = [1, 8, 128], strides = [1, 1, 1]} : vector<8x8x128xf32> to vector<1x8x128xf32>
    %99 = vector.shape_cast %98 : vector<1x8x128xf32> to vector<8x128xf32>
    %100 = vector.extract_strided_slice %97 {offsets = [1, 0, 0], sizes = [1, 8, 128], strides = [1, 1, 1]} : vector<8x8x128xf32> to vector<1x8x128xf32>
    %101 = vector.shape_cast %100 : vector<1x8x128xf32> to vector<8x128xf32>
    %102 = vector.extract_strided_slice %97 {offsets = [2, 0, 0], sizes = [1, 8, 128], strides = [1, 1, 1]} : vector<8x8x128xf32> to vector<1x8x128xf32>
    %103 = vector.shape_cast %102 : vector<1x8x128xf32> to vector<8x128xf32>
    %104 = vector.extract_strided_slice %97 {offsets = [3, 0, 0], sizes = [1, 8, 128], strides = [1, 1, 1]} : vector<8x8x128xf32> to vector<1x8x128xf32>
    %105 = vector.shape_cast %104 : vector<1x8x128xf32> to vector<8x128xf32>
    %106 = vector.extract_strided_slice %97 {offsets = [4, 0, 0], sizes = [1, 8, 128], strides = [1, 1, 1]} : vector<8x8x128xf32> to vector<1x8x128xf32>
    %107 = vector.shape_cast %106 : vector<1x8x128xf32> to vector<8x128xf32>
    %108 = vector.extract_strided_slice %97 {offsets = [5, 0, 0], sizes = [1, 8, 128], strides = [1, 1, 1]} : vector<8x8x128xf32> to vector<1x8x128xf32>
    %109 = vector.shape_cast %108 : vector<1x8x128xf32> to vector<8x128xf32>
    %110 = vector.extract_strided_slice %97 {offsets = [6, 0, 0], sizes = [1, 8, 128], strides = [1, 1, 1]} : vector<8x8x128xf32> to vector<1x8x128xf32>
    %111 = vector.shape_cast %110 : vector<1x8x128xf32> to vector<8x128xf32>
    %112 = vector.extract_strided_slice %97 {offsets = [7, 0, 0], sizes = [1, 8, 128], strides = [1, 1, 1]} : vector<8x8x128xf32> to vector<1x8x128xf32>
    %113 = vector.shape_cast %112 : vector<1x8x128xf32> to vector<8x128xf32>
    %114 = tpu.concatenate %99, %101, %103, %105, %107, %109, %111, %113 in 1 : vector<8x128xf32>, vector<8x128xf32>, vector<8x128xf32>, vector<8x128xf32>, vector<8x128xf32>, vector<8x128xf32>, vector<8x128xf32>, vector<8x128xf32> -> vector<8x1024xf32>
    %115 = arith.truncf %114 : vector<8x1024xf32> to vector<8x1024xbf16>
    %c0_19 = arith.constant 0 : index
    %c0_20 = arith.constant 0 : index
    %116 = vector.load %arg4[%c0_19, %c0_20] : memref<1024x128xbf16, #tpu.memory_space<vmem>>, vector<1024x128xbf16>
    %cst_21 = arith.constant dense<0.000000e+00> : vector<8x128xf32>
    %117 = tpu.matmul %115, %116, %cst_21 {dimension_numbers = #tpu.dot_dimension_numbers<[1], [0], [0], [1], [0, 0, 1, 1], [], []>} : vector<8x1024xbf16>, vector<1024x128xbf16>, vector<8x128xf32> -> vector<8x128xf32>
    %118 = arith.addf %1, %117 : vector<8x128xf32>
    %cst_22 = arith.constant dense<0.000000e+00> : vector<8xf32>
    %119 = vector.multi_reduction <add>, %118, %cst_22 [1] : vector<8x128xf32> to vector<8xf32>
    %120 = vector.shape_cast %119 : vector<8xf32> to vector<8x1xf32>
    %cst_23 = arith.constant 1.280000e+02 : f32
    %121 = vector.broadcast %cst_23 : f32 to vector<8x1xf32>
    %122 = arith.divf %120, %121 : vector<8x1xf32>
    %123 = vector.broadcast %122 : vector<8x1xf32> to vector<8x128xf32>
    %124 = arith.subf %118, %123 : vector<8x128xf32>
    %125 = arith.mulf %124, %124 : vector<8x128xf32>
    %cst_24 = arith.constant dense<0.000000e+00> : vector<8xf32>
    %126 = vector.multi_reduction <add>, %125, %cst_24 [1] : vector<8x128xf32> to vector<8xf32>
    %127 = vector.shape_cast %126 : vector<8xf32> to vector<8x1xf32>
    %cst_25 = arith.constant 1.280000e+02 : f32
    %128 = vector.broadcast %cst_25 : f32 to vector<8x1xf32>
    %129 = arith.divf %127, %128 : vector<8x1xf32>
    %130 = vector.broadcast %122 : vector<8x1xf32> to vector<8x128xf32>
    %131 = arith.subf %118, %130 : vector<8x128xf32>
    %cst_26 = arith.constant 9.99999974E-6 : f32
    %132 = vector.broadcast %cst_26 : f32 to vector<8x1xf32>
    %133 = arith.addf %129, %132 : vector<8x1xf32>
    %134 = math.rsqrt %133 : vector<8x1xf32>
    %135 = vector.broadcast %134 : vector<8x1xf32> to vector<8x128xf32>
    %136 = arith.mulf %131, %135 : vector<8x128xf32>
    %c0_27 = arith.constant 0 : index
    %c0_28 = arith.constant 0 : index
    %137 = vector.load %arg5[%c0_27, %c0_28] : memref<1x128xf32, #tpu.memory_space<vmem>>, vector<1x128xf32>
    %138 = vector.broadcast %137 : vector<1x128xf32> to vector<8x128xf32>
    %139 = arith.mulf %136, %138 : vector<8x128xf32>
    %c0_29 = arith.constant 0 : index
    %c0_30 = arith.constant 0 : index
    %140 = vector.load %arg6[%c0_29, %c0_30] : memref<1x128xf32, #tpu.memory_space<vmem>>, vector<1x128xf32>
    %141 = vector.broadcast %140 : vector<1x128xf32> to vector<8x128xf32>
    %142 = arith.addf %139, %141 : vector<8x128xf32>
    %143 = arith.truncf %142 : vector<8x128xf32> to vector<8x128xbf16>
    %c0_31 = arith.constant 0 : index
    %c0_32 = arith.constant 0 : index
    %144 = vector.load %arg7[%c0_31, %c0_32] : memref<128x512xbf16, #tpu.memory_space<vmem>>, vector<128x512xbf16>
    %cst_33 = arith.constant dense<0.000000e+00> : vector<8x512xf32>
    %145 = tpu.matmul %143, %144, %cst_33 {dimension_numbers = #tpu.dot_dimension_numbers<[1], [0], [0], [1], [0, 0, 1, 1], [], []>} : vector<8x128xbf16>, vector<128x512xbf16>, vector<8x512xf32> -> vector<8x512xf32>
    %c0_34 = arith.constant 0 : index
    %c0_35 = arith.constant 0 : index
    %146 = vector.load %arg8[%c0_34, %c0_35] : memref<1x512xf32, #tpu.memory_space<vmem>>, vector<1x512xf32>
    %147 = vector.broadcast %146 : vector<1x512xf32> to vector<8x512xf32>
    %148 = arith.addf %145, %147 : vector<8x512xf32>
    %cst_36 = arith.constant 0.000000e+00 : f32
    %149 = vector.broadcast %cst_36 : f32 to vector<8x512xf32>
    %150 = arith.maximumf %148, %149 : vector<8x512xf32>
    %151 = arith.truncf %150 : vector<8x512xf32> to vector<8x512xbf16>
    %c0_37 = arith.constant 0 : index
    %c0_38 = arith.constant 0 : index
    %152 = vector.load %arg9[%c0_37, %c0_38] : memref<512x128xbf16, #tpu.memory_space<vmem>>, vector<512x128xbf16>
    %cst_39 = arith.constant dense<0.000000e+00> : vector<8x128xf32>
    %153 = tpu.matmul %151, %152, %cst_39 {dimension_numbers = #tpu.dot_dimension_numbers<[1], [0], [0], [1], [0, 0, 1, 1], [], []>} : vector<8x512xbf16>, vector<512x128xbf16>, vector<8x128xf32> -> vector<8x128xf32>
    %c0_40 = arith.constant 0 : index
    %c0_41 = arith.constant 0 : index
    %154 = vector.load %arg10[%c0_40, %c0_41] : memref<1x128xf32, #tpu.memory_space<vmem>>, vector<1x128xf32>
    %155 = vector.broadcast %154 : vector<1x128xf32> to vector<8x128xf32>
    %156 = arith.addf %153, %155 : vector<8x128xf32>
    %157 = arith.addf %142, %156 : vector<8x128xf32>
    %cst_42 = arith.constant dense<0.000000e+00> : vector<8xf32>
    %158 = vector.multi_reduction <add>, %157, %cst_42 [1] : vector<8x128xf32> to vector<8xf32>
    %159 = vector.shape_cast %158 : vector<8xf32> to vector<8x1xf32>
    %cst_43 = arith.constant 1.280000e+02 : f32
    %160 = vector.broadcast %cst_43 : f32 to vector<8x1xf32>
    %161 = arith.divf %159, %160 : vector<8x1xf32>
    %162 = vector.broadcast %161 : vector<8x1xf32> to vector<8x128xf32>
    %163 = arith.subf %157, %162 : vector<8x128xf32>
    %164 = arith.mulf %163, %163 : vector<8x128xf32>
    %cst_44 = arith.constant dense<0.000000e+00> : vector<8xf32>
    %165 = vector.multi_reduction <add>, %164, %cst_44 [1] : vector<8x128xf32> to vector<8xf32>
    %166 = vector.shape_cast %165 : vector<8xf32> to vector<8x1xf32>
    %cst_45 = arith.constant 1.280000e+02 : f32
    %167 = vector.broadcast %cst_45 : f32 to vector<8x1xf32>
    %168 = arith.divf %166, %167 : vector<8x1xf32>
    %169 = vector.broadcast %161 : vector<8x1xf32> to vector<8x128xf32>
    %170 = arith.subf %157, %169 : vector<8x128xf32>
    %cst_46 = arith.constant 9.99999974E-6 : f32
    %171 = vector.broadcast %cst_46 : f32 to vector<8x1xf32>
    %172 = arith.addf %168, %171 : vector<8x1xf32>
    %173 = math.rsqrt %172 : vector<8x1xf32>
    %174 = vector.broadcast %173 : vector<8x1xf32> to vector<8x128xf32>
    %175 = arith.mulf %170, %174 : vector<8x128xf32>
    %c0_47 = arith.constant 0 : index
    %c0_48 = arith.constant 0 : index
    %176 = vector.load %arg11[%c0_47, %c0_48] : memref<1x128xf32, #tpu.memory_space<vmem>>, vector<1x128xf32>
    %177 = vector.broadcast %176 : vector<1x128xf32> to vector<8x128xf32>
    %178 = arith.mulf %175, %177 : vector<8x128xf32>
    %c0_49 = arith.constant 0 : index
    %c0_50 = arith.constant 0 : index
    %179 = vector.load %arg12[%c0_49, %c0_50] : memref<1x128xf32, #tpu.memory_space<vmem>>, vector<1x128xf32>
    %180 = vector.broadcast %179 : vector<1x128xf32> to vector<8x128xf32>
    %181 = arith.addf %178, %180 : vector<8x128xf32>
    %c0_51 = arith.constant 0 : index
    %c0_52 = arith.constant 0 : index
    %c0_53 = arith.constant 0 : index
    %182 = vector.load %arg13[%c0_51, %c0_52, %c0_53] : memref<1x8x128xf32, #tpu.memory_space<vmem>>, vector<1x8x128xf32>
    %183 = vector.shape_cast %182 : vector<1x8x128xf32> to vector<8x128xf32>
    %184 = vector.shape_cast %181 : vector<8x128xf32> to vector<1x8x128xf32>
    tpu.vector_store %arg13[%c0_51, %c0_52, %c0_53], %184 {strides = array<i32>} : memref<1x8x128xf32, #tpu.memory_space<vmem>>, vector<1x8x128xf32>,
    return
  }
  func.func @transform_0(%arg0: i32) -> (i32, i32, i32) {
    %c0_i32 = arith.constant 0 : i32
    %c0_i32_0 = arith.constant 0 : i32
    %c0_i32_1 = arith.constant 0 : i32
    return %arg0, %c0_i32, %c0_i32_0 : i32, i32, i32
  }
  func.func @transform_1(%arg0: i32) -> (i32, i32, i32) {
    %c0_i32 = arith.constant 0 : i32
    %c0_i32_0 = arith.constant 0 : i32
    %c0_i32_1 = arith.constant 0 : i32
    return %arg0, %c0_i32, %c0_i32_0 : i32, i32, i32
  }
  func.func @transform_2(%arg0: i32) -> (i32, i32) {
    %c0_i32 = arith.constant 0 : i32
    %c0_i32_0 = arith.constant 0 : i32
    %c0_i32_1 = arith.constant 0 : i32
    return %c0_i32, %c0_i32_0 : i32, i32
  }
  func.func @transform_3(%arg0: i32) -> (i32, i32) {
    %c0_i32 = arith.constant 0 : i32
    %c0_i32_0 = arith.constant 0 : i32
    %c0_i32_1 = arith.constant 0 : i32
    return %c0_i32, %c0_i32_0 : i32, i32
  }
  func.func @transform_4(%arg0: i32) -> (i32, i32) {
    %c0_i32 = arith.constant 0 : i32
    %c0_i32_0 = arith.constant 0 : i32
    %c0_i32_1 = arith.constant 0 : i32
    return %c0_i32, %c0_i32_0 : i32, i32
  }
  func.func @transform_5(%arg0: i32) -> (i32, i32) {
    %c0_i32 = arith.constant 0 : i32
    %c0_i32_0 = arith.constant 0 : i32
    %c0_i32_1 = arith.constant 0 : i32
    return %c0_i32, %c0_i32_0 : i32, i32
  }
  func.func @transform_6(%arg0: i32) -> (i32, i32) {
    %c0_i32 = arith.constant 0 : i32
    %c0_i32_0 = arith.constant 0 : i32
    %c0_i32_1 = arith.constant 0 : i32
    return %c0_i32, %c0_i32_0 : i32, i32
  }
  func.func @transform_7(%arg0: i32) -> (i32, i32) {
    %c0_i32 = arith.constant 0 : i32
    %c0_i32_0 = arith.constant 0 : i32
    %c0_i32_1 = arith.constant 0 : i32
    return %c0_i32, %c0_i32_0 : i32, i32
  }
  func.func @transform_8(%arg0: i32) -> (i32, i32) {
    %c0_i32 = arith.constant 0 : i32
    %c0_i32_0 = arith.constant 0 : i32
    %c0_i32_1 = arith.constant 0 : i32
    return %c0_i32, %c0_i32_0 : i32, i32
  }
  func.func @transform_9(%arg0: i32) -> (i32, i32) {
    %c0_i32 = arith.constant 0 : i32
    %c0_i32_0 = arith.constant 0 : i32
    %c0_i32_1 = arith.constant 0 : i32
    return %c0_i32, %c0_i32_0 : i32, i32
  }
  func.func @transform_10(%arg0: i32) -> (i32, i32) {
    %c0_i32 = arith.constant 0 : i32
    %c0_i32_0 = arith.constant 0 : i32
    %c0_i32_1 = arith.constant 0 : i32
    return %c0_i32, %c0_i32_0 : i32, i32
  }
  func.func @transform_11(%arg0: i32) -> (i32, i32) {
    %c0_i32 = arith.constant 0 : i32
    %c0_i32_0 = arith.constant 0 : i32
    %c0_i32_1 = arith.constant 0 : i32
    return %c0_i32, %c0_i32_0 : i32, i32
  }
  func.func @transform_12(%arg0: i32) -> (i32, i32, i32) {
    %c0_i32 = arith.constant 0 : i32
    %c0_i32_0 = arith.constant 0 : i32
    %c0_i32_1 = arith.constant 0 : i32
    return %arg0, %c0_i32, %c0_i32_0 : i32, i32, i32
  }
}

</mosaic_0001>

<llo_original>
// kernel: tpu_custom_call.1
$region0: #{tpu_custom_call.1}
  #allocation0 [shape = 'u32[]', space=smem, size = 0x4, offset = 0x4, fixed_abs, tag = 'smem constant byte address 0x4 - core index']
  #allocation1 [shape = 'u32[144,128]{1,0:T(1,128)}', space=vmem, size = 0x12000, scoped, tag = 'internal scratch']
  %s0 = inlined_call_operand.hbm [shape: f32[4,8,128], index: 0, kind: input, shape index: {}]
  %s1 = inlined_call_operand.hbm [shape: f32[4,8,8], index: 1, kind: input, shape index: {}]
  %s2 = inlined_call_operand.hbm [shape: bf16[128,3072], index: 2, kind: input, shape index: {}]
  %s3 = inlined_call_operand.hbm [shape: bf16[1024,128], index: 3, kind: input, shape index: {}]
  %s4 = inlined_call_operand.vmem [shape: f32[1,128], index: 4, kind: input, shape index: {}]
  %s5 = inlined_call_operand.vmem [shape: f32[1,128], index: 5, kind: input, shape index: {}]
  %s6 = inlined_call_operand.hbm [shape: bf16[128,512], index: 6, kind: input, shape index: {}]
  %s7 = inlined_call_operand.vmem [shape: f32[1,512], index: 7, kind: input, shape index: {}]
  %s8 = inlined_call_operand.hbm [shape: bf16[512,128], index: 8, kind: input, shape index: {}]
  %s9 = inlined_call_operand.vmem [shape: f32[1,128], index: 9, kind: input, shape index: {}]
  %s10 = inlined_call_operand.vmem [shape: f32[1,128], index: 10, kind: input, shape index: {}]
  %s11 = inlined_call_operand.vmem [shape: f32[1,128], index: 11, kind: input, shape index: {}]
  %s12 = inlined_call_operand.hbm [shape: f32[4,8,128], index: 12, kind: output, shape index: {}]
  %s13 = sld [smem:[#allocation0]]
  $region105: #{tpu_custom_call.1} parent=0
    _
  %s15 = ssub.s32 1, %s13
  %s16 = scalar_select 0, %s15, %s13
  $region1: #{tpu_custom_call.1} parent=0
    #allocation2 [shape = 'u8[8192]{0}', space=vmem, size = 0x2000, scoped, tag = 'input window, operand 0']
    #allocation3 [shape = 's32[2]{0}', space=sflag, size = 0x8, scoped, tag = 'scoped memory for tpu_custom_call.1']
    #allocation4 [shape = 's32[2]{0}', space=sflag, size = 0x8, scoped, tag = 'scoped memory for tpu_custom_call.1']
    #allocation5 [shape = 'u8[8192]{0}', space=vmem, size = 0x2000, scoped, tag = 'input window, operand 1']
    #allocation6 [shape = 's32[2]{0}', space=sflag, size = 0x8, scoped, tag = 'scoped memory for tpu_custom_call.1']
    #allocation7 [shape = 'u8[786432]{0}', space=vmem, size = 0xc0000, scoped, tag = 'input window, operand 2, single buffered']
    #allocation8 [shape = 'u8[262144]{0}', space=vmem, size = 0x40000, scoped, tag = 'input window, operand 3, single buffered']
    #allocation9 [shape = 's32[1]{0}', space=sflag, size = 0x4, scoped, tag = 'scoped memory for tpu_custom_call.1']
    #allocation10 [shape = 'u8[131072]{0}', space=vmem, size = 0x20000, scoped, tag = 'input window, operand 6, single buffered']
    #allocation11 [shape = 'u8[131072]{0}', space=vmem, size = 0x20000, scoped, tag = 'input window, operand 8, single buffered']
    #allocation12 [shape = 's32[1]{0}', space=sflag, size = 0x4, scoped, tag = 'scoped memory for tpu_custom_call.1']
    #allocation13 [shape = 'u8[8192]{0}', space=vmem, size = 0x2000, scoped, tag = 'output window, operand 0']
    %17 = vsyncpa [#allocation3], 0
    %s18 = scalar_lea.sflag [#allocation3], 1
    %19 = vsyncpa %s18, 0
    %20 = vsyncpa [#allocation6], 0
    %s21 = scalar_lea.sflag [#allocation6], 1
    %22 = vsyncpa %s21, 0
    %23 = vsyncpa [#allocation9], 0
    %24 = vsyncpa [#allocation12], 0
    %25 = vsyncpa [#allocation4], 0
    %s26 = scalar_lea.sflag [#allocation4], 1
    %27 = vsyncpa %s26, 0
    loop: start=0, step=1, limit=6
    $region2: #{tpu_custom_call.1} parent=1 // loop_pre_header
      _
    $region3: #{tpu_custom_call.1} parent=1 // loop_header
      %s29 = sphi 0, %s33
      %p30 = scmp.ge.s32.totalorder %s29, 6
      %s39 = sphi 0, %s41
      %s42 = sphi 0, %s39
      %s43 = sphi 0, %s42
      %s59 = sphi 0, %s43
      %s65 = sphi 0, %s67
      %s68 = sphi 0, %s65
      %s69 = sphi 0, %s68
      %s85 = sphi 0, %s69
      %s89 = sphi 0, %s89
      %s91 = sphi 0, %s89
      %s92 = sphi 0, %s91
      %s106 = sphi 0, %s92
      %s110 = sphi 0, %s110
      %s112 = sphi 0, %s110
      %s113 = sphi 0, %s112
      %s127 = sphi 0, %s113
      %s131 = sphi 0, %s131
      %s133 = sphi 0, %s131
      %s134 = sphi 0, %s133
      %s148 = sphi 0, %s134
      %s152 = sphi 0, %s152
      %s154 = sphi 0, %s152
      %s155 = sphi 0, %s154
      %s169 = sphi 0, %s155
      %s173 = sphi 0, %s173
      %s175 = sphi 0, %s173
      %s176 = sphi 0, %s175
      %s190 = sphi 0, %s176
      %s194 = sphi 0, %s194
      %s196 = sphi 0, %s194
      %s197 = sphi 0, %s196
      %s211 = sphi 0, %s197
      %s215 = sphi 0, %s215
      %s217 = sphi 0, %s215
      %s218 = sphi 0, %s217
      %s232 = sphi 0, %s218
      %s236 = sphi 0, %s236
      %s238 = sphi 0, %s236
      %s239 = sphi 0, %s238
      %s253 = sphi 0, %s239
      %s257 = sphi 0, %s257
      %s259 = sphi 0, %s257
      %s260 = sphi 0, %s259
      %s274 = sphi 0, %s260
      %s278 = sphi 0, %s278
      %s280 = sphi 0, %s278
      %s281 = sphi 0, %s280
      %s295 = sphi 0, %s281
      %s301 = sphi 0, %s303
      %s304 = sphi 0, %s301
      %s305 = sphi 0, %s304
      %s321 = sphi 0, %s305
    $region4: #{tpu_custom_call.1} parent=1 // loop_header_branch
      %32 = sbr.rel (%p30) target = $region8
    $region5: #{tpu_custom_call.1} parent=1 // loop_body
      %s34 = ssub.s32 %s29, 1
      %s35 = ssub.s32 %s29, 2
      %s36 = sadd.s32 %s29, 1
      %s37 = ssub.s32 %s29, %s36
      %p38 = scmp.eq.s32.totalorder %s37, 0
      %s40 = sadd.s32 %s39, 1
      %s41 = scalar_select %p38, %s39, %s40
      %p44 = pneg %p38
      %p45 = scmp.eq.s32.totalorder %s29, 3
      %p46 = por %p44, %p45
      %p47 = scmp.ne.s32.totalorder %s39, %s42
      %p48 = scmp.eq.s32.totalorder %s29, 0
      %p49 = por %p47, %p48
      %p50 = scmp.ne.s32.totalorder %s39, %s42
      %p51 = scmp.eq.s32.totalorder %s34, 3
      %p52 = por %p50, %p51
      %p53 = scmp.ne.s32.totalorder %s42, %s43
      %p54 = scmp.eq.s32.totalorder %s34, 0
      %p55 = por %p53, %p54
      %p56 = scmp.ne.s32.totalorder %s42, %s43
      %p57 = scmp.eq.s32.totalorder %s35, 3
      %p58 = por %p56, %p57
      %p60 = scmp.ne.s32.totalorder %s43, %s59
      %p61 = scmp.eq.s32.totalorder %s35, 0
      %p62 = por %p60, %p61
      %s63 = ssub.s32 %s29, %s36
      %p64 = scmp.eq.s32.totalorder %s63, 0
      %s66 = sadd.s32 %s65, 1
      %s67 = scalar_select %p64, %s65, %s66
      %p70 = pneg %p64
      %p71 = scmp.eq.s32.totalorder %s29, 3
      %p72 = por %p70, %p71
      %p73 = scmp.ne.s32.totalorder %s65, %s68
      %p74 = scmp.eq.s32.totalorder %s29, 0
      %p75 = por %p73, %p74
      %p76 = scmp.ne.s32.totalorder %s65, %s68
      %p77 = scmp.eq.s32.totalorder %s34, 3
      %p78 = por %p76, %p77
      %p79 = scmp.ne.s32.totalorder %s68, %s69
      %p80 = scmp.eq.s32.totalorder %s34, 0
      %p81 = por %p79, %p80
      %p82 = scmp.ne.s32.totalorder %s68, %s69
      %p83 = scmp.eq.s32.totalorder %s35, 3
      %p84 = por %p82, %p83
      %p86 = scmp.ne.s32.totalorder %s69, %s85
      %p87 = scmp.eq.s32.totalorder %s35, 0
      %p88 = por %p86, %p87
      %s90 = sadd.s32 %s89, 1
      %p93 = scmp.eq.s32.totalorder %s29, 3
      %p94 = scmp.ne.s32.totalorder %s89, %s91
      %p95 = scmp.eq.s32.totalorder %s29, 0
      %p96 = por %p94, %p95
      %p97 = scmp.ne.s32.totalorder %s89, %s91
      %p98 = scmp.eq.s32.totalorder %s34, 3
      %p99 = por %p97, %p98
      %p100 = scmp.ne.s32.totalorder %s91, %s92
      %p101 = scmp.eq.s32.totalorder %s34, 0
      %p102 = por %p100, %p101
      %p103 = scmp.ne.s32.totalorder %s91, %s92
      %p104 = scmp.eq.s32.totalorder %s35, 3
      %p105 = por %p103, %p104
      %p107 = scmp.ne.s32.totalorder %s92, %s106
      %p108 = scmp.eq.s32.totalorder %s35, 0
      %p109 = por %p107, %p108
      %s111 = sadd.s32 %s110, 1
      %p114 = scmp.eq.s32.totalorder %s29, 3
      %p115 = scmp.ne.s32.totalorder %s110, %s112
      %p116 = scmp.eq.s32.totalorder %s29, 0
      %p117 = por %p115, %p116
      %p118 = scmp.ne.s32.totalorder %s110, %s112
      %p119 = scmp.eq.s32.totalorder %s34, 3
      %p120 = por %p118, %p119
      %p121 = scmp.ne.s32.totalorder %s112, %s113
      %p122 = scmp.eq.s32.totalorder %s34, 0
      %p123 = por %p121, %p122
      %p124 = scmp.ne.s32.totalorder %s112, %s113
      %p125 = scmp.eq.s32.totalorder %s35, 3
      %p126 = por %p124, %p125
      %p128 = scmp.ne.s32.totalorder %s113, %s127
      %p129 = scmp.eq.s32.totalorder %s35, 0
      %p130 = por %p128, %p129
      %s132 = sadd.s32 %s131, 1
      %p135 = scmp.eq.s32.totalorder %s29, 3
      %p136 = scmp.ne.s32.totalorder %s131, %s133
      %p137 = scmp.eq.s32.totalorder %s29, 0
      %p138 = por %p136, %p137
      %p139 = scmp.ne.s32.totalorder %s131, %s133
      %p140 = scmp.eq.s32.totalorder %s34, 3
      %p141 = por %p139, %p140
      %p142 = scmp.ne.s32.totalorder %s133, %s134
      %p143 = scmp.eq.s32.totalorder %s34, 0
      %p144 = por %p142, %p143
      %p145 = scmp.ne.s32.totalorder %s133, %s134
      %p146 = scmp.eq.s32.totalorder %s35, 3
      %p147 = por %p145, %p146
      %p149 = scmp.ne.s32.totalorder %s134, %s148
      %p150 = scmp.eq.s32.totalorder %s35, 0
      %p151 = por %p149, %p150
      %s153 = sadd.s32 %s152, 1
      %p156 = scmp.eq.s32.totalorder %s29, 3
      %p157 = scmp.ne.s32.totalorder %s152, %s154
      %p158 = scmp.eq.s32.totalorder %s29, 0
      %p159 = por %p157, %p158
      %p160 = scmp.ne.s32.totalorder %s152, %s154
      %p161 = scmp.eq.s32.totalorder %s34, 3
      %p162 = por %p160, %p161
      %p163 = scmp.ne.s32.totalorder %s154, %s155
      %p164 = scmp.eq.s32.totalorder %s34, 0
      %p165 = por %p163, %p164
      %p166 = scmp.ne.s32.totalorder %s154, %s155
      %p167 = scmp.eq.s32.totalorder %s35, 3
      %p168 = por %p166, %p167
      %p170 = scmp.ne.s32.totalorder %s155, %s169
      %p171 = scmp.eq.s32.totalorder %s35, 0
      %p172 = por %p170, %p171
      %s174 = sadd.s32 %s173, 1
      %p177 = scmp.eq.s32.totalorder %s29, 3
      %p178 = scmp.ne.s32.totalorder %s173, %s175
      %p179 = scmp.eq.s32.totalorder %s29, 0
      %p180 = por %p178, %p179
      %p181 = scmp.ne.s32.totalorder %s173, %s175
      %p182 = scmp.eq.s32.totalorder %s34, 3
      %p183 = por %p181, %p182
      %p184 = scmp.ne.s32.totalorder %s175, %s176
      %p185 = scmp.eq.s32.totalorder %s34, 0
      %p186 = por %p184, %p185
      %p187 = scmp.ne.s32.totalorder %s175, %s176
      %p188 = scmp.eq.s32.totalorder %s35, 3
      %p189 = por %p187, %p188
      %p191 = scmp.ne.s32.totalorder %s176, %s190
      %p192 = scmp.eq.s32.totalorder %s35, 0
      %p193 = por %p191, %p192
      %s195 = sadd.s32 %s194, 1
      %p198 = scmp.eq.s32.totalorder %s29, 3
      %p199 = scmp.ne.s32.totalorder %s194, %s196
      %p200 = scmp.eq.s32.totalorder %s29, 0
      %p201 = por %p199, %p200
      %p202 = scmp.ne.s32.totalorder %s194, %s196
      %p203 = scmp.eq.s32.totalorder %s34, 3
      %p204 = por %p202, %p203
      %p205 = scmp.ne.s32.totalorder %s196, %s197
      %p206 = scmp.eq.s32.totalorder %s34, 0
      %p207 = por %p205, %p206
      %p208 = scmp.ne.s32.totalorder %s196, %s197
      %p209 = scmp.eq.s32.totalorder %s35, 3
      %p210 = por %p208, %p209
      %p212 = scmp.ne.s32.totalorder %s197, %s211
      %p213 = scmp.eq.s32.totalorder %s35, 0
      %p214 = por %p212, %p213
      %s216 = sadd.s32 %s215, 1
      %p219 = scmp.eq.s32.totalorder %s29, 3
      %p220 = scmp.ne.s32.totalorder %s215, %s217
      %p221 = scmp.eq.s32.totalorder %s29, 0
      %p222 = por %p220, %p221
      %p223 = scmp.ne.s32.totalorder %s215, %s217
      %p224 = scmp.eq.s32.totalorder %s34, 3
      %p225 = por %p223, %p224
      %p226 = scmp.ne.s32.totalorder %s217, %s218
      %p227 = scmp.eq.s32.totalorder %s34, 0
      %p228 = por %p226, %p227
      %p229 = scmp.ne.s32.totalorder %s217, %s218
      %p230 = scmp.eq.s32.totalorder %s35, 3
      %p231 = por %p229, %p230
      %p233 = scmp.ne.s32.totalorder %s218, %s232
      %p234 = scmp.eq.s32.totalorder %s35, 0
      %p235 = por %p233, %p234
      %s237 = sadd.s32 %s236, 1
      %p240 = scmp.eq.s32.totalorder %s29, 3
      %p241 = scmp.ne.s32.totalorder %s236, %s238
      %p242 = scmp.eq.s32.totalorder %s29, 0
      %p243 = por %p241, %p242
      %p244 = scmp.ne.s32.totalorder %s236, %s238
      %p245 = scmp.eq.s32.totalorder %s34, 3
      %p246 = por %p244, %p245
      %p247 = scmp.ne.s32.totalorder %s238, %s239
      %p248 = scmp.eq.s32.totalorder %s34, 0
      %p249 = por %p247, %p248
      %p250 = scmp.ne.s32.totalorder %s238, %s239
      %p251 = scmp.eq.s32.totalorder %s35, 3
      %p252 = por %p250, %p251
      %p254 = scmp.ne.s32.totalorder %s239, %s253
      %p255 = scmp.eq.s32.totalorder %s35, 0
      %p256 = por %p254, %p255
      %s258 = sadd.s32 %s257, 1
      %p261 = scmp.eq.s32.totalorder %s29, 3
      %p262 = scmp.ne.s32.totalorder %s257, %s259
      %p263 = scmp.eq.s32.totalorder %s29, 0
      %p264 = por %p262, %p263
      %p265 = scmp.ne.s32.totalorder %s257, %s259
      %p266 = scmp.eq.s32.totalorder %s34, 3
      %p267 = por %p265, %p266
      %p268 = scmp.ne.s32.totalorder %s259, %s260
      %p269 = scmp.eq.s32.totalorder %s34, 0
      %p270 = por %p268, %p269
      %p271 = scmp.ne.s32.totalorder %s259, %s260
      %p272 = scmp.eq.s32.totalorder %s35, 3
      %p273 = por %p271, %p272
      %p275 = scmp.ne.s32.totalorder %s260, %s274
      %p276 = scmp.eq.s32.totalorder %s35, 0
      %p277 = por %p275, %p276
      %s279 = sadd.s32 %s278, 1
      %p282 = scmp.eq.s32.totalorder %s29, 3
      %p283 = scmp.ne.s32.totalorder %s278, %s280
      %p284 = scmp.eq.s32.totalorder %s29, 0
      %p285 = por %p283, %p284
      %p286 = scmp.ne.s32.totalorder %s278, %s280
      %p287 = scmp.eq.s32.totalorder %s34, 3
      %p288 = por %p286, %p287
      %p289 = scmp.ne.s32.totalorder %s280, %s281
      %p290 = scmp.eq.s32.totalorder %s34, 0
      %p291 = por %p289, %p290
      %p292 = scmp.ne.s32.totalorder %s280, %s281
      %p293 = scmp.eq.s32.totalorder %s35, 3
      %p294 = por %p292, %p293
      %p296 = scmp.ne.s32.totalorder %s281, %s295
      %p297 = scmp.eq.s32.totalorder %s35, 0
      %p298 = por %p296, %p297
      %s299 = ssub.s32 %s29, %s36
      %p300 = scmp.eq.s32.totalorder %s299, 0
      %s302 = sadd.s32 %s301, 1
      %s303 = scalar_select %p300, %s301, %s302
      %p306 = pneg %p300
      %p307 = scmp.eq.s32.totalorder %s29, 3
      %p308 = por %p306, %p307
      %p309 = scmp.ne.s32.totalorder %s301, %s304
      %p310 = scmp.eq.s32.totalorder %s29, 0
      %p311 = por %p309, %p310
      %p312 = scmp.ne.s32.totalorder %s301, %s304
      %p313 = scmp.eq.s32.totalorder %s34, 3
      %p314 = por %p312, %p313
      %p315 = scmp.ne.s32.totalorder %s304, %s305
      %p316 = scmp.eq.s32.totalorder %s34, 0
      %p317 = por %p315, %p316
      %p318 = scmp.ne.s32.totalorder %s304, %s305
      %p319 = scmp.eq.s32.totalorder %s35, 3
      %p320 = por %p318, %p319
      %p322 = scmp.ne.s32.totalorder %s305, %s321
      %p323 = scmp.eq.s32.totalorder %s35, 0
      %p324 = por %p322, %p323
      %p325 = scmp.le.s32.totalorder 1, %s29
      %p326 = scmp.lt.s32.totalorder %s29, 5
      %p327 = pnand %p325, %p326
      %p328 = pneg %p327
      // Predicated region
      $region9: #{tpu_custom_call.1} parent=5 // pred_check
        _
      $region10: #{tpu_custom_call.1} parent=5 // pred_check_branch
        %330 = sbr.rel (%p327) target = $region12
      $region11: #{tpu_custom_call.1} parent=5 // pred_region
        %s331 = ssub.s32 %s29, 1
        // Predicated region
        $region13: #{tpu_custom_call.1} parent=11 // pred_check
          %p332 = pneg %p102
        $region14: #{tpu_custom_call.1} parent=11 // pred_check_branch
          %334 = sbr.rel (%p332) target = $region16
        $region15: #{tpu_custom_call.1} parent=11 // pred_region
          %s336 = ssub.s32 24576, 24576
          %337 = vsyncadd [#allocation6], %s336
          %s338 = sshll.u32 [#allocation7], 4
          %s339 = int_to_ptr.vmem [resolvable:$true] %s338
          %344 = dma.hbm_to_vmem [thread:$0]  %s2, 24576, %s339, [#allocation6], 1536, 1536, 96
        $region16: #{tpu_custom_call.1} parent=11 // pred_fallthru
          _
        // Predicated region
        $region17: #{tpu_custom_call.1} parent=11 // pred_check
          %p345 = pneg %p123
        $region18: #{tpu_custom_call.1} parent=11 // pred_check_branch
          %347 = sbr.rel (%p345) target = $region20
        $region19: #{tpu_custom_call.1} parent=11 // pred_region
          %s349 = ssub.s32 8192, 8192
          %350 = vsyncadd [#allocation9], %s349
          %s351 = sshll.u32 [#allocation8], 4
          %s352 = int_to_ptr.vmem [resolvable:$true] %s351
          %357 = dma.hbm_to_vmem [thread:$0]  %s3, 8192, %s352, [#allocation9], 64, 64, 4
        $region20: #{tpu_custom_call.1} parent=11 // pred_fallthru
          _
        // Predicated region
        $region21: #{tpu_custom_call.1} parent=11 // pred_check
          %p358 = pneg %p144
        $region22: #{tpu_custom_call.1} parent=11 // pred_check_branch
          %360 = sbr.rel (%p358) target = $region24
        $region23: #{tpu_custom_call.1} parent=11 // pred_region
          _
        $region24: #{tpu_custom_call.1} parent=11 // pred_fallthru
          _
        // Predicated region
        $region25: #{tpu_custom_call.1} parent=11 // pred_check
          %p361 = pneg %p165
        $region26: #{tpu_custom_call.1} parent=11 // pred_check_branch
          %363 = sbr.rel (%p361) target = $region28
        $region27: #{tpu_custom_call.1} parent=11 // pred_region
          _
        $region28: #{tpu_custom_call.1} parent=11 // pred_fallthru
          _
        // Predicated region
        $region29: #{tpu_custom_call.1} parent=11 // pred_check
          %p364 = pneg %p186
        $region30: #{tpu_custom_call.1} parent=11 // pred_check_branch
          %366 = sbr.rel (%p364) target = $region32
        $region31: #{tpu_custom_call.1} parent=11 // pred_region
          %s368 = ssub.s32 4096, 4096
          %369 = vsyncadd [#allocation9], %s368
          %s370 = sshll.u32 [#allocation10], 4
          %s371 = int_to_ptr.vmem [resolvable:$true] %s370
          %376 = dma.hbm_to_vmem [thread:$0]  %s6, 4096, %s371, [#allocation9], 256, 256, 16
        $region32: #{tpu_custom_call.1} parent=11 // pred_fallthru
          _
        // Predicated region
        $region33: #{tpu_custom_call.1} parent=11 // pred_check
          %p377 = pneg %p207
        $region34: #{tpu_custom_call.1} parent=11 // pred_check_branch
          %379 = sbr.rel (%p377) target = $region36
        $region35: #{tpu_custom_call.1} parent=11 // pred_region
          _
        $region36: #{tpu_custom_call.1} parent=11 // pred_fallthru
          _
        // Predicated region
        $region37: #{tpu_custom_call.1} parent=11 // pred_check
          %p380 = pneg %p228
        $region38: #{tpu_custom_call.1} parent=11 // pred_check_branch
          %382 = sbr.rel (%p380) target = $region40
        $region39: #{tpu_custom_call.1} parent=11 // pred_region
          %s384 = ssub.s32 4096, 4096
          %385 = vsyncadd [#allocation12], %s384
          %s386 = sshll.u32 [#allocation11], 4
          %s387 = int_to_ptr.vmem [resolvable:$true] %s386
          %392 = dma.hbm_to_vmem [thread:$0]  %s8, 4096, %s387, [#allocation12], 64, 64, 4
        $region40: #{tpu_custom_call.1} parent=11 // pred_fallthru
          _
        // Predicated region
        $region41: #{tpu_custom_call.1} parent=11 // pred_check
          %p393 = pneg %p249
        $region42: #{tpu_custom_call.1} parent=11 // pred_check_branch
          %395 = sbr.rel (%p393) target = $region44
        $region43: #{tpu_custom_call.1} parent=11 // pred_region
          _
        $region44: #{tpu_custom_call.1} parent=11 // pred_fallthru
          _
        // Predicated region
        $region45: #{tpu_custom_call.1} parent=11 // pred_check
          %p396 = pneg %p270
        $region46: #{tpu_custom_call.1} parent=11 // pred_check_branch
          %398 = sbr.rel (%p396) target = $region48
        $region47: #{tpu_custom_call.1} parent=11 // pred_region
          _
        $region48: #{tpu_custom_call.1} parent=11 // pred_fallthru
          _
        // Predicated region
        $region49: #{tpu_custom_call.1} parent=11 // pred_check
          %p399 = pneg %p291
        $region50: #{tpu_custom_call.1} parent=11 // pred_check_branch
          %401 = sbr.rel (%p399) target = $region52
        $region51: #{tpu_custom_call.1} parent=11 // pred_region
          _
        $region52: #{tpu_custom_call.1} parent=11 // pred_fallthru
          _
      $region12: #{tpu_custom_call.1} parent=5 // pred_fallthru
        _
      %p402 = scmp.lt.s32.totalorder %s29, 4
      // Predicated region
      $region53: #{tpu_custom_call.1} parent=5 // pred_check
        %p403 = pneg %p402
      $region54: #{tpu_custom_call.1} parent=5 // pred_check_branch
        %405 = sbr.rel (%p403) target = $region56
      $region55: #{tpu_custom_call.1} parent=5 // pred_region
        // Predicated region
        $region57: #{tpu_custom_call.1} parent=55 // pred_check
          %p406 = pneg %p49
        $region58: #{tpu_custom_call.1} parent=55 // pred_check_branch
          %408 = sbr.rel (%p406) target = $region60
        $region59: #{tpu_custom_call.1} parent=55 // pred_region
          %s409 = sand.u32 %s39, 1
          %s410 = scalar_lea.sflag [#allocation3], %s409
          %s411 = sand.u32 %s39, 1
          %s412 = smul.addr %s411, 8
          %s413 = scalar_lea.vmem [#allocation2], %s412
          %s415 = ssub.s32 128, 128
          %416 = vsyncadd %s410, %s415
          %s417 = smul.addr %s29, 128
          %s418 = scalar_lea.hbm %s0, %s417
          %s420 = sshll.u32 %s413, 4
          %s421 = int_to_ptr.vmem [resolvable:$true] %s420
          %423 = dma.hbm_to_vmem [thread:$0]  %s418, 128, %s421, %s410
        $region60: #{tpu_custom_call.1} parent=55 // pred_fallthru
          _
        // Predicated region
        $region61: #{tpu_custom_call.1} parent=55 // pred_check
          %p424 = pneg %p75
        $region62: #{tpu_custom_call.1} parent=55 // pred_check_branch
          %426 = sbr.rel (%p424) target = $region64
        $region63: #{tpu_custom_call.1} parent=55 // pred_region
          %s427 = sand.u32 %s29, 1
          %s428 = scalar_lea.sflag [#allocation6], %s427
          %s429 = sand.u32 %s65, 1
          %s430 = smul.addr %s429, 8
          %s431 = scalar_lea.vmem [#allocation5], %s430
          %s433 = ssub.s32 128, 128
          %434 = vsyncadd %s428, %s433
          %s435 = smul.addr %s29, 128
          %s436 = scalar_lea.hbm %s1, %s435
          %s438 = sshll.u32 %s431, 4
          %s439 = int_to_ptr.vmem [resolvable:$true] %s438
          %441 = dma.hbm_to_vmem [thread:$0]  %s436, 128, %s439, %s428
        $region64: #{tpu_custom_call.1} parent=55 // pred_fallthru
          _
      $region56: #{tpu_custom_call.1} parent=5 // pred_fallthru
        _
      %p442 = scmp.le.s32.totalorder 1, %s29
      %p443 = scmp.lt.s32.totalorder %s29, 5
      %p444 = pnand %p442, %p443
      %p445 = pneg %p444
      // Predicated region
      $region65: #{tpu_custom_call.1} parent=5 // pred_check
        _
      $region66: #{tpu_custom_call.1} parent=5 // pred_check_branch
        %447 = sbr.rel (%p444) target = $region68
      $region67: #{tpu_custom_call.1} parent=5 // pred_region
        %s448 = ssub.s32 %s29, 1
        %s449 = sand.u32 %s42, 1
        %s450 = scalar_lea.sflag [#allocation3], %s449
        %s451 = sand.u32 %s42, 1
        %s452 = smul.addr %s451, 8
        %s453 = scalar_lea.vmem [#allocation2], %s452
        // Predicated region
        $region69: #{tpu_custom_call.1} parent=67 // pred_check
          %p454 = pneg %p55
        $region70: #{tpu_custom_call.1} parent=67 // pred_check_branch
          %456 = sbr.rel (%p454) target = $region72
        $region71: #{tpu_custom_call.1} parent=67 // pred_region
          %457 = dma.done %s450, 128
        $region72: #{tpu_custom_call.1} parent=67 // pred_fallthru
          _
        %s458 = sand.u32 %s34, 1
        %s459 = scalar_lea.sflag [#allocation6], %s458
        %s460 = sand.u32 %s68, 1
        %s461 = smul.addr %s460, 8
        %s462 = scalar_lea.vmem [#allocation5], %s461
        // Predicated region
        $region73: #{tpu_custom_call.1} parent=67 // pred_check
          %p463 = pneg %p81
        $region74: #{tpu_custom_call.1} parent=67 // pred_check_branch
          %465 = sbr.rel (%p463) target = $region76
        $region75: #{tpu_custom_call.1} parent=67 // pred_region
          %466 = dma.done %s459, 128
        $region76: #{tpu_custom_call.1} parent=67 // pred_fallthru
          _
        // Predicated region
        $region77: #{tpu_custom_call.1} parent=67 // pred_check
          %p467 = pneg %p102
        $region78: #{tpu_custom_call.1} parent=67 // pred_check_branch
          %469 = sbr.rel (%p467) target = $region80
        $region79: #{tpu_custom_call.1} parent=67 // pred_region
          %470 = dma.done [#allocation6], 24576
        $region80: #{tpu_custom_call.1} parent=67 // pred_fallthru
          _
        // Predicated region
        $region81: #{tpu_custom_call.1} parent=67 // pred_check
          %p471 = pneg %p123
        $region82: #{tpu_custom_call.1} parent=67 // pred_check_branch
          %473 = sbr.rel (%p471) target = $region84
        $region83: #{tpu_custom_call.1} parent=67 // pred_region
          %474 = dma.done [#allocation9], 8192
        $region84: #{tpu_custom_call.1} parent=67 // pred_fallthru
          _
        // Predicated region
        $region85: #{tpu_custom_call.1} parent=67 // pred_check
          %p475 = pneg %p186
        $region86: #{tpu_custom_call.1} parent=67 // pred_check_branch
          %477 = sbr.rel (%p475) target = $region88
        $region87: #{tpu_custom_call.1} parent=67 // pred_region
          %478 = dma.done [#allocation9], 4096
        $region88: #{tpu_custom_call.1} parent=67 // pred_fallthru
          _
        // Predicated region
        $region89: #{tpu_custom_call.1} parent=67 // pred_check
          %p479 = pneg %p228
        $region90: #{tpu_custom_call.1} parent=67 // pred_check_branch
          %481 = sbr.rel (%p479) target = $region92
        $region91: #{tpu_custom_call.1} parent=67 // pred_region
          %482 = dma.done [#allocation12], 4096
        $region92: #{tpu_custom_call.1} parent=67 // pred_fallthru
          _
        %s483 = sand.u32 %s42, 1
        %s484 = scalar_lea.sflag [#allocation3], %s483
        %s485 = sand.u32 %s42, 1
        %s486 = smul.addr %s485, 8
        %s487 = scalar_lea.vmem [#allocation2], %s486
        %p488 = pneg %p55
        %p489 = pneg %p52
        %s490 = sand.u32 %s34, 1
        %s491 = scalar_lea.sflag [#allocation6], %s490
        %s492 = sand.u32 %s68, 1
        %s493 = smul.addr %s492, 8
        %s494 = scalar_lea.vmem [#allocation5], %s493
        %p495 = pneg %p81
        %p496 = pneg %p78
        %p497 = pneg %p102
        %p498 = pneg %p99
        %p499 = pneg %p123
        %p500 = pneg %p120
        %p501 = pneg %p144
        %p502 = pneg %p141
        %p503 = pneg %p165
        %p504 = pneg %p162
        %p505 = pneg %p186
        %p506 = pneg %p183
        %p507 = pneg %p207
        %p508 = pneg %p204
        %p509 = pneg %p228
        %p510 = pneg %p225
        %p511 = pneg %p249
        %p512 = pneg %p246
        %p513 = pneg %p270
        %p514 = pneg %p267
        %p515 = pneg %p291
        %p516 = pneg %p288
        %p517 = pneg %p317
        %p518 = pneg %p314
        %s519 = sand.u32 %s304, 1
        %s520 = scalar_lea.sflag [#allocation4], %s519
        %s521 = sand.u32 %s304, 1
        %s522 = smul.addr %s521, 8
        %s523 = scalar_lea.vmem [#allocation13], %s522
        %v525 = vld [vmem:[%s453] sm:$0xff]
        %v526 = vld [vmem:[%s462] sm:$0xff]
        %vm527 = vcmp.gt.f32.partialorder %v526, 0.0
        %v528 = vpack.c.bf16 %v525, %v525
        %v529 = vld [vmem:[#allocation7] sm:$0xff]
        %v530 = vld [vmem:[#allocation7 + $0x8] sm:$0xff]
        %v531 = vld [vmem:[#allocation7 + $0x10] sm:$0xff]
        %v532 = vld [vmem:[#allocation7 + $0x18] sm:$0xff]
        %v533 = vld [vmem:[#allocation7 + $0x20] sm:$0xff]
        %v534 = vld [vmem:[#allocation7 + $0x28] sm:$0xff]
        %v535 = vld [vmem:[#allocation7 + $0x30] sm:$0xff]
        %v536 = vld [vmem:[#allocation7 + $0x38] sm:$0xff]
        %v537 = vld [vmem:[#allocation7 + $0x40] sm:$0xff]
        %v538 = vld [vmem:[#allocation7 + $0x48] sm:$0xff]
        %v539 = vld [vmem:[#allocation7 + $0x50] sm:$0xff]
        %v540 = vld [vmem:[#allocation7 + $0x58] sm:$0xff]
        %v541 = vld [vmem:[#allocation7 + $0x60] sm:$0xff]
        %v542 = vld [vmem:[#allocation7 + $0x68] sm:$0xff]
        %v543 = vld [vmem:[#allocation7 + $0x70] sm:$0xff]
        %v544 = vld [vmem:[#allocation7 + $0x78] sm:$0xff]
        %v545 = vld [vmem:[#allocation7 + $0x80] sm:$0xff]
        %v546 = vld [vmem:[#allocation7 + $0x88] sm:$0xff]
        %v547 = vld [vmem:[#allocation7 + $0x90] sm:$0xff]
        %v548 = vld [vmem:[#allocation7 + $0x98] sm:$0xff]
        %v549 = vld [vmem:[#allocation7 + $0xa0] sm:$0xff]
        %v550 = vld [vmem:[#allocation7 + $0xa8] sm:$0xff]
        %v551 = vld [vmem:[#allocation7 + $0xb0] sm:$0xff]
        %v552 = vld [vmem:[#allocation7 + $0xb8] sm:$0xff]
        %v553 = vld [vmem:[#allocation7 + $0xc0] sm:$0xff]
        %v554 = vld [vmem:[#allocation7 + $0xc8] sm:$0xff]
        %v555 = vld [vmem:[#allocation7 + $0xd0] sm:$0xff]
        %v556 = vld [vmem:[#allocation7 + $0xd8] sm:$0xff]
        %v557 = vld [vmem:[#allocation7 + $0xe0] sm:$0xff]
        %v558 = vld [vmem:[#allocation7 + $0xe8] sm:$0xff]
        %v559 = vld [vmem:[#allocation7 + $0xf0] sm:$0xff]
        %v560 = vld [vmem:[#allocation7 + $0xf8] sm:$0xff]
        %v561 = vld [vmem:[#allocation7 + $0x100] sm:$0xff]
        %v562 = vld [vmem:[#allocation7 + $0x108] sm:$0xff]
        %v563 = vld [vmem:[#allocation7 + $0x110] sm:$0xff]
        %v564 = vld [vmem:[#allocation7 + $0x118] sm:$0xff]
        %v565 = vld [vmem:[#allocation7 + $0x120] sm:$0xff]
        %v566 = vld [vmem:[#allocation7 + $0x128] sm:$0xff]
        %v567 = vld [vmem:[#allocation7 + $0x130] sm:$0xff]
        %v568 = vld [vmem:[#allocation7 + $0x138] sm:$0xff]
        %v569 = vld [vmem:[#allocation7 + $0x140] sm:$0xff]
        %v570 = vld [vmem:[#allocation7 + $0x148] sm:$0xff]
        %v571 = vld [vmem:[#allocation7 + $0x150] sm:$0xff]
        %v572 = vld [vmem:[#allocation7 + $0x158] sm:$0xff]
        %v573 = vld [vmem:[#allocation7 + $0x160] sm:$0xff]
        %v574 = vld [vmem:[#allocation7 + $0x168] sm:$0xff]
        %v575 = vld [vmem:[#allocation7 + $0x170] sm:$0xff]
        %v576 = vld [vmem:[#allocation7 + $0x178] sm:$0xff]
        %v577 = vld [vmem:[#allocation7 + $0x180] sm:$0xff]
        %v578 = vld [vmem:[#allocation7 + $0x188] sm:$0xff]
        %v579 = vld [vmem:[#allocation7 + $0x190] sm:$0xff]
        %v580 = vld [vmem:[#allocation7 + $0x198] sm:$0xff]
        %v581 = vld [vmem:[#allocation7 + $0x1a0] sm:$0xff]
        %v582 = vld [vmem:[#allocation7 + $0x1a8] sm:$0xff]
        %v583 = vld [vmem:[#allocation7 + $0x1b0] sm:$0xff]
        %v584 = vld [vmem:[#allocation7 + $0x1b8] sm:$0xff]
        %v585 = vld [vmem:[#allocation7 + $0x1c0] sm:$0xff]
        %v586 = vld [vmem:[#allocation7 + $0x1c8] sm:$0xff]
        %v587 = vld [vmem:[#allocation7 + $0x1d0] sm:$0xff]
        %v588 = vld [vmem:[#allocation7 + $0x1d8] sm:$0xff]
        %v589 = vld [vmem:[#allocation7 + $0x1e0] sm:$0xff]
        %v590 = vld [vmem:[#allocation7 + $0x1e8] sm:$0xff]
        %v591 = vld [vmem:[#allocation7 + $0x1f0] sm:$0xff]
        %v592 = vld [vmem:[#allocation7 + $0x1f8] sm:$0xff]
        %v593 = vld [vmem:[#allocation7 + $0x200] sm:$0xff]
        %v594 = vld [vmem:[#allocation7 + $0x208] sm:$0xff]
        %v595 = vld [vmem:[#allocation7 + $0x210] sm:$0xff]
        %v596 = vld [vmem:[#allocation7 + $0x218] sm:$0xff]
        %v597 = vld [vmem:[#allocation7 + $0x220] sm:$0xff]
        %v598 = vld [vmem:[#allocation7 + $0x228] sm:$0xff]
        %v599 = vld [vmem:[#allocation7 + $0x230] sm:$0xff]
        %v600 = vld [vmem:[#allocation7 + $0x238] sm:$0xff]
        %v601 = vld [vmem:[#allocation7 + $0x240] sm:$0xff]
        %v602 = vld [vmem:[#allocation7 + $0x248] sm:$0xff]
        %v603 = vld [vmem:[#allocation7 + $0x250] sm:$0xff]
        %v604 = vld [vmem:[#allocation7 + $0x258] sm:$0xff]
        %v605 = vld [vmem:[#allocation7 + $0x260] sm:$0xff]
        %v606 = vld [vmem:[#allocation7 + $0x268] sm:$0xff]
        %v607 = vld [vmem:[#allocation7 + $0x270] sm:$0xff]
        %v608 = vld [vmem:[#allocation7 + $0x278] sm:$0xff]
        %v609 = vld [vmem:[#allocation7 + $0x280] sm:$0xff]
        %v610 = vld [vmem:[#allocation7 + $0x288] sm:$0xff]
        %v611 = vld [vmem:[#allocation7 + $0x290] sm:$0xff]
        %v612 = vld [vmem:[#allocation7 + $0x298] sm:$0xff]
        %v613 = vld [vmem:[#allocation7 + $0x2a0] sm:$0xff]
        %v614 = vld [vmem:[#allocation7 + $0x2a8] sm:$0xff]
        %v615 = vld [vmem:[#allocation7 + $0x2b0] sm:$0xff]
        %v616 = vld [vmem:[#allocation7 + $0x2b8] sm:$0xff]
        %v617 = vld [vmem:[#allocation7 + $0x2c0] sm:$0xff]
        %v618 = vld [vmem:[#allocation7 + $0x2c8] sm:$0xff]
        %v619 = vld [vmem:[#allocation7 + $0x2d0] sm:$0xff]
        %v620 = vld [vmem:[#allocation7 + $0x2d8] sm:$0xff]
        %v621 = vld [vmem:[#allocation7 + $0x2e0] sm:$0xff]
        %v622 = vld [vmem:[#allocation7 + $0x2e8] sm:$0xff]
        %v623 = vld [vmem:[#allocation7 + $0x2f0] sm:$0xff]
        %v624 = vld [vmem:[#allocation7 + $0x2f8] sm:$0xff]
        %v625 = vld [vmem:[#allocation7 + $0x300] sm:$0xff]
        %v626 = vld [vmem:[#allocation7 + $0x308] sm:$0xff]
        %v627 = vld [vmem:[#allocation7 + $0x310] sm:$0xff]
        %v628 = vld [vmem:[#allocation7 + $0x318] sm:$0xff]
        %v629 = vld [vmem:[#allocation7 + $0x320] sm:$0xff]
        %v630 = vld [vmem:[#allocation7 + $0x328] sm:$0xff]
        %v631 = vld [vmem:[#allocation7 + $0x330] sm:$0xff]
        %v632 = vld [vmem:[#allocation7 + $0x338] sm:$0xff]
        %v633 = vld [vmem:[#allocation7 + $0x340] sm:$0xff]
        %v634 = vld [vmem:[#allocation7 + $0x348] sm:$0xff]
        %v635 = vld [vmem:[#allocation7 + $0x350] sm:$0xff]
        %v636 = vld [vmem:[#allocation7 + $0x358] sm:$0xff]
        %v637 = vld [vmem:[#allocation7 + $0x360] sm:$0xff]
        %v638 = vld [vmem:[#allocation7 + $0x368] sm:$0xff]
        %v639 = vld [vmem:[#allocation7 + $0x370] sm:$0xff]
        %v640 = vld [vmem:[#allocation7 + $0x378] sm:$0xff]
        %v641 = vld [vmem:[#allocation7 + $0x380] sm:$0xff]
        %v642 = vld [vmem:[#allocation7 + $0x388] sm:$0xff]
        %v643 = vld [vmem:[#allocation7 + $0x390] sm:$0xff]
        %v644 = vld [vmem:[#allocation7 + $0x398] sm:$0xff]
        %v645 = vld [vmem:[#allocation7 + $0x3a0] sm:$0xff]
        %v646 = vld [vmem:[#allocation7 + $0x3a8] sm:$0xff]
        %v647 = vld [vmem:[#allocation7 + $0x3b0] sm:$0xff]
        %v648 = vld [vmem:[#allocation7 + $0x3b8] sm:$0xff]
        %v649 = vld [vmem:[#allocation7 + $0x3c0] sm:$0xff]
        %v650 = vld [vmem:[#allocation7 + $0x3c8] sm:$0xff]
        %v651 = vld [vmem:[#allocation7 + $0x3d0] sm:$0xff]
        %v652 = vld [vmem:[#allocation7 + $0x3d8] sm:$0xff]
        %v653 = vld [vmem:[#allocation7 + $0x3e0] sm:$0xff]
        %v654 = vld [vmem:[#allocation7 + $0x3e8] sm:$0xff]
        %v655 = vld [vmem:[#allocation7 + $0x3f0] sm:$0xff]
        %v656 = vld [vmem:[#allocation7 + $0x3f8] sm:$0xff]
        %v657 = vld [vmem:[#allocation7 + $0x400] sm:$0xff]
        %v658 = vld [vmem:[#allocation7 + $0x408] sm:$0xff]
        %v659 = vld [vmem:[#allocation7 + $0x410] sm:$0xff]
        %v660 = vld [vmem:[#allocation7 + $0x418] sm:$0xff]
        %v661 = vld [vmem:[#allocation7 + $0x420] sm:$0xff]
        %v662 = vld [vmem:[#allocation7 + $0x428] sm:$0xff]
        %v663 = vld [vmem:[#allocation7 + $0x430] sm:$0xff]
        %v664 = vld [vmem:[#allocation7 + $0x438] sm:$0xff]
        %v665 = vld [vmem:[#allocation7 + $0x440] sm:$0xff]
        %v666 = vld [vmem:[#allocation7 + $0x448] sm:$0xff]
        %v667 = vld [vmem:[#allocation7 + $0x450] sm:$0xff]
        %v668 = vld [vmem:[#allocation7 + $0x458] sm:$0xff]
        %v669 = vld [vmem:[#allocation7 + $0x460] sm:$0xff]
        %v670 = vld [vmem:[#allocation7 + $0x468] sm:$0xff]
        %v671 = vld [vmem:[#allocation7 + $0x470] sm:$0xff]
        %v672 = vld [vmem:[#allocation7 + $0x478] sm:$0xff]
        %v673 = vld [vmem:[#allocation7 + $0x480] sm:$0xff]
        %v674 = vld [vmem:[#allocation7 + $0x488] sm:$0xff]
        %v675 = vld [vmem:[#allocation7 + $0x490] sm:$0xff]
        %v676 = vld [vmem:[#allocation7 + $0x498] sm:$0xff]
        %v677 = vld [vmem:[#allocation7 + $0x4a0] sm:$0xff]
        %v678 = vld [vmem:[#allocation7 + $0x4a8] sm:$0xff]
        %v679 = vld [vmem:[#allocation7 + $0x4b0] sm:$0xff]
        %v680 = vld [vmem:[#allocation7 + $0x4b8] sm:$0xff]
        %v681 = vld [vmem:[#allocation7 + $0x4c0] sm:$0xff]
        %v682 = vld [vmem:[#allocation7 + $0x4c8] sm:$0xff]
        %v683 = vld [vmem:[#allocation7 + $0x4d0] sm:$0xff]
        %v684 = vld [vmem:[#allocation7 + $0x4d8] sm:$0xff]
        %v685 = vld [vmem:[#allocation7 + $0x4e0] sm:$0xff]
        %v686 = vld [vmem:[#allocation7 + $0x4e8] sm:$0xff]
        %v687 = vld [vmem:[#allocation7 + $0x4f0] sm:$0xff]
        %v688 = vld [vmem:[#allocation7 + $0x4f8] sm:$0xff]
        %v689 = vld [vmem:[#allocation7 + $0x500] sm:$0xff]
        %v690 = vld [vmem:[#allocation7 + $0x508] sm:$0xff]
        %v691 = vld [vmem:[#allocation7 + $0x510] sm:$0xff]
        %v692 = vld [vmem:[#allocation7 + $0x518] sm:$0xff]
        %v693 = vld [vmem:[#allocation7 + $0x520] sm:$0xff]
        %v694 = vld [vmem:[#allocation7 + $0x528] sm:$0xff]
        %v695 = vld [vmem:[#allocation7 + $0x530] sm:$0xff]
        %v696 = vld [vmem:[#allocation7 + $0x538] sm:$0xff]
        %v697 = vld [vmem:[#allocation7 + $0x540] sm:$0xff]
        %v698 = vld [vmem:[#allocation7 + $0x548] sm:$0xff]
        %v699 = vld [vmem:[#allocation7 + $0x550] sm:$0xff]
        %v700 = vld [vmem:[#allocation7 + $0x558] sm:$0xff]
        %v701 = vld [vmem:[#allocation7 + $0x560] sm:$0xff]
        %v702 = vld [vmem:[#allocation7 + $0x568] sm:$0xff]
        %v703 = vld [vmem:[#allocation7 + $0x570] sm:$0xff]
        %v704 = vld [vmem:[#allocation7 + $0x578] sm:$0xff]
        %v705 = vld [vmem:[#allocation7 + $0x580] sm:$0xff]
        %v706 = vld [vmem:[#allocation7 + $0x588] sm:$0xff]
        %v707 = vld [vmem:[#allocation7 + $0x590] sm:$0xff]
        %v708 = vld [vmem:[#allocation7 + $0x598] sm:$0xff]
        %v709 = vld [vmem:[#allocation7 + $0x5a0] sm:$0xff]
        %v710 = vld [vmem:[#allocation7 + $0x5a8] sm:$0xff]
        %v711 = vld [vmem:[#allocation7 + $0x5b0] sm:$0xff]
        %v712 = vld [vmem:[#allocation7 + $0x5b8] sm:$0xff]
        %v713 = vld [vmem:[#allocation7 + $0x5c0] sm:$0xff]
        %v714 = vld [vmem:[#allocation7 + $0x5c8] sm:$0xff]
        %v715 = vld [vmem:[#allocation7 + $0x5d0] sm:$0xff]
        %v716 = vld [vmem:[#allocation7 + $0x5d8] sm:$0xff]
        %v717 = vld [vmem:[#allocation7 + $0x5e0] sm:$0xff]
        %v718 = vld [vmem:[#allocation7 + $0x5e8] sm:$0xff]
        %v719 = vld [vmem:[#allocation7 + $0x5f0] sm:$0xff]
        %v720 = vld [vmem:[#allocation7 + $0x5f8] sm:$0xff]
        %v913 = vunpack.c.l.b16 %v529
        %v914 = vunpack.c.h.b16 %v529
        %v915 = vunpack.c.l.b16 %v530
        %v916 = vunpack.c.h.b16 %v530
        %v917 = vunpack.c.l.b16 %v531
        %v918 = vunpack.c.h.b16 %v531
        %v919 = vunpack.c.l.b16 %v532
        %v920 = vunpack.c.h.b16 %v532
        %v921 = vunpack.c.l.b16 %v533
        %v922 = vunpack.c.h.b16 %v533
        %v923 = vunpack.c.l.b16 %v534
        %v924 = vunpack.c.h.b16 %v534
        %v925 = vunpack.c.l.b16 %v535
        %v926 = vunpack.c.h.b16 %v535
        %v927 = vunpack.c.l.b16 %v536
        %v928 = vunpack.c.h.b16 %v536
        %v929 = vunpack.c.l.b16 %v537
        %v930 = vunpack.c.h.b16 %v537
        %v931 = vunpack.c.l.b16 %v538
        %v932 = vunpack.c.h.b16 %v538
        %v933 = vunpack.c.l.b16 %v539
        %v934 = vunpack.c.h.b16 %v539
        %v935 = vunpack.c.l.b16 %v540
        %v936 = vunpack.c.h.b16 %v540
        %v937 = vunpack.c.l.b16 %v541
        %v938 = vunpack.c.h.b16 %v541
        %v939 = vunpack.c.l.b16 %v542
        %v940 = vunpack.c.h.b16 %v542
        %v941 = vunpack.c.l.b16 %v543
        %v942 = vunpack.c.h.b16 %v543
        %v943 = vunpack.c.l.b16 %v544
        %v944 = vunpack.c.h.b16 %v544
        %v945 = vunpack.c.l.b16 %v545
        %v946 = vunpack.c.h.b16 %v545
        %v947 = vunpack.c.l.b16 %v546
        %v948 = vunpack.c.h.b16 %v546
        %v949 = vunpack.c.l.b16 %v547
        %v950 = vunpack.c.h.b16 %v547
        %v951 = vunpack.c.l.b16 %v548
        %v952 = vunpack.c.h.b16 %v548
        %v953 = vunpack.c.l.b16 %v549
        %v954 = vunpack.c.h.b16 %v549
        %v955 = vunpack.c.l.b16 %v550
        %v956 = vunpack.c.h.b16 %v550
        %v957 = vunpack.c.l.b16 %v551
        %v958 = vunpack.c.h.b16 %v551
        %v959 = vunpack.c.l.b16 %v552
        %v960 = vunpack.c.h.b16 %v552
        %v961 = vunpack.c.l.b16 %v553
        %v962 = vunpack.c.h.b16 %v553
        %v963 = vunpack.c.l.b16 %v554
        %v964 = vunpack.c.h.b16 %v554
        %v965 = vunpack.c.l.b16 %v555
        %v966 = vunpack.c.h.b16 %v555
        %v967 = vunpack.c.l.b16 %v556
        %v968 = vunpack.c.h.b16 %v556
        %v969 = vunpack.c.l.b16 %v557
        %v970 = vunpack.c.h.b16 %v557
        %v971 = vunpack.c.l.b16 %v558
        %v972 = vunpack.c.h.b16 %v558
        %v973 = vunpack.c.l.b16 %v559
        %v974 = vunpack.c.h.b16 %v559
        %v975 = vunpack.c.l.b16 %v560
        %v976 = vunpack.c.h.b16 %v560
        %v977 = vunpack.c.l.b16 %v561
        %v978 = vunpack.c.h.b16 %v561
        %v979 = vunpack.c.l.b16 %v562
        %v980 = vunpack.c.h.b16 %v562
        %v981 = vunpack.c.l.b16 %v563
        %v982 = vunpack.c.h.b16 %v563
        %v983 = vunpack.c.l.b16 %v564
        %v984 = vunpack.c.h.b16 %v564
        %v985 = vunpack.c.l.b16 %v565
        %v986 = vunpack.c.h.b16 %v565
        %v987 = vunpack.c.l.b16 %v566
        %v988 = vunpack.c.h.b16 %v566
        %v989 = vunpack.c.l.b16 %v567
        %v990 = vunpack.c.h.b16 %v567
        %v991 = vunpack.c.l.b16 %v568
        %v992 = vunpack.c.h.b16 %v568
        %v993 = vunpack.c.l.b16 %v569
        %v994 = vunpack.c.h.b16 %v569
        %v995 = vunpack.c.l.b16 %v570
        %v996 = vunpack.c.h.b16 %v570
        %v997 = vunpack.c.l.b16 %v571
        %v998 = vunpack.c.h.b16 %v571
        %v999 = vunpack.c.l.b16 %v572
        %v1000 = vunpack.c.h.b16 %v572
        %v1001 = vunpack.c.l.b16 %v573
        %v1002 = vunpack.c.h.b16 %v573
        %v1003 = vunpack.c.l.b16 %v574
        %v1004 = vunpack.c.h.b16 %v574
        %v1005 = vunpack.c.l.b16 %v575
        %v1006 = vunpack.c.h.b16 %v575
        %v1007 = vunpack.c.l.b16 %v576
        %v1008 = vunpack.c.h.b16 %v576
        %v1009 = vunpack.c.l.b16 %v577
        %v1010 = vunpack.c.h.b16 %v577
        %v1011 = vunpack.c.l.b16 %v578
        %v1012 = vunpack.c.h.b16 %v578
        %v1013 = vunpack.c.l.b16 %v579
        %v1014 = vunpack.c.h.b16 %v579
        %v1015 = vunpack.c.l.b16 %v580
        %v1016 = vunpack.c.h.b16 %v580
        %v1017 = vunpack.c.l.b16 %v581
        %v1018 = vunpack.c.h.b16 %v581
        %v1019 = vunpack.c.l.b16 %v582
        %v1020 = vunpack.c.h.b16 %v582
        %v1021 = vunpack.c.l.b16 %v583
        %v1022 = vunpack.c.h.b16 %v583
        %v1023 = vunpack.c.l.b16 %v584
        %v1024 = vunpack.c.h.b16 %v584
        %v1025 = vunpack.c.l.b16 %v585
        %v1026 = vunpack.c.h.b16 %v585
        %v1027 = vunpack.c.l.b16 %v586
        %v1028 = vunpack.c.h.b16 %v586
        %v1029 = vunpack.c.l.b16 %v587
        %v1030 = vunpack.c.h.b16 %v587
        %v1031 = vunpack.c.l.b16 %v588
        %v1032 = vunpack.c.h.b16 %v588
        %v1033 = vunpack.c.l.b16 %v589
        %v1034 = vunpack.c.h.b16 %v589
        %v1035 = vunpack.c.l.b16 %v590
        %v1036 = vunpack.c.h.b16 %v590
        %v1037 = vunpack.c.l.b16 %v591
        %v1038 = vunpack.c.h.b16 %v591
        %v1039 = vunpack.c.l.b16 %v592
        %v1040 = vunpack.c.h.b16 %v592
        %v1041 = vunpack.c.l.b16 %v593
        %v1042 = vunpack.c.h.b16 %v593
        %v1043 = vunpack.c.l.b16 %v594
        %v1044 = vunpack.c.h.b16 %v594
        %v1045 = vunpack.c.l.b16 %v595
        %v1046 = vunpack.c.h.b16 %v595
        %v1047 = vunpack.c.l.b16 %v596
        %v1048 = vunpack.c.h.b16 %v596
        %v1049 = vunpack.c.l.b16 %v597
        %v1050 = vunpack.c.h.b16 %v597
        %v1051 = vunpack.c.l.b16 %v598
        %v1052 = vunpack.c.h.b16 %v598
        %v1053 = vunpack.c.l.b16 %v599
        %v1054 = vunpack.c.h.b16 %v599
        %v1055 = vunpack.c.l.b16 %v600
        %v1056 = vunpack.c.h.b16 %v600
        %v1057 = vunpack.c.l.b16 %v601
        %v1058 = vunpack.c.h.b16 %v601
        %v1059 = vunpack.c.l.b16 %v602
        %v1060 = vunpack.c.h.b16 %v602
        %v1061 = vunpack.c.l.b16 %v603
        %v1062 = vunpack.c.h.b16 %v603
        %v1063 = vunpack.c.l.b16 %v604
        %v1064 = vunpack.c.h.b16 %v604
        %v1065 = vunpack.c.l.b16 %v605
        %v1066 = vunpack.c.h.b16 %v605
        %v1067 = vunpack.c.l.b16 %v606
        %v1068 = vunpack.c.h.b16 %v606
        %v1069 = vunpack.c.l.b16 %v607
        %v1070 = vunpack.c.h.b16 %v607
        %v1071 = vunpack.c.l.b16 %v608
        %v1072 = vunpack.c.h.b16 %v608
        %v1073 = vunpack.c.l.b16 %v609
        %v1074 = vunpack.c.h.b16 %v609
        %v1075 = vunpack.c.l.b16 %v610
        %v1076 = vunpack.c.h.b16 %v610
        %v1077 = vunpack.c.l.b16 %v611
        %v1078 = vunpack.c.h.b16 %v611
        %v1079 = vunpack.c.l.b16 %v612
        %v1080 = vunpack.c.h.b16 %v612
        %v1081 = vunpack.c.l.b16 %v613
        %v1082 = vunpack.c.h.b16 %v613
        %v1083 = vunpack.c.l.b16 %v614
        %v1084 = vunpack.c.h.b16 %v614
        %v1085 = vunpack.c.l.b16 %v615
        %v1086 = vunpack.c.h.b16 %v615
        %v1087 = vunpack.c.l.b16 %v616
        %v1088 = vunpack.c.h.b16 %v616
        %v1089 = vunpack.c.l.b16 %v617
        %v1090 = vunpack.c.h.b16 %v617
        %v1091 = vunpack.c.l.b16 %v618
        %v1092 = vunpack.c.h.b16 %v618
        %v1093 = vunpack.c.l.b16 %v619
        %v1094 = vunpack.c.h.b16 %v619
        %v1095 = vunpack.c.l.b16 %v620
        %v1096 = vunpack.c.h.b16 %v620
        %v1097 = vunpack.c.l.b16 %v621
        %v1098 = vunpack.c.h.b16 %v621
        %v1099 = vunpack.c.l.b16 %v622
        %v1100 = vunpack.c.h.b16 %v622
        %v1101 = vunpack.c.l.b16 %v623
        %v1102 = vunpack.c.h.b16 %v623
        %v1103 = vunpack.c.l.b16 %v624
        %v1104 = vunpack.c.h.b16 %v624
        %v1105 = vunpack.c.l.b16 %v625
        %v1106 = vunpack.c.h.b16 %v625
        %v1107 = vunpack.c.l.b16 %v626
        %v1108 = vunpack.c.h.b16 %v626
        %v1109 = vunpack.c.l.b16 %v627
        %v1110 = vunpack.c.h.b16 %v627
        %v1111 = vunpack.c.l.b16 %v628
        %v1112 = vunpack.c.h.b16 %v628
        %v1113 = vunpack.c.l.b16 %v629
        %v1114 = vunpack.c.h.b16 %v629
        %v1115 = vunpack.c.l.b16 %v630
        %v1116 = vunpack.c.h.b16 %v630
        %v1117 = vunpack.c.l.b16 %v631
        %v1118 = vunpack.c.h.b16 %v631
        %v1119 = vunpack.c.l.b16 %v632
        %v1120 = vunpack.c.h.b16 %v632
        %v1121 = vunpack.c.l.b16 %v633
        %v1122 = vunpack.c.h.b16 %v633
        %v1123 = vunpack.c.l.b16 %v634
        %v1124 = vunpack.c.h.b16 %v634
        %v1125 = vunpack.c.l.b16 %v635
        %v1126 = vunpack.c.h.b16 %v635
        %v1127 = vunpack.c.l.b16 %v636
        %v1128 = vunpack.c.h.b16 %v636
        %v1129 = vunpack.c.l.b16 %v637
        %v1130 = vunpack.c.h.b16 %v637
        %v1131 = vunpack.c.l.b16 %v638
        %v1132 = vunpack.c.h.b16 %v638
        %v1133 = vunpack.c.l.b16 %v639
        %v1134 = vunpack.c.h.b16 %v639
        %v1135 = vunpack.c.l.b16 %v640
        %v1136 = vunpack.c.h.b16 %v640
        %v1137 = vunpack.c.l.b16 %v641
        %v1138 = vunpack.c.h.b16 %v641
        %v1139 = vunpack.c.l.b16 %v642
        %v1140 = vunpack.c.h.b16 %v642
        %v1141 = vunpack.c.l.b16 %v643
        %v1142 = vunpack.c.h.b16 %v643
        %v1143 = vunpack.c.l.b16 %v644
        %v1144 = vunpack.c.h.b16 %v644
        %v1145 = vunpack.c.l.b16 %v645
        %v1146 = vunpack.c.h.b16 %v645
        %v1147 = vunpack.c.l.b16 %v646
        %v1148 = vunpack.c.h.b16 %v646
        %v1149 = vunpack.c.l.b16 %v647
        %v1150 = vunpack.c.h.b16 %v647
        %v1151 = vunpack.c.l.b16 %v648
        %v1152 = vunpack.c.h.b16 %v648
        %v1153 = vunpack.c.l.b16 %v649
        %v1154 = vunpack.c.h.b16 %v649
        %v1155 = vunpack.c.l.b16 %v650
        %v1156 = vunpack.c.h.b16 %v650
        %v1157 = vunpack.c.l.b16 %v651
        %v1158 = vunpack.c.h.b16 %v651
        %v1159 = vunpack.c.l.b16 %v652
        %v1160 = vunpack.c.h.b16 %v652
        %v1161 = vunpack.c.l.b16 %v653
        %v1162 = vunpack.c.h.b16 %v653
        %v1163 = vunpack.c.l.b16 %v654
        %v1164 = vunpack.c.h.b16 %v654
        %v1165 = vunpack.c.l.b16 %v655
        %v1166 = vunpack.c.h.b16 %v655
        %v1167 = vunpack.c.l.b16 %v656
        %v1168 = vunpack.c.h.b16 %v656
        %v1169 = vunpack.c.l.b16 %v657
        %v1170 = vunpack.c.h.b16 %v657
        %v1171 = vunpack.c.l.b16 %v658
        %v1172 = vunpack.c.h.b16 %v658
        %v1173 = vunpack.c.l.b16 %v659
        %v1174 = vunpack.c.h.b16 %v659
        %v1175 = vunpack.c.l.b16 %v660
        %v1176 = vunpack.c.h.b16 %v660
        %v1177 = vunpack.c.l.b16 %v661
        %v1178 = vunpack.c.h.b16 %v661
        %v1179 = vunpack.c.l.b16 %v662
        %v1180 = vunpack.c.h.b16 %v662
        %v1181 = vunpack.c.l.b16 %v663
        %v1182 = vunpack.c.h.b16 %v663
        %v1183 = vunpack.c.l.b16 %v664
        %v1184 = vunpack.c.h.b16 %v664
        %v1185 = vunpack.c.l.b16 %v665
        %v1186 = vunpack.c.h.b16 %v665
        %v1187 = vunpack.c.l.b16 %v666
        %v1188 = vunpack.c.h.b16 %v666
        %v1189 = vunpack.c.l.b16 %v667
        %v1190 = vunpack.c.h.b16 %v667
        %v1191 = vunpack.c.l.b16 %v668
        %v1192 = vunpack.c.h.b16 %v668
        %v1193 = vunpack.c.l.b16 %v669
        %v1194 = vunpack.c.h.b16 %v669
        %v1195 = vunpack.c.l.b16 %v670
        %v1196 = vunpack.c.h.b16 %v670
        %v1197 = vunpack.c.l.b16 %v671
        %v1198 = vunpack.c.h.b16 %v671
        %v1199 = vunpack.c.l.b16 %v672
        %v1200 = vunpack.c.h.b16 %v672
        %v1201 = vunpack.c.l.b16 %v673
        %v1202 = vunpack.c.h.b16 %v673
        %v1203 = vunpack.c.l.b16 %v674
        %v1204 = vunpack.c.h.b16 %v674
        %v1205 = vunpack.c.l.b16 %v675
        %v1206 = vunpack.c.h.b16 %v675
        %v1207 = vunpack.c.l.b16 %v676
        %v1208 = vunpack.c.h.b16 %v676
        %v1209 = vunpack.c.l.b16 %v677
        %v1210 = vunpack.c.h.b16 %v677
        %v1211 = vunpack.c.l.b16 %v678
        %v1212 = vunpack.c.h.b16 %v678
        %v1213 = vunpack.c.l.b16 %v679
        %v1214 = vunpack.c.h.b16 %v679
        %v1215 = vunpack.c.l.b16 %v680
        %v1216 = vunpack.c.h.b16 %v680
        %v1217 = vunpack.c.l.b16 %v681
        %v1218 = vunpack.c.h.b16 %v681
        %v1219 = vunpack.c.l.b16 %v682
        %v1220 = vunpack.c.h.b16 %v682
        %v1221 = vunpack.c.l.b16 %v683
        %v1222 = vunpack.c.h.b16 %v683
        %v1223 = vunpack.c.l.b16 %v684
        %v1224 = vunpack.c.h.b16 %v684
        %v1225 = vunpack.c.l.b16 %v685
        %v1226 = vunpack.c.h.b16 %v685
        %v1227 = vunpack.c.l.b16 %v686
        %v1228 = vunpack.c.h.b16 %v686
        %v1229 = vunpack.c.l.b16 %v687
        %v1230 = vunpack.c.h.b16 %v687
        %v1231 = vunpack.c.l.b16 %v688
        %v1232 = vunpack.c.h.b16 %v688
        %v1233 = vunpack.c.l.b16 %v689
        %v1234 = vunpack.c.h.b16 %v689
        %v1235 = vunpack.c.l.b16 %v690
        %v1236 = vunpack.c.h.b16 %v690
        %v1237 = vunpack.c.l.b16 %v691
        %v1238 = vunpack.c.h.b16 %v691
        %v1239 = vunpack.c.l.b16 %v692
        %v1240 = vunpack.c.h.b16 %v692
        %v1241 = vunpack.c.l.b16 %v693
        %v1242 = vunpack.c.h.b16 %v693
        %v1243 = vunpack.c.l.b16 %v694
        %v1244 = vunpack.c.h.b16 %v694
        %v1245 = vunpack.c.l.b16 %v695
        %v1246 = vunpack.c.h.b16 %v695
        %v1247 = vunpack.c.l.b16 %v696
        %v1248 = vunpack.c.h.b16 %v696
        %v1249 = vunpack.c.l.b16 %v697
        %v1250 = vunpack.c.h.b16 %v697
        %v1251 = vunpack.c.l.b16 %v698
        %v1252 = vunpack.c.h.b16 %v698
        %v1253 = vunpack.c.l.b16 %v699
        %v1254 = vunpack.c.h.b16 %v699
        %v1255 = vunpack.c.l.b16 %v700
        %v1256 = vunpack.c.h.b16 %v700
        %v1257 = vunpack.c.l.b16 %v701
        %v1258 = vunpack.c.h.b16 %v701
        %v1259 = vunpack.c.l.b16 %v702
        %v1260 = vunpack.c.h.b16 %v702
        %v1261 = vunpack.c.l.b16 %v703
        %v1262 = vunpack.c.h.b16 %v703
        %v1263 = vunpack.c.l.b16 %v704
        %v1264 = vunpack.c.h.b16 %v704
        %v1265 = vunpack.c.l.b16 %v705
        %v1266 = vunpack.c.h.b16 %v705
        %v1267 = vunpack.c.l.b16 %v706
        %v1268 = vunpack.c.h.b16 %v706
        %v1269 = vunpack.c.l.b16 %v707
        %v1270 = vunpack.c.h.b16 %v707
        %v1271 = vunpack.c.l.b16 %v708
        %v1272 = vunpack.c.h.b16 %v708
        %v1273 = vunpack.c.l.b16 %v709
        %v1274 = vunpack.c.h.b16 %v709
        %v1275 = vunpack.c.l.b16 %v710
        %v1276 = vunpack.c.h.b16 %v710
        %v1277 = vunpack.c.l.b16 %v711
        %v1278 = vunpack.c.h.b16 %v711
        %v1279 = vunpack.c.l.b16 %v712
        %v1280 = vunpack.c.h.b16 %v712
        %v1281 = vunpack.c.l.b16 %v713
        %v1282 = vunpack.c.h.b16 %v713
        %v1283 = vunpack.c.l.b16 %v714
        %v1284 = vunpack.c.h.b16 %v714
        %v1285 = vunpack.c.l.b16 %v715
        %v1286 = vunpack.c.h.b16 %v715
        %v1287 = vunpack.c.l.b16 %v716
        %v1288 = vunpack.c.h.b16 %v716
        %v1289 = vunpack.c.l.b16 %v717
        %v1290 = vunpack.c.h.b16 %v717
        %v1291 = vunpack.c.l.b16 %v718
        %v1292 = vunpack.c.h.b16 %v718
        %v1293 = vunpack.c.l.b16 %v719
        %v1294 = vunpack.c.h.b16 %v719
        %v1295 = vunpack.c.l.b16 %v720
        %v1296 = vunpack.c.h.b16 %v720
        %v1297 = vpack.c.b16 %v937, %v913
        %v1298 = vpack.c.b16 %v938, %v914
        %v1299 = vpack.c.b16 %v939, %v915
        %v1300 = vpack.c.b16 %v940, %v916
        %v1301 = vpack.c.b16 %v941, %v917
        %v1302 = vpack.c.b16 %v942, %v918
        %v1303 = vpack.c.b16 %v943, %v919
        %v1304 = vpack.c.b16 %v944, %v920
        %v1305 = vpack.c.b16 %v945, %v921
        %v1306 = vpack.c.b16 %v946, %v922
        %v1307 = vpack.c.b16 %v947, %v923
        %v1308 = vpack.c.b16 %v948, %v924
        %v1309 = vpack.c.b16 %v949, %v925
        %v1310 = vpack.c.b16 %v950, %v926
        %v1311 = vpack.c.b16 %v951, %v927
        %v1312 = vpack.c.b16 %v952, %v928
        %v1313 = vpack.c.b16 %v953, %v929
        %v1314 = vpack.c.b16 %v954, %v930
        %v1315 = vpack.c.b16 %v955, %v931
        %v1316 = vpack.c.b16 %v956, %v932
        %v1317 = vpack.c.b16 %v957, %v933
        %v1318 = vpack.c.b16 %v958, %v934
        %v1319 = vpack.c.b16 %v959, %v935
        %v1320 = vpack.c.b16 %v960, %v936
        %v1321 = vpack.c.b16 %v985, %v961
        %v1322 = vpack.c.b16 %v986, %v962
        %v1323 = vpack.c.b16 %v987, %v963
        %v1324 = vpack.c.b16 %v988, %v964
        %v1325 = vpack.c.b16 %v989, %v965
        %v1326 = vpack.c.b16 %v990, %v966
        %v1327 = vpack.c.b16 %v991, %v967
        %v1328 = vpack.c.b16 %v992, %v968
        %v1329 = vpack.c.b16 %v993, %v969
        %v1330 = vpack.c.b16 %v994, %v970
        %v1331 = vpack.c.b16 %v995, %v971
        %v1332 = vpack.c.b16 %v996, %v972
        %v1333 = vpack.c.b16 %v997, %v973
        %v1334 = vpack.c.b16 %v998, %v974
        %v1335 = vpack.c.b16 %v999, %v975
        %v1336 = vpack.c.b16 %v1000, %v976
        %v1337 = vpack.c.b16 %v1001, %v977
        %v1338 = vpack.c.b16 %v1002, %v978
        %v1339 = vpack.c.b16 %v1003, %v979
        %v1340 = vpack.c.b16 %v1004, %v980
        %v1341 = vpack.c.b16 %v1005, %v981
        %v1342 = vpack.c.b16 %v1006, %v982
        %v1343 = vpack.c.b16 %v1007, %v983
        %v1344 = vpack.c.b16 %v1008, %v984
        %v1345 = vpack.c.b16 %v1033, %v1009
        %v1346 = vpack.c.b16 %v1034, %v1010
        %v1347 = vpack.c.b16 %v1035, %v1011
        %v1348 = vpack.c.b16 %v1036, %v1012
        %v1349 = vpack.c.b16 %v1037, %v1013
        %v1350 = vpack.c.b16 %v1038, %v1014
        %v1351 = vpack.c.b16 %v1039, %v1015
        %v1352 = vpack.c.b16 %v1040, %v1016
        %v1353 = vpack.c.b16 %v1041, %v1017
        %v1354 = vpack.c.b16 %v1042, %v1018
        %v1355 = vpack.c.b16 %v1043, %v1019
        %v1356 = vpack.c.b16 %v1044, %v1020
        %v1357 = vpack.c.b16 %v1045, %v1021
        %v1358 = vpack.c.b16 %v1046, %v1022
        %v1359 = vpack.c.b16 %v1047, %v1023
        %v1360 = vpack.c.b16 %v1048, %v1024
        %v1361 = vpack.c.b16 %v1049, %v1025
        %v1362 = vpack.c.b16 %v1050, %v1026
        %v1363 = vpack.c.b16 %v1051, %v1027
        %v1364 = vpack.c.b16 %v1052, %v1028
        %v1365 = vpack.c.b16 %v1053, %v1029
        %v1366 = vpack.c.b16 %v1054, %v1030
        %v1367 = vpack.c.b16 %v1055, %v1031
        %v1368 = vpack.c.b16 %v1056, %v1032
        %v1369 = vpack.c.b16 %v1081, %v1057
        %v1370 = vpack.c.b16 %v1082, %v1058
        %v1371 = vpack.c.b16 %v1083, %v1059
        %v1372 = vpack.c.b16 %v1084, %v1060
        %v1373 = vpack.c.b16 %v1085, %v1061
        %v1374 = vpack.c.b16 %v1086, %v1062
        %v1375 = vpack.c.b16 %v1087, %v1063
        %v1376 = vpack.c.b16 %v1088, %v1064
        %v1377 = vpack.c.b16 %v1089, %v1065
        %v1378 = vpack.c.b16 %v1090, %v1066
        %v1379 = vpack.c.b16 %v1091, %v1067
        %v1380 = vpack.c.b16 %v1092, %v1068
        %v1381 = vpack.c.b16 %v1093, %v1069
        %v1382 = vpack.c.b16 %v1094, %v1070
        %v1383 = vpack.c.b16 %v1095, %v1071
        %v1384 = vpack.c.b16 %v1096, %v1072
        %v1385 = vpack.c.b16 %v1097, %v1073
        %v1386 = vpack.c.b16 %v1098, %v1074
        %v1387 = vpack.c.b16 %v1099, %v1075
        %v1388 = vpack.c.b16 %v1100, %v1076
        %v1389 = vpack.c.b16 %v1101, %v1077
        %v1390 = vpack.c.b16 %v1102, %v1078
        %v1391 = vpack.c.b16 %v1103, %v1079
        %v1392 = vpack.c.b16 %v1104, %v1080
        %v1393 = vpack.c.b16 %v1129, %v1105
        %v1394 = vpack.c.b16 %v1130, %v1106
        %v1395 = vpack.c.b16 %v1131, %v1107
        %v1396 = vpack.c.b16 %v1132, %v1108
        %v1397 = vpack.c.b16 %v1133, %v1109
        %v1398 = vpack.c.b16 %v1134, %v1110
        %v1399 = vpack.c.b16 %v1135, %v1111
        %v1400 = vpack.c.b16 %v1136, %v1112
        %v1401 = vpack.c.b16 %v1137, %v1113
        %v1402 = vpack.c.b16 %v1138, %v1114
        %v1403 = vpack.c.b16 %v1139, %v1115
        %v1404 = vpack.c.b16 %v1140, %v1116
        %v1405 = vpack.c.b16 %v1141, %v1117
        %v1406 = vpack.c.b16 %v1142, %v1118
        %v1407 = vpack.c.b16 %v1143, %v1119
        %v1408 = vpack.c.b16 %v1144, %v1120
        %v1409 = vpack.c.b16 %v1145, %v1121
        %v1410 = vpack.c.b16 %v1146, %v1122
        %v1411 = vpack.c.b16 %v1147, %v1123
        %v1412 = vpack.c.b16 %v1148, %v1124
        %v1413 = vpack.c.b16 %v1149, %v1125
        %v1414 = vpack.c.b16 %v1150, %v1126
        %v1415 = vpack.c.b16 %v1151, %v1127
        %v1416 = vpack.c.b16 %v1152, %v1128
        %v1417 = vpack.c.b16 %v1177, %v1153
        %v1418 = vpack.c.b16 %v1178, %v1154
        %v1419 = vpack.c.b16 %v1179, %v1155
        %v1420 = vpack.c.b16 %v1180, %v1156
        %v1421 = vpack.c.b16 %v1181, %v1157
        %v1422 = vpack.c.b16 %v1182, %v1158
        %v1423 = vpack.c.b16 %v1183, %v1159
        %v1424 = vpack.c.b16 %v1184, %v1160
        %v1425 = vpack.c.b16 %v1185, %v1161
        %v1426 = vpack.c.b16 %v1186, %v1162
        %v1427 = vpack.c.b16 %v1187, %v1163
        %v1428 = vpack.c.b16 %v1188, %v1164
        %v1429 = vpack.c.b16 %v1189, %v1165
        %v1430 = vpack.c.b16 %v1190, %v1166
        %v1431 = vpack.c.b16 %v1191, %v1167
        %v1432 = vpack.c.b16 %v1192, %v1168
        %v1433 = vpack.c.b16 %v1193, %v1169
        %v1434 = vpack.c.b16 %v1194, %v1170
        %v1435 = vpack.c.b16 %v1195, %v1171
        %v1436 = vpack.c.b16 %v1196, %v1172
        %v1437 = vpack.c.b16 %v1197, %v1173
        %v1438 = vpack.c.b16 %v1198, %v1174
        %v1439 = vpack.c.b16 %v1199, %v1175
        %v1440 = vpack.c.b16 %v1200, %v1176
        %v1441 = vpack.c.b16 %v1225, %v1201
        %v1442 = vpack.c.b16 %v1226, %v1202
        %v1443 = vpack.c.b16 %v1227, %v1203
        %v1444 = vpack.c.b16 %v1228, %v1204
        %v1445 = vpack.c.b16 %v1229, %v1205
        %v1446 = vpack.c.b16 %v1230, %v1206
        %v1447 = vpack.c.b16 %v1231, %v1207
        %v1448 = vpack.c.b16 %v1232, %v1208
        %v1449 = vpack.c.b16 %v1233, %v1209
        %v1450 = vpack.c.b16 %v1234, %v1210
        %v1451 = vpack.c.b16 %v1235, %v1211
        %v1452 = vpack.c.b16 %v1236, %v1212
        %v1453 = vpack.c.b16 %v1237, %v1213
        %v1454 = vpack.c.b16 %v1238, %v1214
        %v1455 = vpack.c.b16 %v1239, %v1215
        %v1456 = vpack.c.b16 %v1240, %v1216
        %v1457 = vpack.c.b16 %v1241, %v1217
        %v1458 = vpack.c.b16 %v1242, %v1218
        %v1459 = vpack.c.b16 %v1243, %v1219
        %v1460 = vpack.c.b16 %v1244, %v1220
        %v1461 = vpack.c.b16 %v1245, %v1221
        %v1462 = vpack.c.b16 %v1246, %v1222
        %v1463 = vpack.c.b16 %v1247, %v1223
        %v1464 = vpack.c.b16 %v1248, %v1224
        %v1465 = vpack.c.b16 %v1273, %v1249
        %v1466 = vpack.c.b16 %v1274, %v1250
        %v1467 = vpack.c.b16 %v1275, %v1251
        %v1468 = vpack.c.b16 %v1276, %v1252
        %v1469 = vpack.c.b16 %v1277, %v1253
        %v1470 = vpack.c.b16 %v1278, %v1254
        %v1471 = vpack.c.b16 %v1279, %v1255
        %v1472 = vpack.c.b16 %v1280, %v1256
        %v1473 = vpack.c.b16 %v1281, %v1257
        %v1474 = vpack.c.b16 %v1282, %v1258
        %v1475 = vpack.c.b16 %v1283, %v1259
        %v1476 = vpack.c.b16 %v1284, %v1260
        %v1477 = vpack.c.b16 %v1285, %v1261
        %v1478 = vpack.c.b16 %v1286, %v1262
        %v1479 = vpack.c.b16 %v1287, %v1263
        %v1480 = vpack.c.b16 %v1288, %v1264
        %v1481 = vpack.c.b16 %v1289, %v1265
        %v1482 = vpack.c.b16 %v1290, %v1266
        %v1483 = vpack.c.b16 %v1291, %v1267
        %v1484 = vpack.c.b16 %v1292, %v1268
        %v1485 = vpack.c.b16 %v1293, %v1269
        %v1486 = vpack.c.b16 %v1294, %v1270
        %v1487 = vpack.c.b16 %v1295, %v1271
        %v1488 = vpack.c.b16 %v1296, %v1272
        %1681 = vmatprep.subr.bf16.mxu0 %v1298
        %1682 = vmatpush1.bf16.msra.mxu0 %v1297
        %1683 = vmatprep.subr.bf16.mxu0 %v1322
        %1684 = vmatpush1.bf16.msra.mxu0 %v1321
        %1685 = vmatprep.subr.bf16.mxu0 %v1346
        %1686 = vmatpush1.bf16.msra.mxu0 %v1345
        %1687 = vmatprep.subr.bf16.mxu0 %v1370
        %1688 = vmatpush1.bf16.msra.mxu0 %v1369
        %1689 = vmatprep.subr.bf16.mxu0 %v1394
        %1690 = vmatpush1.bf16.msra.mxu0 %v1393
        %1691 = vmatprep.subr.bf16.mxu0 %v1418
        %1692 = vmatpush1.bf16.msra.mxu0 %v1417
        %1693 = vmatprep.subr.bf16.mxu0 %v1442
        %1694 = vmatpush1.bf16.msra.mxu0 %v1441
        %1695 = vmatprep.subr.bf16.mxu0 %v1466
        %1696 = vmatpush1.bf16.msra.mxu0 %v1465
        %1697 = vmatprep.subr.bf16.mxu0 0
        %1698 = vmatpush1.bf16.msra.mxu0 0
        %1699 = vmatprep.subr.bf16.mxu0 0
        %1700 = vmatpush1.bf16.msra.mxu0 0
        %1701 = vmatprep.subr.bf16.mxu0 0
        %1702 = vmatpush1.bf16.msra.mxu0 0
        %1703 = vmatprep.subr.bf16.mxu0 0
        %1704 = vmatpush1.bf16.msra.mxu0 0
        %1705 = vmatprep.subr.bf16.mxu0 0
        %1706 = vmatpush1.bf16.msra.mxu0 0
        %1707 = vmatprep.subr.bf16.mxu0 0
        %1708 = vmatpush1.bf16.msra.mxu0 0
        %1709 = vmatprep.subr.bf16.mxu0 0
        %1710 = vmatpush1.bf16.msra.mxu0 0
        %1711 = vmatprep.subr.bf16.mxu0 0
        %1712 = vmatpush1.bf16.msra.mxu0 0
        %1713 = vmatprep.mubr.bf16.mxu0 0
        %1714 = vmatmul.mubr.bf16.gmra.mrb[0].mxu0 %v528
        %v1715 = vpop.f32.mrb[0].mxu0
        %v1716 = vadd.f32 0.0, %v1715
        %v1717 = vpop.f32.mrb[0].mxu0
        %v1718 = vadd.f32 0.0, %v1717
        %v1719 = vpop.f32.mrb[0].mxu0
        %v1720 = vpop.f32.mrb[0].mxu0
        %1721 = vdwg.mxu0
        %1722 = vmatprep.subr.bf16.mxu0 %v1300
        %1723 = vmatpush1.bf16.msra.mxu0 %v1299
        %1724 = vmatprep.subr.bf16.mxu0 %v1324
        %1725 = vmatpush1.bf16.msra.mxu0 %v1323
        %1726 = vmatprep.subr.bf16.mxu0 %v1348
        %1727 = vmatpush1.bf16.msra.mxu0 %v1347
        %1728 = vmatprep.subr.bf16.mxu0 %v1372
        %1729 = vmatpush1.bf16.msra.mxu0 %v1371
        %1730 = vmatprep.subr.bf16.mxu0 %v1396
        %1731 = vmatpush1.bf16.msra.mxu0 %v1395
        %1732 = vmatprep.subr.bf16.mxu0 %v1420
        %1733 = vmatpush1.bf16.msra.mxu0 %v1419
        %1734 = vmatprep.subr.bf16.mxu0 %v1444
        %1735 = vmatpush1.bf16.msra.mxu0 %v1443
        %1736 = vmatprep.subr.bf16.mxu0 %v1468
        %1737 = vmatpush1.bf16.msra.mxu0 %v1467
        %1738 = vmatprep.subr.bf16.mxu0 0
        %1739 = vmatpush1.bf16.msra.mxu0 0
        %1740 = vmatprep.subr.bf16.mxu0 0
        %1741 = vmatpush1.bf16.msra.mxu0 0
        %1742 = vmatprep.subr.bf16.mxu0 0
        %1743 = vmatpush1.bf16.msra.mxu0 0
        %1744 = vmatprep.subr.bf16.mxu0 0
        %1745 = vmatpush1.bf16.msra.mxu0 0
        %1746 = vmatprep.subr.bf16.mxu0 0
        %1747 = vmatpush1.bf16.msra.mxu0 0
        %1748 = vmatprep.subr.bf16.mxu0 0
        %1749 = vmatpush1.bf16.msra.mxu0 0
        %1750 = vmatprep.subr.bf16.mxu0 0
        %1751 = vmatpush1.bf16.msra.mxu0 0
        %1752 = vmatprep.subr.bf16.mxu0 0
        %1753 = vmatpush1.bf16.msra.mxu0 0
        %1754 = vmatprep.mubr.bf16.mxu0 0
        %1755 = vmatmul.mubr.bf16.gmra.mrb[0].mxu0 %v528
        %v1756 = vpop.f32.mrb[0].mxu0
        %v1757 = vadd.f32 0.0, %v1756
        %v1758 = vpop.f32.mrb[0].mxu0
        %v1759 = vadd.f32 0.0, %v1758
        %v1760 = vpop.f32.mrb[0].mxu0
        %v1761 = vpop.f32.mrb[0].mxu0
        %1762 = vdwg.mxu0
        %1763 = vmatprep.subr.bf16.mxu0 %v1302
        %1764 = vmatpush1.bf16.msra.mxu0 %v1301
        %1765 = vmatprep.subr.bf16.mxu0 %v1326
        %1766 = vmatpush1.bf16.msra.mxu0 %v1325
        %1767 = vmatprep.subr.bf16.mxu0 %v1350
        %1768 = vmatpush1.bf16.msra.mxu0 %v1349
        %1769 = vmatprep.subr.bf16.mxu0 %v1374
        %1770 = vmatpush1.bf16.msra.mxu0 %v1373
        %1771 = vmatprep.subr.bf16.mxu0 %v1398
        %1772 = vmatpush1.bf16.msra.mxu0 %v1397
        %1773 = vmatprep.subr.bf16.mxu0 %v1422
        %1774 = vmatpush1.bf16.msra.mxu0 %v1421
        %1775 = vmatprep.subr.bf16.mxu0 %v1446
        %1776 = vmatpush1.bf16.msra.mxu0 %v1445
        %1777 = vmatprep.subr.bf16.mxu0 %v1470
        %1778 = vmatpush1.bf16.msra.mxu0 %v1469
        %1779 = vmatprep.subr.bf16.mxu0 0
        %1780 = vmatpush1.bf16.msra.mxu0 0
        %1781 = vmatprep.subr.bf16.mxu0 0
        %1782 = vmatpush1.bf16.msra.mxu0 0
        %1783 = vmatprep.subr.bf16.mxu0 0
        %1784 = vmatpush1.bf16.msra.mxu0 0
        %1785 = vmatprep.subr.bf16.mxu0 0
        %1786 = vmatpush1.bf16.msra.mxu0 0
        %1787 = vmatprep.subr.bf16.mxu0 0
        %1788 = vmatpush1.bf16.msra.mxu0 0
        %1789 = vmatprep.subr.bf16.mxu0 0
        %1790 = vmatpush1.bf16.msra.mxu0 0
        %1791 = vmatprep.subr.bf16.mxu0 0
        %1792 = vmatpush1.bf16.msra.mxu0 0
        %1793 = vmatprep.subr.bf16.mxu0 0
        %1794 = vmatpush1.bf16.msra.mxu0 0
        %1795 = vmatprep.mubr.bf16.mxu0 0
        %1796 = vmatmul.mubr.bf16.gmra.mrb[0].mxu0 %v528
        %v1797 = vpop.f32.mrb[0].mxu0
        %v1798 = vadd.f32 0.0, %v1797
        %v1799 = vpop.f32.mrb[0].mxu0
        %v1800 = vadd.f32 0.0, %v1799
        %v1801 = vpop.f32.mrb[0].mxu0
        %v1802 = vpop.f32.mrb[0].mxu0
        %1803 = vdwg.mxu0
        %1804 = vmatprep.subr.bf16.mxu0 %v1304
        %1805 = vmatpush1.bf16.msra.mxu0 %v1303
        %1806 = vmatprep.subr.bf16.mxu0 %v1328
        %1807 = vmatpush1.bf16.msra.mxu0 %v1327
        %1808 = vmatprep.subr.bf16.mxu0 %v1352
        %1809 = vmatpush1.bf16.msra.mxu0 %v1351
        %1810 = vmatprep.subr.bf16.mxu0 %v1376
        %1811 = vmatpush1.bf16.msra.mxu0 %v1375
        %1812 = vmatprep.subr.bf16.mxu0 %v1400
        %1813 = vmatpush1.bf16.msra.mxu0 %v1399
        %1814 = vmatprep.subr.bf16.mxu0 %v1424
        %1815 = vmatpush1.bf16.msra.mxu0 %v1423
        %1816 = vmatprep.subr.bf16.mxu0 %v1448
        %1817 = vmatpush1.bf16.msra.mxu0 %v1447
        %1818 = vmatprep.subr.bf16.mxu0 %v1472
        %1819 = vmatpush1.bf16.msra.mxu0 %v1471
        %1820 = vmatprep.subr.bf16.mxu0 0
        %1821 = vmatpush1.bf16.msra.mxu0 0
        %1822 = vmatprep.subr.bf16.mxu0 0
        %1823 = vmatpush1.bf16.msra.mxu0 0
        %1824 = vmatprep.subr.bf16.mxu0 0
        %1825 = vmatpush1.bf16.msra.mxu0 0
        %1826 = vmatprep.subr.bf16.mxu0 0
        %1827 = vmatpush1.bf16.msra.mxu0 0
        %1828 = vmatprep.subr.bf16.mxu0 0
        %1829 = vmatpush1.bf16.msra.mxu0 0
        %1830 = vmatprep.subr.bf16.mxu0 0
        %1831 = vmatpush1.bf16.msra.mxu0 0
        %1832 = vmatprep.subr.bf16.mxu0 0
        %1833 = vmatpush1.bf16.msra.mxu0 0
        %1834 = vmatprep.subr.bf16.mxu0 0
        %1835 = vmatpush1.bf16.msra.mxu0 0
        %1836 = vmatprep.mubr.bf16.mxu0 0
        %1837 = vmatmul.mubr.bf16.gmra.mrb[0].mxu0 %v528
        %v1838 = vpop.f32.mrb[0].mxu0
        %v1839 = vadd.f32 0.0, %v1838
        %v1840 = vpop.f32.mrb[0].mxu0
        %v1841 = vadd.f32 0.0, %v1840
        %v1842 = vpop.f32.mrb[0].mxu0
        %v1843 = vpop.f32.mrb[0].mxu0
        %1844 = vdwg.mxu0
        %1845 = vmatprep.subr.bf16.mxu0 %v1306
        %1846 = vmatpush1.bf16.msra.mxu0 %v1305
        %1847 = vmatprep.subr.bf16.mxu0 %v1330
        %1848 = vmatpush1.bf16.msra.mxu0 %v1329
        %1849 = vmatprep.subr.bf16.mxu0 %v1354
        %1850 = vmatpush1.bf16.msra.mxu0 %v1353
        %1851 = vmatprep.subr.bf16.mxu0 %v1378
        %1852 = vmatpush1.bf16.msra.mxu0 %v1377
        %1853 = vmatprep.subr.bf16.mxu0 %v1402
        %1854 = vmatpush1.bf16.msra.mxu0 %v1401
        %1855 = vmatprep.subr.bf16.mxu0 %v1426
        %1856 = vmatpush1.bf16.msra.mxu0 %v1425
        %1857 = vmatprep.subr.bf16.mxu0 %v1450
        %1858 = vmatpush1.bf16.msra.mxu0 %v1449
        %1859 = vmatprep.subr.bf16.mxu0 %v1474
        %1860 = vmatpush1.bf16.msra.mxu0 %v1473
        %1861 = vmatprep.subr.bf16.mxu0 0
        %1862 = vmatpush1.bf16.msra.mxu0 0
        %1863 = vmatprep.subr.bf16.mxu0 0
        %1864 = vmatpush1.bf16.msra.mxu0 0
        %1865 = vmatprep.subr.bf16.mxu0 0
        %1866 = vmatpush1.bf16.msra.mxu0 0
        %1867 = vmatprep.subr.bf16.mxu0 0
        %1868 = vmatpush1.bf16.msra.mxu0 0
        %1869 = vmatprep.subr.bf16.mxu0 0
        %1870 = vmatpush1.bf16.msra.mxu0 0
        %1871 = vmatprep.subr.bf16.mxu0 0
        %1872 = vmatpush1.bf16.msra.mxu0 0
        %1873 = vmatprep.subr.bf16.mxu0 0
        %1874 = vmatpush1.bf16.msra.mxu0 0
        %1875 = vmatprep.subr.bf16.mxu0 0
        %1876 = vmatpush1.bf16.msra.mxu0 0
        %1877 = vmatprep.mubr.bf16.mxu0 0
        %1878 = vmatmul.mubr.bf16.gmra.mrb[0].mxu0 %v528
        %v1879 = vpop.f32.mrb[0].mxu0
        %v1880 = vadd.f32 0.0, %v1879
        %v1881 = vpop.f32.mrb[0].mxu0
        %v1882 = vadd.f32 0.0, %v1881
        %v1883 = vpop.f32.mrb[0].mxu0
        %v1884 = vpop.f32.mrb[0].mxu0
        %1885 = vdwg.mxu0
        %1886 = vmatprep.subr.bf16.mxu0 %v1308
        %1887 = vmatpush1.bf16.msra.mxu0 %v1307
        %1888 = vmatprep.subr.bf16.mxu0 %v1332
        %1889 = vmatpush1.bf16.msra.mxu0 %v1331
        %1890 = vmatprep.subr.bf16.mxu0 %v1356
        %1891 = vmatpush1.bf16.msra.mxu0 %v1355
        %1892 = vmatprep.subr.bf16.mxu0 %v1380
        %1893 = vmatpush1.bf16.msra.mxu0 %v1379
        %1894 = vmatprep.subr.bf16.mxu0 %v1404
        %1895 = vmatpush1.bf16.msra.mxu0 %v1403
        %1896 = vmatprep.subr.bf16.mxu0 %v1428
        %1897 = vmatpush1.bf16.msra.mxu0 %v1427
        %1898 = vmatprep.subr.bf16.mxu0 %v1452
        %1899 = vmatpush1.bf16.msra.mxu0 %v1451
        %1900 = vmatprep.subr.bf16.mxu0 %v1476
        %1901 = vmatpush1.bf16.msra.mxu0 %v1475
        %1902 = vmatprep.subr.bf16.mxu0 0
        %1903 = vmatpush1.bf16.msra.mxu0 0
        %1904 = vmatprep.subr.bf16.mxu0 0
        %1905 = vmatpush1.bf16.msra.mxu0 0
        %1906 = vmatprep.subr.bf16.mxu0 0
        %1907 = vmatpush1.bf16.msra.mxu0 0
        %1908 = vmatprep.subr.bf16.mxu0 0
        %1909 = vmatpush1.bf16.msra.mxu0 0
        %1910 = vmatprep.subr.bf16.mxu0 0
        %1911 = vmatpush1.bf16.msra.mxu0 0
        %1912 = vmatprep.subr.bf16.mxu0 0
        %1913 = vmatpush1.bf16.msra.mxu0 0
        %1914 = vmatprep.subr.bf16.mxu0 0
        %1915 = vmatpush1.bf16.msra.mxu0 0
        %1916 = vmatprep.subr.bf16.mxu0 0
        %1917 = vmatpush1.bf16.msra.mxu0 0
        %1918 = vmatprep.mubr.bf16.mxu0 0
        %1919 = vmatmul.mubr.bf16.gmra.mrb[0].mxu0 %v528
        %v1920 = vpop.f32.mrb[0].mxu0
        %v1921 = vadd.f32 0.0, %v1920
        %v1922 = vpop.f32.mrb[0].mxu0
        %v1923 = vadd.f32 0.0, %v1922
        %v1924 = vpop.f32.mrb[0].mxu0
        %v1925 = vpop.f32.mrb[0].mxu0
        %1926 = vdwg.mxu0
        %1927 = vmatprep.subr.bf16.mxu0 %v1310
        %1928 = vmatpush1.bf16.msra.mxu0 %v1309
        %1929 = vmatprep.subr.bf16.mxu0 %v1334
        %1930 = vmatpush1.bf16.msra.mxu0 %v1333
        %1931 = vmatprep.subr.bf16.mxu0 %v1358
        %1932 = vmatpush1.bf16.msra.mxu0 %v1357
        %1933 = vmatprep.subr.bf16.mxu0 %v1382
        %1934 = vmatpush1.bf16.msra.mxu0 %v1381
        %1935 = vmatprep.subr.bf16.mxu0 %v1406
        %1936 = vmatpush1.bf16.msra.mxu0 %v1405
        %1937 = vmatprep.subr.bf16.mxu0 %v1430
        %1938 = vmatpush1.bf16.msra.mxu0 %v1429
        %1939 = vmatprep.subr.bf16.mxu0 %v1454
        %1940 = vmatpush1.bf16.msra.mxu0 %v1453
        %1941 = vmatprep.subr.bf16.mxu0 %v1478
        %1942 = vmatpush1.bf16.msra.mxu0 %v1477
        %1943 = vmatprep.subr.bf16.mxu0 0
        %1944 = vmatpush1.bf16.msra.mxu0 0
        %1945 = vmatprep.subr.bf16.mxu0 0
        %1946 = vmatpush1.bf16.msra.mxu0 0
        %1947 = vmatprep.subr.bf16.mxu0 0
        %1948 = vmatpush1.bf16.msra.mxu0 0
        %1949 = vmatprep.subr.bf16.mxu0 0
        %1950 = vmatpush1.bf16.msra.mxu0 0
        %1951 = vmatprep.subr.bf16.mxu0 0
        %1952 = vmatpush1.bf16.msra.mxu0 0
        %1953 = vmatprep.subr.bf16.mxu0 0
        %1954 = vmatpush1.bf16.msra.mxu0 0
        %1955 = vmatprep.subr.bf16.mxu0 0
        %1956 = vmatpush1.bf16.msra.mxu0 0
        %1957 = vmatprep.subr.bf16.mxu0 0
        %1958 = vmatpush1.bf16.msra.mxu0 0
        %1959 = vmatprep.mubr.bf16.mxu0 0
        %1960 = vmatmul.mubr.bf16.gmra.mrb[0].mxu0 %v528
        %v1961 = vpop.f32.mrb[0].mxu0
        %v1962 = vadd.f32 0.0, %v1961
        %v1963 = vpop.f32.mrb[0].mxu0
        %v1964 = vadd.f32 0.0, %v1963
        %v1965 = vpop.f32.mrb[0].mxu0
        %v1966 = vpop.f32.mrb[0].mxu0
        %1967 = vdwg.mxu0
        %1968 = vmatprep.subr.bf16.mxu0 %v1312
        %1969 = vmatpush1.bf16.msra.mxu0 %v1311
        %1970 = vmatprep.subr.bf16.mxu0 %v1336
        %1971 = vmatpush1.bf16.msra.mxu0 %v1335
        %1972 = vmatprep.subr.bf16.mxu0 %v1360
        %1973 = vmatpush1.bf16.msra.mxu0 %v1359
        %1974 = vmatprep.subr.bf16.mxu0 %v1384
        %1975 = vmatpush1.bf16.msra.mxu0 %v1383
        %1976 = vmatprep.subr.bf16.mxu0 %v1408
        %1977 = vmatpush1.bf16.msra.mxu0 %v1407
        %1978 = vmatprep.subr.bf16.mxu0 %v1432
        %1979 = vmatpush1.bf16.msra.mxu0 %v1431
        %1980 = vmatprep.subr.bf16.mxu0 %v1456
        %1981 = vmatpush1.bf16.msra.mxu0 %v1455
        %1982 = vmatprep.subr.bf16.mxu0 %v1480
        %1983 = vmatpush1.bf16.msra.mxu0 %v1479
        %1984 = vmatprep.subr.bf16.mxu0 0
        %1985 = vmatpush1.bf16.msra.mxu0 0
        %1986 = vmatprep.subr.bf16.mxu0 0
        %1987 = vmatpush1.bf16.msra.mxu0 0
        %1988 = vmatprep.subr.bf16.mxu0 0
        %1989 = vmatpush1.bf16.msra.mxu0 0
        %1990 = vmatprep.subr.bf16.mxu0 0
        %1991 = vmatpush1.bf16.msra.mxu0 0
        %1992 = vmatprep.subr.bf16.mxu0 0
        %1993 = vmatpush1.bf16.msra.mxu0 0
        %1994 = vmatprep.subr.bf16.mxu0 0
        %1995 = vmatpush1.bf16.msra.mxu0 0
        %1996 = vmatprep.subr.bf16.mxu0 0
        %1997 = vmatpush1.bf16.msra.mxu0 0
        %1998 = vmatprep.subr.bf16.mxu0 0
        %1999 = vmatpush1.bf16.msra.mxu0 0
        %2000 = vmatprep.mubr.bf16.mxu0 0
        %2001 = vmatmul.mubr.bf16.gmra.mrb[0].mxu0 %v528
        %v2002 = vpop.f32.mrb[0].mxu0
        %v2003 = vadd.f32 0.0, %v2002
        %v2004 = vpop.f32.mrb[0].mxu0
        %v2005 = vadd.f32 0.0, %v2004
        %v2006 = vpop.f32.mrb[0].mxu0
        %v2007 = vpop.f32.mrb[0].mxu0
        %2008 = vdwg.mxu0
        %2009 = vmatprep.subr.bf16.mxu0 %v1314
        %2010 = vmatpush1.bf16.msra.mxu0 %v1313
        %2011 = vmatprep.subr.bf16.mxu0 %v1338
        %2012 = vmatpush1.bf16.msra.mxu0 %v1337
        %2013 = vmatprep.subr.bf16.mxu0 %v1362
        %2014 = vmatpush1.bf16.msra.mxu0 %v1361
        %2015 = vmatprep.subr.bf16.mxu0 %v1386
        %2016 = vmatpush1.bf16.msra.mxu0 %v1385
        %2017 = vmatprep.subr.bf16.mxu0 %v1410
        %2018 = vmatpush1.bf16.msra.mxu0 %v1409
        %2019 = vmatprep.subr.bf16.mxu0 %v1434
        %2020 = vmatpush1.bf16.msra.mxu0 %v1433
        %2021 = vmatprep.subr.bf16.mxu0 %v1458
        %2022 = vmatpush1.bf16.msra.mxu0 %v1457
        %2023 = vmatprep.subr.bf16.mxu0 %v1482
        %2024 = vmatpush1.bf16.msra.mxu0 %v1481
        %2025 = vmatprep.subr.bf16.mxu0 0
        %2026 = vmatpush1.bf16.msra.mxu0 0
        %2027 = vmatprep.subr.bf16.mxu0 0
        %2028 = vmatpush1.bf16.msra.mxu0 0
        %2029 = vmatprep.subr.bf16.mxu0 0
        %2030 = vmatpush1.bf16.msra.mxu0 0
        %2031 = vmatprep.subr.bf16.mxu0 0
        %2032 = vmatpush1.bf16.msra.mxu0 0
        %2033 = vmatprep.subr.bf16.mxu0 0
        %2034 = vmatpush1.bf16.msra.mxu0 0
        %2035 = vmatprep.subr.bf16.mxu0 0
        %2036 = vmatpush1.bf16.msra.mxu0 0
        %2037 = vmatprep.subr.bf16.mxu0 0
        %2038 = vmatpush1.bf16.msra.mxu0 0
        %2039 = vmatprep.subr.bf16.mxu0 0
        %2040 = vmatpush1.bf16.msra.mxu0 0
        %2041 = vmatprep.mubr.bf16.mxu0 0
        %2042 = vmatmul.mubr.bf16.gmra.mrb[0].mxu0 %v528
        %v2043 = vpop.f32.mrb[0].mxu0
        %v2044 = vadd.f32 0.0, %v2043
        %v2045 = vpop.f32.mrb[0].mxu0
        %v2046 = vadd.f32 0.0, %v2045
        %v2047 = vpop.f32.mrb[0].mxu0
        %v2048 = vpop.f32.mrb[0].mxu0
        %2049 = vdwg.mxu0
        %2050 = vmatprep.subr.bf16.mxu0 %v1316
        %2051 = vmatpush1.bf16.msra.mxu0 %v1315
        %2052 = vmatprep.subr.bf16.mxu0 %v1340
        %2053 = vmatpush1.bf16.msra.mxu0 %v1339
        %2054 = vmatprep.subr.bf16.mxu0 %v1364
        %2055 = vmatpush1.bf16.msra.mxu0 %v1363
        %2056 = vmatprep.subr.bf16.mxu0 %v1388
        %2057 = vmatpush1.bf16.msra.mxu0 %v1387
        %2058 = vmatprep.subr.bf16.mxu0 %v1412
        %2059 = vmatpush1.bf16.msra.mxu0 %v1411
        %2060 = vmatprep.subr.bf16.mxu0 %v1436
        %2061 = vmatpush1.bf16.msra.mxu0 %v1435
        %2062 = vmatprep.subr.bf16.mxu0 %v1460
        %2063 = vmatpush1.bf16.msra.mxu0 %v1459
        %2064 = vmatprep.subr.bf16.mxu0 %v1484
        %2065 = vmatpush1.bf16.msra.mxu0 %v1483
        %2066 = vmatprep.subr.bf16.mxu0 0
        %2067 = vmatpush1.bf16.msra.mxu0 0
        %2068 = vmatprep.subr.bf16.mxu0 0
        %2069 = vmatpush1.bf16.msra.mxu0 0
        %2070 = vmatprep.subr.bf16.mxu0 0
        %2071 = vmatpush1.bf16.msra.mxu0 0
        %2072 = vmatprep.subr.bf16.mxu0 0
        %2073 = vmatpush1.bf16.msra.mxu0 0
        %2074 = vmatprep.subr.bf16.mxu0 0
        %2075 = vmatpush1.bf16.msra.mxu0 0
        %2076 = vmatprep.subr.bf16.mxu0 0
        %2077 = vmatpush1.bf16.msra.mxu0 0
        %2078 = vmatprep.subr.bf16.mxu0 0
        %2079 = vmatpush1.bf16.msra.mxu0 0
        %2080 = vmatprep.subr.bf16.mxu0 0
        %2081 = vmatpush1.bf16.msra.mxu0 0
        %2082 = vmatprep.mubr.bf16.mxu0 0
        %2083 = vmatmul.mubr.bf16.gmra.mrb[0].mxu0 %v528
        %v2084 = vpop.f32.mrb[0].mxu0
        %v2085 = vadd.f32 0.0, %v2084
        %v2086 = vpop.f32.mrb[0].mxu0
        %v2087 = vadd.f32 0.0, %v2086
        %v2088 = vpop.f32.mrb[0].mxu0
        %v2089 = vpop.f32.mrb[0].mxu0
        %2090 = vdwg.mxu0
        %2091 = vmatprep.subr.bf16.mxu0 %v1318
        %2092 = vmatpush1.bf16.msra.mxu0 %v1317
        %2093 = vmatprep.subr.bf16.mxu0 %v1342
        %2094 = vmatpush1.bf16.msra.mxu0 %v1341
        %2095 = vmatprep.subr.bf16.mxu0 %v1366
        %2096 = vmatpush1.bf16.msra.mxu0 %v1365
        %2097 = vmatprep.subr.bf16.mxu0 %v1390
        %2098 = vmatpush1.bf16.msra.mxu0 %v1389
        %2099 = vmatprep.subr.bf16.mxu0 %v1414
        %2100 = vmatpush1.bf16.msra.mxu0 %v1413
        %2101 = vmatprep.subr.bf16.mxu0 %v1438
        %2102 = vmatpush1.bf16.msra.mxu0 %v1437
        %2103 = vmatprep.subr.bf16.mxu0 %v1462
        %2104 = vmatpush1.bf16.msra.mxu0 %v1461
        %2105 = vmatprep.subr.bf16.mxu0 %v1486
        %2106 = vmatpush1.bf16.msra.mxu0 %v1485
        %2107 = vmatprep.subr.bf16.mxu0 0
        %2108 = vmatpush1.bf16.msra.mxu0 0
        %2109 = vmatprep.subr.bf16.mxu0 0
        %2110 = vmatpush1.bf16.msra.mxu0 0
        %2111 = vmatprep.subr.bf16.mxu0 0
        %2112 = vmatpush1.bf16.msra.mxu0 0
        %2113 = vmatprep.subr.bf16.mxu0 0
        %2114 = vmatpush1.bf16.msra.mxu0 0
        %2115 = vmatprep.subr.bf16.mxu0 0
        %2116 = vmatpush1.bf16.msra.mxu0 0
        %2117 = vmatprep.subr.bf16.mxu0 0
        %2118 = vmatpush1.bf16.msra.mxu0 0
        %2119 = vmatprep.subr.bf16.mxu0 0
        %2120 = vmatpush1.bf16.msra.mxu0 0
        %2121 = vmatprep.subr.bf16.mxu0 0
        %2122 = vmatpush1.bf16.msra.mxu0 0
        %2123 = vmatprep.mubr.bf16.mxu0 0
        %2124 = vmatmul.mubr.bf16.gmra.mrb[0].mxu0 %v528
        %v2125 = vpop.f32.mrb[0].mxu0
        %v2126 = vadd.f32 0.0, %v2125
        %v2127 = vpop.f32.mrb[0].mxu0
        %v2128 = vadd.f32 0.0, %v2127
        %v2129 = vpop.f32.mrb[0].mxu0
        %v2130 = vpop.f32.mrb[0].mxu0
        %2131 = vdwg.mxu0
        %2132 = vmatprep.subr.bf16.mxu0 %v1320
        %2133 = vmatpush1.bf16.msra.mxu0 %v1319
        %2134 = vmatprep.subr.bf16.mxu0 %v1344
        %2135 = vmatpush1.bf16.msra.mxu0 %v1343
        %2136 = vmatprep.subr.bf16.mxu0 %v1368
        %2137 = vmatpush1.bf16.msra.mxu0 %v1367
        %2138 = vmatprep.subr.bf16.mxu0 %v1392
        %2139 = vmatpush1.bf16.msra.mxu0 %v1391
        %2140 = vmatprep.subr.bf16.mxu0 %v1416
        %2141 = vmatpush1.bf16.msra.mxu0 %v1415
        %2142 = vmatprep.subr.bf16.mxu0 %v1440
        %2143 = vmatpush1.bf16.msra.mxu0 %v1439
        %2144 = vmatprep.subr.bf16.mxu0 %v1464
        %2145 = vmatpush1.bf16.msra.mxu0 %v1463
        %2146 = vmatprep.subr.bf16.mxu0 %v1488
        %2147 = vmatpush1.bf16.msra.mxu0 %v1487
        %2148 = vmatprep.subr.bf16.mxu0 0
        %2149 = vmatpush1.bf16.msra.mxu0 0
        %2150 = vmatprep.subr.bf16.mxu0 0
        %2151 = vmatpush1.bf16.msra.mxu0 0
        %2152 = vmatprep.subr.bf16.mxu0 0
        %2153 = vmatpush1.bf16.msra.mxu0 0
        %2154 = vmatprep.subr.bf16.mxu0 0
        %2155 = vmatpush1.bf16.msra.mxu0 0
        %2156 = vmatprep.subr.bf16.mxu0 0
        %2157 = vmatpush1.bf16.msra.mxu0 0
        %2158 = vmatprep.subr.bf16.mxu0 0
        %2159 = vmatpush1.bf16.msra.mxu0 0
        %2160 = vmatprep.subr.bf16.mxu0 0
        %2161 = vmatpush1.bf16.msra.mxu0 0
        %2162 = vmatprep.subr.bf16.mxu0 0
        %2163 = vmatpush1.bf16.msra.mxu0 0
        %2164 = vmatprep.mubr.bf16.mxu0 0
        %2165 = vmatmul.mubr.bf16.gmra.mrb[0].mxu0 %v528
        %v2166 = vpop.f32.mrb[0].mxu0
        %v2167 = vadd.f32 0.0, %v2166
        %v2168 = vpop.f32.mrb[0].mxu0
        %v2169 = vadd.f32 0.0, %v2168
        %v2170 = vpop.f32.mrb[0].mxu0
        %v2171 = vpop.f32.mrb[0].mxu0
        %2172 = vdwg.mxu0
        %v2173 = vpack.c.bf16 %v1716, %v1716
        %v2174 = vpack.c.bf16 %v1718, %v1718
        %v2175 = vpack.c.bf16 %v1757, %v1757
        %v2176 = vpack.c.bf16 %v1759, %v1759
        %v2177 = vpack.c.bf16 %v1798, %v1798
        %v2178 = vpack.c.bf16 %v1800, %v1800
        %v2179 = vpack.c.bf16 %v1839, %v1839
        %v2180 = vpack.c.bf16 %v1841, %v1841
        %v2181 = vpack.c.bf16 %v1880, %v1880
        %v2182 = vpack.c.bf16 %v1882, %v1882
        %v2183 = vpack.c.bf16 %v1921, %v1921
        %v2184 = vpack.c.bf16 %v1923, %v1923
        %v2185 = vpack.c.bf16 %v1962, %v1962
        %v2186 = vpack.c.bf16 %v1964, %v1964
        %v2187 = vpack.c.bf16 %v2003, %v2003
        %v2188 = vpack.c.bf16 %v2005, %v2005
        %v2189 = vpack.c.bf16 %v2044, %v2044
        %v2190 = vpack.c.bf16 %v2046, %v2046
        %v2191 = vpack.c.bf16 %v2085, %v2085
        %v2192 = vpack.c.bf16 %v2087, %v2087
        %v2193 = vpack.c.bf16 %v2126, %v2126
        %v2194 = vpack.c.bf16 %v2128, %v2128
        %v2195 = vpack.c.bf16 %v2167, %v2167
        %v2196 = vpack.c.bf16 %v2169, %v2169
        %2197 = vmatprep.subr.bf16.mxu0 0
        %2198 = vmatpush1.bf16.xpose.msra.mxu0 %v2181
        %2199 = vmatprep.subr.bf16.mxu0 0
        %2200 = vmatpush1.bf16.xpose.msra.mxu0 0
        %2201 = vmatprep.subr.bf16.mxu0 0
        %2202 = vmatpush1.bf16.xpose.msra.mxu0 0
        %2203 = vmatprep.subr.bf16.mxu0 0
        %2204 = vmatpush1.bf16.xpose.msra.mxu0 0
        %2205 = vmatprep.subr.bf16.mxu0 0
        %2206 = vmatpush1.bf16.xpose.msra.mxu0 0
        %2207 = vmatprep.subr.bf16.mxu0 0
        %2208 = vmatpush1.bf16.xpose.msra.mxu0 0
        %2209 = vmatprep.subr.bf16.mxu0 0
        %2210 = vmatpush1.bf16.xpose.msra.mxu0 0
        %2211 = vmatprep.subr.bf16.mxu0 0
        %2212 = vmatpush1.bf16.xpose.msra.mxu0 0
        %2213 = vmatprep.subr.bf16.mxu0 0
        %2214 = vmatpush1.bf16.xpose.msra.mxu0 0
        %2215 = vmatprep.subr.bf16.mxu0 0
        %2216 = vmatpush1.bf16.xpose.msra.mxu0 0
        %2217 = vmatprep.subr.bf16.mxu0 0
        %2218 = vmatpush1.bf16.xpose.msra.mxu0 0
        %2219 = vmatprep.subr.bf16.mxu0 0
        %2220 = vmatpush1.bf16.xpose.msra.mxu0 0
        %2221 = vmatprep.subr.bf16.mxu0 0
        %2222 = vmatpush1.bf16.xpose.msra.mxu0 0
        %2223 = vmatprep.subr.bf16.mxu0 0
        %2224 = vmatpush1.bf16.xpose.msra.mxu0 0
        %2225 = vmatprep.subr.bf16.mxu0 0
        %2226 = vmatpush1.bf16.xpose.msra.mxu0 0
        %2227 = vmatprep.subr.bf16.mxu0 0
        %2228 = vmatpush1.bf16.xpose.msra.mxu0 0
        %2229 = vmatprep.mubr.bf16.mxu0 0
        %2230 = vmatmul.mubr.bf16.gmra.mrb[0].mxu0 %v2173
        %v2231 = vpop.f32.mrb[0].mxu0
        %v2232 = vadd.f32 0.0, %v2231
        %v2233 = vpop.f32.mrb[0].mxu0
        %v2234 = vpop.f32.mrb[0].mxu0
        %v2235 = vpop.f32.mrb[0].mxu0
        %2236 = vdwg.mxu0
        %2237 = vmatprep.subr.bf16.mxu0 0
        %2238 = vmatpush1.bf16.xpose.msra.mxu0 %v2182
        %2239 = vmatprep.subr.bf16.mxu0 0
        %2240 = vmatpush1.bf16.xpose.msra.mxu0 0
        %2241 = vmatprep.subr.bf16.mxu0 0
        %2242 = vmatpush1.bf16.xpose.msra.mxu0 0
        %2243 = vmatprep.subr.bf16.mxu0 0
        %2244 = vmatpush1.bf16.xpose.msra.mxu0 0
        %2245 = vmatprep.subr.bf16.mxu0 0
        %2246 = vmatpush1.bf16.xpose.msra.mxu0 0
        %2247 = vmatprep.subr.bf16.mxu0 0
        %2248 = vmatpush1.bf16.xpose.msra.mxu0 0
        %2249 = vmatprep.subr.bf16.mxu0 0
        %2250 = vmatpush1.bf16.xpose.msra.mxu0 0
        %2251 = vmatprep.subr.bf16.mxu0 0
        %2252 = vmatpush1.bf16.xpose.msra.mxu0 0
        %2253 = vmatprep.subr.bf16.mxu0 0
        %2254 = vmatpush1.bf16.xpose.msra.mxu0 0
        %2255 = vmatprep.subr.bf16.mxu0 0
        %2256 = vmatpush1.bf16.xpose.msra.mxu0 0
        %2257 = vmatprep.subr.bf16.mxu0 0
        %2258 = vmatpush1.bf16.xpose.msra.mxu0 0
        %2259 = vmatprep.subr.bf16.mxu0 0
        %2260 = vmatpush1.bf16.xpose.msra.mxu0 0
        %2261 = vmatprep.subr.bf16.mxu0 0
        %2262 = vmatpush1.bf16.xpose.msra.mxu0 0
        %2263 = vmatprep.subr.bf16.mxu0 0
        %2264 = vmatpush1.bf16.xpose.msra.mxu0 0
        %2265 = vmatprep.subr.bf16.mxu0 0
        %2266 = vmatpush1.bf16.xpose.msra.mxu0 0
        %2267 = vmatprep.subr.bf16.mxu0 0
        %2268 = vmatpush1.bf16.xpose.msra.mxu0 0
        %2269 = vmatprep.mubr.bf16.mxu0 0
        %2270 = vmatmul.mubr.bf16.gmra.mrb[0].mxu0 %v2174
        %v2271 = vpop.f32.mrb[0].mxu0
        %v2272 = vadd.f32 0.0, %v2271
        %v2273 = vpop.f32.mrb[0].mxu0
        %v2274 = vpop.f32.mrb[0].mxu0
        %v2275 = vpop.f32.mrb[0].mxu0
        %2276 = vdwg.mxu0
        %2277 = vmatprep.subr.bf16.mxu0 0
        %2278 = vmatpush1.bf16.xpose.msra.mxu0 %v2183
        %2279 = vmatprep.subr.bf16.mxu0 0
        %2280 = vmatpush1.bf16.xpose.msra.mxu0 0
        %2281 = vmatprep.subr.bf16.mxu0 0
        %2282 = vmatpush1.bf16.xpose.msra.mxu0 0
        %2283 = vmatprep.subr.bf16.mxu0 0
        %2284 = vmatpush1.bf16.xpose.msra.mxu0 0
        %2285 = vmatprep.subr.bf16.mxu0 0
        %2286 = vmatpush1.bf16.xpose.msra.mxu0 0
        %2287 = vmatprep.subr.bf16.mxu0 0
        %2288 = vmatpush1.bf16.xpose.msra.mxu0 0
        %2289 = vmatprep.subr.bf16.mxu0 0
        %2290 = vmatpush1.bf16.xpose.msra.mxu0 0
        %2291 = vmatprep.subr.bf16.mxu0 0
        %2292 = vmatpush1.bf16.xpose.msra.mxu0 0
        %2293 = vmatprep.subr.bf16.mxu0 0
        %2294 = vmatpush1.bf16.xpose.msra.mxu0 0
        %2295 = vmatprep.subr.bf16.mxu0 0
        %2296 = vmatpush1.bf16.xpose.msra.mxu0 0
        %2297 = vmatprep.subr.bf16.mxu0 0
        %2298 = vmatpush1.bf16.xpose.msra.mxu0 0
        %2299 = vmatprep.subr.bf16.mxu0 0
        %2300 = vmatpush1.bf16.xpose.msra.mxu0 0
        %2301 = vmatprep.subr.bf16.mxu0 0
        %2302 = vmatpush1.bf16.xpose.msra.mxu0 0
        %2303 = vmatprep.subr.bf16.mxu0 0
        %2304 = vmatpush1.bf16.xpose.msra.mxu0 0
        %2305 = vmatprep.subr.bf16.mxu0 0
        %2306 = vmatpush1.bf16.xpose.msra.mxu0 0
        %2307 = vmatprep.subr.bf16.mxu0 0
        %2308 = vmatpush1.bf16.xpose.msra.mxu0 0
        %2309 = vmatprep.mubr.bf16.mxu0 0
        %2310 = vmatmul.mubr.bf16.gmra.mrb[0].mxu0 %v2175
        %v2311 = vpop.f32.mrb[0].mxu0
        %v2312 = vadd.f32 0.0, %v2311
        %v2313 = vpop.f32.mrb[0].mxu0
        %v2314 = vpop.f32.mrb[0].mxu0
        %v2315 = vpop.f32.mrb[0].mxu0
        %2316 = vdwg.mxu0
        %2317 = vmatprep.subr.bf16.mxu0 0
        %2318 = vmatpush1.bf16.xpose.msra.mxu0 %v2184
        %2319 = vmatprep.subr.bf16.mxu0 0
        %2320 = vmatpush1.bf16.xpose.msra.mxu0 0
        %2321 = vmatprep.subr.bf16.mxu0 0
        %2322 = vmatpush1.bf16.xpose.msra.mxu0 0
        %2323 = vmatprep.subr.bf16.mxu0 0
        %2324 = vmatpush1.bf16.xpose.msra.mxu0 0
        %2325 = vmatprep.subr.bf16.mxu0 0
        %2326 = vmatpush1.bf16.xpose.msra.mxu0 0
        %2327 = vmatprep.subr.bf16.mxu0 0
        %2328 = vmatpush1.bf16.xpose.msra.mxu0 0
        %2329 = vmatprep.subr.bf16.mxu0 0
        %2330 = vmatpush1.bf16.xpose.msra.mxu0 0
        %2331 = vmatprep.subr.bf16.mxu0 0
        %2332 = vmatpush1.bf16.xpose.msra.mxu0 0
        %2333 = vmatprep.subr.bf16.mxu0 0
        %2334 = vmatpush1.bf16.xpose.msra.mxu0 0
        %2335 = vmatprep.subr.bf16.mxu0 0
        %2336 = vmatpush1.bf16.xpose.msra.mxu0 0
        %2337 = vmatprep.subr.bf16.mxu0 0
        %2338 = vmatpush1.bf16.xpose.msra.mxu0 0
        %2339 = vmatprep.subr.bf16.mxu0 0
        %2340 = vmatpush1.bf16.xpose.msra.mxu0 0
        %2341 = vmatprep.subr.bf16.mxu0 0
        %2342 = vmatpush1.bf16.xpose.msra.mxu0 0
        %2343 = vmatprep.subr.bf16.mxu0 0
        %2344 = vmatpush1.bf16.xpose.msra.mxu0 0
        %2345 = vmatprep.subr.bf16.mxu0 0
        %2346 = vmatpush1.bf16.xpose.msra.mxu0 0
        %2347 = vmatprep.subr.bf16.mxu0 0
        %2348 = vmatpush1.bf16.xpose.msra.mxu0 0
        %2349 = vmatprep.mubr.bf16.mxu0 0
        %2350 = vmatmul.mubr.bf16.gmra.mrb[0].mxu0 %v2176
        %v2351 = vpop.f32.mrb[0].mxu0
        %v2352 = vadd.f32 0.0, %v2351
        %v2353 = vpop.f32.mrb[0].mxu0
        %v2354 = vpop.f32.mrb[0].mxu0
        %v2355 = vpop.f32.mrb[0].mxu0
        %2356 = vdwg.mxu0
        %2357 = vmatprep.subr.bf16.mxu0 0
        %2358 = vmatpush1.bf16.xpose.msra.mxu0 %v2185
        %2359 = vmatprep.subr.bf16.mxu0 0
        %2360 = vmatpush1.bf16.xpose.msra.mxu0 0
        %2361 = vmatprep.subr.bf16.mxu0 0
        %2362 = vmatpush1.bf16.xpose.msra.mxu0 0
        %2363 = vmatprep.subr.bf16.mxu0 0
        %2364 = vmatpush1.bf16.xpose.msra.mxu0 0
        %2365 = vmatprep.subr.bf16.mxu0 0
        %2366 = vmatpush1.bf16.xpose.msra.mxu0 0
        %2367 = vmatprep.subr.bf16.mxu0 0
        %2368 = vmatpush1.bf16.xpose.msra.mxu0 0
        %2369 = vmatprep.subr.bf16.mxu0 0
        %2370 = vmatpush1.bf16.xpose.msra.mxu0 0
        %2371 = vmatprep.subr.bf16.mxu0 0
        %2372 = vmatpush1.bf16.xpose.msra.mxu0 0
        %2373 = vmatprep.subr.bf16.mxu0 0
        %2374 = vmatpush1.bf16.xpose.msra.mxu0 0
        %2375 = vmatprep.subr.bf16.mxu0 0
        %2376 = vmatpush1.bf16.xpose.msra.mxu0 0
        %2377 = vmatprep.subr.bf16.mxu0 0
        %2378 = vmatpush1.bf16.xpose.msra.mxu0 0
        %2379 = vmatprep.subr.bf16.mxu0 0
        %2380 = vmatpush1.bf16.xpose.msra.mxu0 0
        %2381 = vmatprep.subr.bf16.mxu0 0
        %2382 = vmatpush1.bf16.xpose.msra.mxu0 0
        %2383 = vmatprep.subr.bf16.mxu0 0
        %2384 = vmatpush1.bf16.xpose.msra.mxu0 0
        %2385 = vmatprep.subr.bf16.mxu0 0
        %2386 = vmatpush1.bf16.xpose.msra.mxu0 0
        %2387 = vmatprep.subr.bf16.mxu0 0
        %2388 = vmatpush1.bf16.xpose.msra.mxu0 0
        %2389 = vmatprep.mubr.bf16.mxu0 0
        %2390 = vmatmul.mubr.bf16.gmra.mrb[0].mxu0 %v2177
        %v2391 = vpop.f32.mrb[0].mxu0
        %v2392 = vadd.f32 0.0, %v2391
        %v2393 = vpop.f32.mrb[0].mxu0
        %v2394 = vpop.f32.mrb[0].mxu0
        %v2395 = vpop.f32.mrb[0].mxu0
        %2396 = vdwg.mxu0
        %2397 = vmatprep.subr.bf16.mxu0 0
        %2398 = vmatpush1.bf16.xpose.msra.mxu0 %v2186
        %2399 = vmatprep.subr.bf16.mxu0 0
        %2400 = vmatpush1.bf16.xpose.msra.mxu0 0
        %2401 = vmatprep.subr.bf16.mxu0 0
        %2402 = vmatpush1.bf16.xpose.msra.mxu0 0
        %2403 = vmatprep.subr.bf16.mxu0 0
        %2404 = vmatpush1.bf16.xpose.msra.mxu0 0
        %2405 = vmatprep.subr.bf16.mxu0 0
        %2406 = vmatpush1.bf16.xpose.msra.mxu0 0
        %2407 = vmatprep.subr.bf16.mxu0 0
        %2408 = vmatpush1.bf16.xpose.msra.mxu0 0
        %2409 = vmatprep.subr.bf16.mxu0 0
        %2410 = vmatpush1.bf16.xpose.msra.mxu0 0
        %2411 = vmatprep.subr.bf16.mxu0 0
        %2412 = vmatpush1.bf16.xpose.msra.mxu0 0
        %2413 = vmatprep.subr.bf16.mxu0 0
        %2414 = vmatpush1.bf16.xpose.msra.mxu0 0
        %2415 = vmatprep.subr.bf16.mxu0 0
        %2416 = vmatpush1.bf16.xpose.msra.mxu0 0
        %2417 = vmatprep.subr.bf16.mxu0 0
        %2418 = vmatpush1.bf16.xpose.msra.mxu0 0
        %2419 = vmatprep.subr.bf16.mxu0 0
        %2420 = vmatpush1.bf16.xpose.msra.mxu0 0
        %2421 = vmatprep.subr.bf16.mxu0 0
        %2422 = vmatpush1.bf16.xpose.msra.mxu0 0
        %2423 = vmatprep.subr.bf16.mxu0 0
        %2424 = vmatpush1.bf16.xpose.msra.mxu0 0
        %2425 = vmatprep.subr.bf16.mxu0 0
        %2426 = vmatpush1.bf16.xpose.msra.mxu0 0
        %2427 = vmatprep.subr.bf16.mxu0 0
        %2428 = vmatpush1.bf16.xpose.msra.mxu0 0
        %2429 = vmatprep.mubr.bf16.mxu0 0
        %2430 = vmatmul.mubr.bf16.gmra.mrb[0].mxu0 %v2178
        %v2431 = vpop.f32.mrb[0].mxu0
        %v2432 = vadd.f32 0.0, %v2431
        %v2433 = vpop.f32.mrb[0].mxu0
        %v2434 = vpop.f32.mrb[0].mxu0
        %v2435 = vpop.f32.mrb[0].mxu0
        %2436 = vdwg.mxu0
        %2437 = vmatprep.subr.bf16.mxu0 0
        %2438 = vmatpush1.bf16.xpose.msra.mxu0 %v2187
        %2439 = vmatprep.subr.bf16.mxu0 0
        %2440 = vmatpush1.bf16.xpose.msra.mxu0 0
        %2441 = vmatprep.subr.bf16.mxu0 0
        %2442 = vmatpush1.bf16.xpose.msra.mxu0 0
        %2443 = vmatprep.subr.bf16.mxu0 0
        %2444 = vmatpush1.bf16.xpose.msra.mxu0 0
        %2445 = vmatprep.subr.bf16.mxu0 0
        %2446 = vmatpush1.bf16.xpose.msra.mxu0 0
        %2447 = vmatprep.subr.bf16.mxu0 0
        %2448 = vmatpush1.bf16.xpose.msra.mxu0 0
        %2449 = vmatprep.subr.bf16.mxu0 0
        %2450 = vmatpush1.bf16.xpose.msra.mxu0 0
        %2451 = vmatprep.subr.bf16.mxu0 0
        %2452 = vmatpush1.bf16.xpose.msra.mxu0 0
        %2453 = vmatprep.subr.bf16.mxu0 0
        %2454 = vmatpush1.bf16.xpose.msra.mxu0 0
        %2455 = vmatprep.subr.bf16.mxu0 0
        %2456 = vmatpush1.bf16.xpose.msra.mxu0 0
        %2457 = vmatprep.subr.bf16.mxu0 0
        %2458 = vmatpush1.bf16.xpose.msra.mxu0 0
        %2459 = vmatprep.subr.bf16.mxu0 0
        %2460 = vmatpush1.bf16.xpose.msra.mxu0 0
        %2461 = vmatprep.subr.bf16.mxu0 0
        %2462 = vmatpush1.bf16.xpose.msra.mxu0 0
        %2463 = vmatprep.subr.bf16.mxu0 0
        %2464 = vmatpush1.bf16.xpose.msra.mxu0 0
        %2465 = vmatprep.subr.bf16.mxu0 0
        %2466 = vmatpush1.bf16.xpose.msra.mxu0 0
        %2467 = vmatprep.subr.bf16.mxu0 0
        %2468 = vmatpush1.bf16.xpose.msra.mxu0 0
        %2469 = vmatprep.mubr.bf16.mxu0 0
        %2470 = vmatmul.mubr.bf16.gmra.mrb[0].mxu0 %v2179
        %v2471 = vpop.f32.mrb[0].mxu0
        %v2472 = vadd.f32 0.0, %v2471
        %v2473 = vpop.f32.mrb[0].mxu0
        %v2474 = vpop.f32.mrb[0].mxu0
        %v2475 = vpop.f32.mrb[0].mxu0
        %2476 = vdwg.mxu0
        %2477 = vmatprep.subr.bf16.mxu0 0
        %2478 = vmatpush1.bf16.xpose.msra.mxu0 %v2188
        %2479 = vmatprep.subr.bf16.mxu0 0
        %2480 = vmatpush1.bf16.xpose.msra.mxu0 0
        %2481 = vmatprep.subr.bf16.mxu0 0
        %2482 = vmatpush1.bf16.xpose.msra.mxu0 0
        %2483 = vmatprep.subr.bf16.mxu0 0
        %2484 = vmatpush1.bf16.xpose.msra.mxu0 0
        %2485 = vmatprep.subr.bf16.mxu0 0
        %2486 = vmatpush1.bf16.xpose.msra.mxu0 0
        %2487 = vmatprep.subr.bf16.mxu0 0
        %2488 = vmatpush1.bf16.xpose.msra.mxu0 0
        %2489 = vmatprep.subr.bf16.mxu0 0
        %2490 = vmatpush1.bf16.xpose.msra.mxu0 0
        %2491 = vmatprep.subr.bf16.mxu0 0
        %2492 = vmatpush1.bf16.xpose.msra.mxu0 0
        %2493 = vmatprep.subr.bf16.mxu0 0
        %2494 = vmatpush1.bf16.xpose.msra.mxu0 0
        %2495 = vmatprep.subr.bf16.mxu0 0
        %2496 = vmatpush1.bf16.xpose.msra.mxu0 0
        %2497 = vmatprep.subr.bf16.mxu0 0
        %2498 = vmatpush1.bf16.xpose.msra.mxu0 0
        %2499 = vmatprep.subr.bf16.mxu0 0
        %2500 = vmatpush1.bf16.xpose.msra.mxu0 0
        %2501 = vmatprep.subr.bf16.mxu0 0
        %2502 = vmatpush1.bf16.xpose.msra.mxu0 0
        %2503 = vmatprep.subr.bf16.mxu0 0
        %2504 = vmatpush1.bf16.xpose.msra.mxu0 0
        %2505 = vmatprep.subr.bf16.mxu0 0
        %2506 = vmatpush1.bf16.xpose.msra.mxu0 0
        %2507 = vmatprep.subr.bf16.mxu0 0
        %2508 = vmatpush1.bf16.xpose.msra.mxu0 0
        %2509 = vmatprep.mubr.bf16.mxu0 0
        %2510 = vmatmul.mubr.bf16.gmra.mrb[0].mxu0 %v2180
        %v2511 = vpop.f32.mrb[0].mxu0
        %v2512 = vadd.f32 0.0, %v2511
        %v2513 = vpop.f32.mrb[0].mxu0
        %v2514 = vpop.f32.mrb[0].mxu0
        %v2515 = vpop.f32.mrb[0].mxu0
        %2516 = vdwg.mxu0
        %v2517 = vmul.f32 %v2232, 0.088388346
        %v2518 = vmul.f32 %v2272, 0.088388346
        %v2519 = vmul.f32 %v2312, 0.088388346
        %v2520 = vmul.f32 %v2352, 0.088388346
        %v2521 = vmul.f32 %v2392, 0.088388346
        %v2522 = vmul.f32 %v2432, 0.088388346
        %v2523 = vmul.f32 %v2472, 0.088388346
        %v2524 = vmul.f32 %v2512, 0.088388346
        %v2525 = vmax.f32 %v2517, -5.0
        %v2526 = vmax.f32 %v2518, -5.0
        %v2527 = vmax.f32 %v2519, -5.0
        %v2528 = vmax.f32 %v2520, -5.0
        %v2529 = vmax.f32 %v2521, -5.0
        %v2530 = vmax.f32 %v2522, -5.0
        %v2531 = vmax.f32 %v2523, -5.0
        %v2532 = vmax.f32 %v2524, -5.0
        %v2533 = vmin.f32 %v2525, 5.0
        %v2534 = vmin.f32 %v2526, 5.0
        %v2535 = vmin.f32 %v2527, 5.0
        %v2536 = vmin.f32 %v2528, 5.0
        %v2537 = vmin.f32 %v2529, 5.0
        %v2538 = vmin.f32 %v2530, 5.0
        %v2539 = vmin.f32 %v2531, 5.0
        %v2540 = vmin.f32 %v2532, 5.0
        %v2541 = vsel %vm527, 1, 0
        %vm2542 = vcmp.eq.s32.totalorder %v2541, 1
        %v2543 = vsel %vm2542, %v2533, -1e+30
        %v2544 = vsel %vm2542, %v2534, -1e+30
        %v2545 = vsel %vm2542, %v2535, -1e+30
        %v2546 = vsel %vm2542, %v2536, -1e+30
        %v2547 = vsel %vm2542, %v2537, -1e+30
        %v2548 = vsel %vm2542, %v2538, -1e+30
        %v2549 = vsel %vm2542, %v2539, -1e+30
        %v2550 = vsel %vm2542, %v2540, -1e+30
        %vm2551 = vcmask 64512
        %v2552 = vsel %vm2551, %v2543, -inf
        %2553 = vmax.xlane.f32.xlu0 %v2552
        %v2554 = vpop.xlane.xlu0 %2553
        %v2555 = vsel %vm2551, %v2544, -inf
        %2556 = vmax.xlane.f32.xlu0 %v2555
        %v2557 = vpop.xlane.xlu0 %2556
        %v2558 = vsel %vm2551, %v2545, -inf
        %2559 = vmax.xlane.f32.xlu0 %v2558
        %v2560 = vpop.xlane.xlu0 %2559
        %v2561 = vsel %vm2551, %v2546, -inf
        %2562 = vmax.xlane.f32.xlu0 %v2561
        %v2563 = vpop.xlane.xlu0 %2562
        %v2564 = vsel %vm2551, %v2547, -inf
        %2565 = vmax.xlane.f32.xlu0 %v2564
        %v2566 = vpop.xlane.xlu0 %2565
        %v2567 = vsel %vm2551, %v2548, -inf
        %2568 = vmax.xlane.f32.xlu0 %v2567
        %v2569 = vpop.xlane.xlu0 %2568
        %v2570 = vsel %vm2551, %v2549, -inf
        %2571 = vmax.xlane.f32.xlu0 %v2570
        %v2572 = vpop.xlane.xlu0 %2571
        %v2573 = vsel %vm2551, %v2550, -inf
        %2574 = vmax.xlane.f32.xlu0 %v2573
        %v2575 = vpop.xlane.xlu0 %2574
        %v2576 = vsub.f32 %v2543, %v2554
        %v2577 = vsub.f32 %v2544, %v2557
        %v2578 = vsub.f32 %v2545, %v2560
        %v2579 = vsub.f32 %v2546, %v2563
        %v2580 = vsub.f32 %v2547, %v2566
        %v2581 = vsub.f32 %v2548, %v2569
        %v2582 = vsub.f32 %v2549, %v2572
        %v2583 = vsub.f32 %v2550, %v2575
        %v2584 = vmul.f32 %v2576, 1.442695
        %v2585 = vpow.pop %v2584
        %v2586 = vmul.f32 %v2577, 1.442695
        %v2587 = vpow.pop %v2586
        %v2588 = vmul.f32 %v2578, 1.442695
        %v2589 = vpow.pop %v2588
        %v2590 = vmul.f32 %v2579, 1.442695
        %v2591 = vpow.pop %v2590
        %v2592 = vmul.f32 %v2580, 1.442695
        %v2593 = vpow.pop %v2592
        %v2594 = vmul.f32 %v2581, 1.442695
        %v2595 = vpow.pop %v2594
        %v2596 = vmul.f32 %v2582, 1.442695
        %v2597 = vpow.pop %v2596
        %v2598 = vmul.f32 %v2583, 1.442695
        %v2599 = vpow.pop %v2598
        %v2600 = vsel %vm2542, %v2585, 0.0
        %v2601 = vsel %vm2542, %v2587, 0.0
        %v2602 = vsel %vm2542, %v2589, 0.0
        %v2603 = vsel %vm2542, %v2591, 0.0
        %v2604 = vsel %vm2542, %v2593, 0.0
        %v2605 = vsel %vm2542, %v2595, 0.0
        %v2606 = vsel %vm2542, %v2597, 0.0
        %v2607 = vsel %vm2542, %v2599, 0.0
        %v2608 = vsel %vm2551, %v2600, 0.0
        %2609 = vadd.xlane.f32.xlu0 %v2608
        %v2610 = vpop.xlane.xlu0 %2609
        %v2611 = vsel %vm2551, %v2601, 0.0
        %2612 = vadd.xlane.f32.xlu0 %v2611
        %v2613 = vpop.xlane.xlu0 %2612
        %v2614 = vsel %vm2551, %v2602, 0.0
        %2615 = vadd.xlane.f32.xlu0 %v2614
        %v2616 = vpop.xlane.xlu0 %2615
        %v2617 = vsel %vm2551, %v2603, 0.0
        %2618 = vadd.xlane.f32.xlu0 %v2617
        %v2619 = vpop.xlane.xlu0 %2618
        %v2620 = vsel %vm2551, %v2604, 0.0
        %2621 = vadd.xlane.f32.xlu0 %v2620
        %v2622 = vpop.xlane.xlu0 %2621
        %v2623 = vsel %vm2551, %v2605, 0.0
        %2624 = vadd.xlane.f32.xlu0 %v2623
        %v2625 = vpop.xlane.xlu0 %2624
        %v2626 = vsel %vm2551, %v2606, 0.0
        %2627 = vadd.xlane.f32.xlu0 %v2626
        %v2628 = vpop.xlane.xlu0 %2627
        %v2629 = vsel %vm2551, %v2607, 0.0
        %2630 = vadd.xlane.f32.xlu0 %v2629
        %v2631 = vpop.xlane.xlu0 %2630
        %vm2632 = vcmp.gt.f32.partialorder %v2610, 0.0
        %vm2633 = vcmp.gt.f32.partialorder %v2613, 0.0
        %vm2634 = vcmp.gt.f32.partialorder %v2616, 0.0
        %vm2635 = vcmp.gt.f32.partialorder %v2619, 0.0
        %vm2636 = vcmp.gt.f32.partialorder %v2622, 0.0
        %vm2637 = vcmp.gt.f32.partialorder %v2625, 0.0
        %vm2638 = vcmp.gt.f32.partialorder %v2628, 0.0
        %vm2639 = vcmp.gt.f32.partialorder %v2631, 0.0
        %v2640 = vsel %vm2632, %v2610, 1.0
        %v2641 = vsel %vm2633, %v2613, 1.0
        %v2642 = vsel %vm2634, %v2616, 1.0
        %v2643 = vsel %vm2635, %v2619, 1.0
        %v2644 = vsel %vm2636, %v2622, 1.0
        %v2645 = vsel %vm2637, %v2625, 1.0
        %v2646 = vsel %vm2638, %v2628, 1.0
        %v2647 = vsel %vm2639, %v2631, 1.0
        %v2648 = vrcp.pop %v2640
        %v2649 = vrcp.pop %v2641
        %v2650 = vrcp.pop %v2642
        %v2651 = vrcp.pop %v2643
        %v2652 = vrcp.pop %v2644
        %v2653 = vrcp.pop %v2645
        %v2654 = vrcp.pop %v2646
        %v2655 = vrcp.pop %v2647
        %v2656 = vmul.f32 %v2600, %v2648
        %v2657 = vmul.f32 %v2601, %v2649
        %v2658 = vmul.f32 %v2602, %v2650
        %v2659 = vmul.f32 %v2603, %v2651
        %v2660 = vmul.f32 %v2604, %v2652
        %v2661 = vmul.f32 %v2605, %v2653
        %v2662 = vmul.f32 %v2606, %v2654
        %v2663 = vmul.f32 %v2607, %v2655
        %v2664 = vpack.c.bf16 %v2656, %v2656
        %v2665 = vpack.c.bf16 %v2657, %v2657
        %v2666 = vpack.c.bf16 %v2658, %v2658
        %v2667 = vpack.c.bf16 %v2659, %v2659
        %v2668 = vpack.c.bf16 %v2660, %v2660
        %v2669 = vpack.c.bf16 %v2661, %v2661
        %v2670 = vpack.c.bf16 %v2662, %v2662
        %v2671 = vpack.c.bf16 %v2663, %v2663
        %v2673 = vsel %vm2551, %v2664, 0
        %vm2675 = vcmask 1043456
        %v2677 = vsel %vm2675, %v2189, 0
        %2679 = vmatprep.subr.bf16.mxu0 0
        %2680 = vmatpush1.bf16.msra.mxu0 %v2677
        %2681 = vmatprep.subr.bf16.mxu0 0
        %2682 = vmatpush1.bf16.msra.mxu0 0
        %2683 = vmatprep.subr.bf16.mxu0 0
        %2684 = vmatpush1.bf16.msra.mxu0 0
        %2685 = vmatprep.subr.bf16.mxu0 0
        %2686 = vmatpush1.bf16.msra.mxu0 0
        %2687 = vmatprep.subr.bf16.mxu0 0
        %2688 = vmatpush1.bf16.msra.mxu0 0
        %2689 = vmatprep.subr.bf16.mxu0 0
        %2690 = vmatpush1.bf16.msra.mxu0 0
        %2691 = vmatprep.subr.bf16.mxu0 0
        %2692 = vmatpush1.bf16.msra.mxu0 0
        %2693 = vmatprep.subr.bf16.mxu0 0
        %2694 = vmatpush1.bf16.msra.mxu0 0
        %2695 = vmatprep.subr.bf16.mxu0 0
        %2696 = vmatpush1.bf16.msra.mxu0 0
        %2697 = vmatprep.subr.bf16.mxu0 0
        %2698 = vmatpush1.bf16.msra.mxu0 0
        %2699 = vmatprep.subr.bf16.mxu0 0
        %2700 = vmatpush1.bf16.msra.mxu0 0
        %2701 = vmatprep.subr.bf16.mxu0 0
        %2702 = vmatpush1.bf16.msra.mxu0 0
        %2703 = vmatprep.subr.bf16.mxu0 0
        %2704 = vmatpush1.bf16.msra.mxu0 0
        %2705 = vmatprep.subr.bf16.mxu0 0
        %2706 = vmatpush1.bf16.msra.mxu0 0
        %2707 = vmatprep.subr.bf16.mxu0 0
        %2708 = vmatpush1.bf16.msra.mxu0 0
        %2709 = vmatprep.subr.bf16.mxu0 0
        %2710 = vmatpush1.bf16.msra.mxu0 0
        %2711 = vmatprep.mubr.bf16.mxu0 0
        %2712 = vmatmul.mubr.bf16.gmra.mrb[0].mxu0 %v2673
        %v2713 = vpop.f32.mrb[0].mxu0
        %v2714 = vadd.f32 0.0, %v2713
        %v2715 = vpop.f32.mrb[0].mxu0
        %v2716 = vpop.f32.mrb[0].mxu0
        %v2717 = vpop.f32.mrb[0].mxu0
        %2718 = vdwg.mxu0
        %v2720 = vsel %vm2551, %v2665, 0
        %v2723 = vsel %vm2675, %v2190, 0
        %2725 = vmatprep.subr.bf16.mxu0 0
        %2726 = vmatpush1.bf16.msra.mxu0 %v2723
        %2727 = vmatprep.subr.bf16.mxu0 0
        %2728 = vmatpush1.bf16.msra.mxu0 0
        %2729 = vmatprep.subr.bf16.mxu0 0
        %2730 = vmatpush1.bf16.msra.mxu0 0
        %2731 = vmatprep.subr.bf16.mxu0 0
        %2732 = vmatpush1.bf16.msra.mxu0 0
        %2733 = vmatprep.subr.bf16.mxu0 0
        %2734 = vmatpush1.bf16.msra.mxu0 0
        %2735 = vmatprep.subr.bf16.mxu0 0
        %2736 = vmatpush1.bf16.msra.mxu0 0
        %2737 = vmatprep.subr.bf16.mxu0 0
        %2738 = vmatpush1.bf16.msra.mxu0 0
        %2739 = vmatprep.subr.bf16.mxu0 0
        %2740 = vmatpush1.bf16.msra.mxu0 0
        %2741 = vmatprep.subr.bf16.mxu0 0
        %2742 = vmatpush1.bf16.msra.mxu0 0
        %2743 = vmatprep.subr.bf16.mxu0 0
        %2744 = vmatpush1.bf16.msra.mxu0 0
        %2745 = vmatprep.subr.bf16.mxu0 0
        %2746 = vmatpush1.bf16.msra.mxu0 0
        %2747 = vmatprep.subr.bf16.mxu0 0
        %2748 = vmatpush1.bf16.msra.mxu0 0
        %2749 = vmatprep.subr.bf16.mxu0 0
        %2750 = vmatpush1.bf16.msra.mxu0 0
        %2751 = vmatprep.subr.bf16.mxu0 0
        %2752 = vmatpush1.bf16.msra.mxu0 0
        %2753 = vmatprep.subr.bf16.mxu0 0
        %2754 = vmatpush1.bf16.msra.mxu0 0
        %2755 = vmatprep.subr.bf16.mxu0 0
        %2756 = vmatpush1.bf16.msra.mxu0 0
        %2757 = vmatprep.mubr.bf16.mxu0 0
        %2758 = vmatmul.mubr.bf16.gmra.mrb[0].mxu0 %v2720
        %v2759 = vpop.f32.mrb[0].mxu0
        %v2760 = vadd.f32 0.0, %v2759
        %v2761 = vpop.f32.mrb[0].mxu0
        %v2762 = vpop.f32.mrb[0].mxu0
        %v2763 = vpop.f32.mrb[0].mxu0
        %2764 = vdwg.mxu0
        %v2766 = vsel %vm2551, %v2666, 0
        %v2769 = vsel %vm2675, %v2191, 0
        %2771 = vmatprep.subr.bf16.mxu0 0
        %2772 = vmatpush1.bf16.msra.mxu0 %v2769
        %2773 = vmatprep.subr.bf16.mxu0 0
        %2774 = vmatpush1.bf16.msra.mxu0 0
        %2775 = vmatprep.subr.bf16.mxu0 0
        %2776 = vmatpush1.bf16.msra.mxu0 0
        %2777 = vmatprep.subr.bf16.mxu0 0
        %2778 = vmatpush1.bf16.msra.mxu0 0
        %2779 = vmatprep.subr.bf16.mxu0 0
        %2780 = vmatpush1.bf16.msra.mxu0 0
        %2781 = vmatprep.subr.bf16.mxu0 0
        %2782 = vmatpush1.bf16.msra.mxu0 0
        %2783 = vmatprep.subr.bf16.mxu0 0
        %2784 = vmatpush1.bf16.msra.mxu0 0
        %2785 = vmatprep.subr.bf16.mxu0 0
        %2786 = vmatpush1.bf16.msra.mxu0 0
        %2787 = vmatprep.subr.bf16.mxu0 0
        %2788 = vmatpush1.bf16.msra.mxu0 0
        %2789 = vmatprep.subr.bf16.mxu0 0
        %2790 = vmatpush1.bf16.msra.mxu0 0
        %2791 = vmatprep.subr.bf16.mxu0 0
        %2792 = vmatpush1.bf16.msra.mxu0 0
        %2793 = vmatprep.subr.bf16.mxu0 0
        %2794 = vmatpush1.bf16.msra.mxu0 0
        %2795 = vmatprep.subr.bf16.mxu0 0
        %2796 = vmatpush1.bf16.msra.mxu0 0
        %2797 = vmatprep.subr.bf16.mxu0 0
        %2798 = vmatpush1.bf16.msra.mxu0 0
        %2799 = vmatprep.subr.bf16.mxu0 0
        %2800 = vmatpush1.bf16.msra.mxu0 0
        %2801 = vmatprep.subr.bf16.mxu0 0
        %2802 = vmatpush1.bf16.msra.mxu0 0
        %2803 = vmatprep.mubr.bf16.mxu0 0
        %2804 = vmatmul.mubr.bf16.gmra.mrb[0].mxu0 %v2766
        %v2805 = vpop.f32.mrb[0].mxu0
        %v2806 = vadd.f32 0.0, %v2805
        %v2807 = vpop.f32.mrb[0].mxu0
        %v2808 = vpop.f32.mrb[0].mxu0
        %v2809 = vpop.f32.mrb[0].mxu0
        %2810 = vdwg.mxu0
        %v2812 = vsel %vm2551, %v2667, 0
        %v2815 = vsel %vm2675, %v2192, 0
        %2817 = vmatprep.subr.bf16.mxu0 0
        %2818 = vmatpush1.bf16.msra.mxu0 %v2815
        %2819 = vmatprep.subr.bf16.mxu0 0
        %2820 = vmatpush1.bf16.msra.mxu0 0
        %2821 = vmatprep.subr.bf16.mxu0 0
        %2822 = vmatpush1.bf16.msra.mxu0 0
        %2823 = vmatprep.subr.bf16.mxu0 0
        %2824 = vmatpush1.bf16.msra.mxu0 0
        %2825 = vmatprep.subr.bf16.mxu0 0
        %2826 = vmatpush1.bf16.msra.mxu0 0
        %2827 = vmatprep.subr.bf16.mxu0 0
        %2828 = vmatpush1.bf16.msra.mxu0 0
        %2829 = vmatprep.subr.bf16.mxu0 0
        %2830 = vmatpush1.bf16.msra.mxu0 0
        %2831 = vmatprep.subr.bf16.mxu0 0
        %2832 = vmatpush1.bf16.msra.mxu0 0
        %2833 = vmatprep.subr.bf16.mxu0 0
        %2834 = vmatpush1.bf16.msra.mxu0 0
        %2835 = vmatprep.subr.bf16.mxu0 0
        %2836 = vmatpush1.bf16.msra.mxu0 0
        %2837 = vmatprep.subr.bf16.mxu0 0
        %2838 = vmatpush1.bf16.msra.mxu0 0
        %2839 = vmatprep.subr.bf16.mxu0 0
        %2840 = vmatpush1.bf16.msra.mxu0 0
        %2841 = vmatprep.subr.bf16.mxu0 0
        %2842 = vmatpush1.bf16.msra.mxu0 0
        %2843 = vmatprep.subr.bf16.mxu0 0
        %2844 = vmatpush1.bf16.msra.mxu0 0
        %2845 = vmatprep.subr.bf16.mxu0 0
        %2846 = vmatpush1.bf16.msra.mxu0 0
        %2847 = vmatprep.subr.bf16.mxu0 0
        %2848 = vmatpush1.bf16.msra.mxu0 0
        %2849 = vmatprep.mubr.bf16.mxu0 0
        %2850 = vmatmul.mubr.bf16.gmra.mrb[0].mxu0 %v2812
        %v2851 = vpop.f32.mrb[0].mxu0
        %v2852 = vadd.f32 0.0, %v2851
        %v2853 = vpop.f32.mrb[0].mxu0
        %v2854 = vpop.f32.mrb[0].mxu0
        %v2855 = vpop.f32.mrb[0].mxu0
        %2856 = vdwg.mxu0
        %v2858 = vsel %vm2551, %v2668, 0
        %v2861 = vsel %vm2675, %v2193, 0
        %2863 = vmatprep.subr.bf16.mxu0 0
        %2864 = vmatpush1.bf16.msra.mxu0 %v2861
        %2865 = vmatprep.subr.bf16.mxu0 0
        %2866 = vmatpush1.bf16.msra.mxu0 0
        %2867 = vmatprep.subr.bf16.mxu0 0
        %2868 = vmatpush1.bf16.msra.mxu0 0
        %2869 = vmatprep.subr.bf16.mxu0 0
        %2870 = vmatpush1.bf16.msra.mxu0 0
        %2871 = vmatprep.subr.bf16.mxu0 0
        %2872 = vmatpush1.bf16.msra.mxu0 0
        %2873 = vmatprep.subr.bf16.mxu0 0
        %2874 = vmatpush1.bf16.msra.mxu0 0
        %2875 = vmatprep.subr.bf16.mxu0 0
        %2876 = vmatpush1.bf16.msra.mxu0 0
        %2877 = vmatprep.subr.bf16.mxu0 0
        %2878 = vmatpush1.bf16.msra.mxu0 0
        %2879 = vmatprep.subr.bf16.mxu0 0
        %2880 = vmatpush1.bf16.msra.mxu0 0
        %2881 = vmatprep.subr.bf16.mxu0 0
        %2882 = vmatpush1.bf16.msra.mxu0 0
        %2883 = vmatprep.subr.bf16.mxu0 0
        %2884 = vmatpush1.bf16.msra.mxu0 0
        %2885 = vmatprep.subr.bf16.mxu0 0
        %2886 = vmatpush1.bf16.msra.mxu0 0
        %2887 = vmatprep.subr.bf16.mxu0 0
        %2888 = vmatpush1.bf16.msra.mxu0 0
        %2889 = vmatprep.subr.bf16.mxu0 0
        %2890 = vmatpush1.bf16.msra.mxu0 0
        %2891 = vmatprep.subr.bf16.mxu0 0
        %2892 = vmatpush1.bf16.msra.mxu0 0
        %2893 = vmatprep.subr.bf16.mxu0 0
        %2894 = vmatpush1.bf16.msra.mxu0 0
        %2895 = vmatprep.mubr.bf16.mxu0 0
        %2896 = vmatmul.mubr.bf16.gmra.mrb[0].mxu0 %v2858
        %v2897 = vpop.f32.mrb[0].mxu0
        %v2898 = vadd.f32 0.0, %v2897
        %v2899 = vpop.f32.mrb[0].mxu0
        %v2900 = vpop.f32.mrb[0].mxu0
        %v2901 = vpop.f32.mrb[0].mxu0
        %2902 = vdwg.mxu0
        %v2904 = vsel %vm2551, %v2669, 0
        %v2907 = vsel %vm2675, %v2194, 0
        %2909 = vmatprep.subr.bf16.mxu0 0
        %2910 = vmatpush1.bf16.msra.mxu0 %v2907
        %2911 = vmatprep.subr.bf16.mxu0 0
        %2912 = vmatpush1.bf16.msra.mxu0 0
        %2913 = vmatprep.subr.bf16.mxu0 0
        %2914 = vmatpush1.bf16.msra.mxu0 0
        %2915 = vmatprep.subr.bf16.mxu0 0
        %2916 = vmatpush1.bf16.msra.mxu0 0
        %2917 = vmatprep.subr.bf16.mxu0 0
        %2918 = vmatpush1.bf16.msra.mxu0 0
        %2919 = vmatprep.subr.bf16.mxu0 0
        %2920 = vmatpush1.bf16.msra.mxu0 0
        %2921 = vmatprep.subr.bf16.mxu0 0
        %2922 = vmatpush1.bf16.msra.mxu0 0
        %2923 = vmatprep.subr.bf16.mxu0 0
        %2924 = vmatpush1.bf16.msra.mxu0 0
        %2925 = vmatprep.subr.bf16.mxu0 0
        %2926 = vmatpush1.bf16.msra.mxu0 0
        %2927 = vmatprep.subr.bf16.mxu0 0
        %2928 = vmatpush1.bf16.msra.mxu0 0
        %2929 = vmatprep.subr.bf16.mxu0 0
        %2930 = vmatpush1.bf16.msra.mxu0 0
        %2931 = vmatprep.subr.bf16.mxu0 0
        %2932 = vmatpush1.bf16.msra.mxu0 0
        %2933 = vmatprep.subr.bf16.mxu0 0
        %2934 = vmatpush1.bf16.msra.mxu0 0
        %2935 = vmatprep.subr.bf16.mxu0 0
        %2936 = vmatpush1.bf16.msra.mxu0 0
        %2937 = vmatprep.subr.bf16.mxu0 0
        %2938 = vmatpush1.bf16.msra.mxu0 0
        %2939 = vmatprep.subr.bf16.mxu0 0
        %2940 = vmatpush1.bf16.msra.mxu0 0
        %2941 = vmatprep.mubr.bf16.mxu0 0
        %2942 = vmatmul.mubr.bf16.gmra.mrb[0].mxu0 %v2904
        %v2943 = vpop.f32.mrb[0].mxu0
        %v2944 = vadd.f32 0.0, %v2943
        %v2945 = vpop.f32.mrb[0].mxu0
        %v2946 = vpop.f32.mrb[0].mxu0
        %v2947 = vpop.f32.mrb[0].mxu0
        %2948 = vdwg.mxu0
        %v2950 = vsel %vm2551, %v2670, 0
        %v2953 = vsel %vm2675, %v2195, 0
        %2955 = vmatprep.subr.bf16.mxu0 0
        %2956 = vmatpush1.bf16.msra.mxu0 %v2953
        %2957 = vmatprep.subr.bf16.mxu0 0
        %2958 = vmatpush1.bf16.msra.mxu0 0
        %2959 = vmatprep.subr.bf16.mxu0 0
        %2960 = vmatpush1.bf16.msra.mxu0 0
        %2961 = vmatprep.subr.bf16.mxu0 0
        %2962 = vmatpush1.bf16.msra.mxu0 0
        %2963 = vmatprep.subr.bf16.mxu0 0
        %2964 = vmatpush1.bf16.msra.mxu0 0
        %2965 = vmatprep.subr.bf16.mxu0 0
        %2966 = vmatpush1.bf16.msra.mxu0 0
        %2967 = vmatprep.subr.bf16.mxu0 0
        %2968 = vmatpush1.bf16.msra.mxu0 0
        %2969 = vmatprep.subr.bf16.mxu0 0
        %2970 = vmatpush1.bf16.msra.mxu0 0
        %2971 = vmatprep.subr.bf16.mxu0 0
        %2972 = vmatpush1.bf16.msra.mxu0 0
        %2973 = vmatprep.subr.bf16.mxu0 0
        %2974 = vmatpush1.bf16.msra.mxu0 0
        %2975 = vmatprep.subr.bf16.mxu0 0
        %2976 = vmatpush1.bf16.msra.mxu0 0
        %2977 = vmatprep.subr.bf16.mxu0 0
        %2978 = vmatpush1.bf16.msra.mxu0 0
        %2979 = vmatprep.subr.bf16.mxu0 0
        %2980 = vmatpush1.bf16.msra.mxu0 0
        %2981 = vmatprep.subr.bf16.mxu0 0
        %2982 = vmatpush1.bf16.msra.mxu0 0
        %2983 = vmatprep.subr.bf16.mxu0 0
        %2984 = vmatpush1.bf16.msra.mxu0 0
        %2985 = vmatprep.subr.bf16.mxu0 0
        %2986 = vmatpush1.bf16.msra.mxu0 0
        %2987 = vmatprep.mubr.bf16.mxu0 0
        %2988 = vmatmul.mubr.bf16.gmra.mrb[0].mxu0 %v2950
        %v2989 = vpop.f32.mrb[0].mxu0
        %v2990 = vadd.f32 0.0, %v2989
        %v2991 = vpop.f32.mrb[0].mxu0
        %v2992 = vpop.f32.mrb[0].mxu0
        %v2993 = vpop.f32.mrb[0].mxu0
        %2994 = vdwg.mxu0
        %v2996 = vsel %vm2551, %v2671, 0
        %v2999 = vsel %vm2675, %v2196, 0
        %3001 = vmatprep.subr.bf16.mxu0 0
        %3002 = vmatpush1.bf16.msra.mxu0 %v2999
        %3003 = vmatprep.subr.bf16.mxu0 0
        %3004 = vmatpush1.bf16.msra.mxu0 0
        %3005 = vmatprep.subr.bf16.mxu0 0
        %3006 = vmatpush1.bf16.msra.mxu0 0
        %3007 = vmatprep.subr.bf16.mxu0 0
        %3008 = vmatpush1.bf16.msra.mxu0 0
        %3009 = vmatprep.subr.bf16.mxu0 0
        %3010 = vmatpush1.bf16.msra.mxu0 0
        %3011 = vmatprep.subr.bf16.mxu0 0
        %3012 = vmatpush1.bf16.msra.mxu0 0
        %3013 = vmatprep.subr.bf16.mxu0 0
        %3014 = vmatpush1.bf16.msra.mxu0 0
        %3015 = vmatprep.subr.bf16.mxu0 0
        %3016 = vmatpush1.bf16.msra.mxu0 0
        %3017 = vmatprep.subr.bf16.mxu0 0
        %3018 = vmatpush1.bf16.msra.mxu0 0
        %3019 = vmatprep.subr.bf16.mxu0 0
        %3020 = vmatpush1.bf16.msra.mxu0 0
        %3021 = vmatprep.subr.bf16.mxu0 0
        %3022 = vmatpush1.bf16.msra.mxu0 0
        %3023 = vmatprep.subr.bf16.mxu0 0
        %3024 = vmatpush1.bf16.msra.mxu0 0
        %3025 = vmatprep.subr.bf16.mxu0 0
        %3026 = vmatpush1.bf16.msra.mxu0 0
        %3027 = vmatprep.subr.bf16.mxu0 0
        %3028 = vmatpush1.bf16.msra.mxu0 0
        %3029 = vmatprep.subr.bf16.mxu0 0
        %3030 = vmatpush1.bf16.msra.mxu0 0
        %3031 = vmatprep.subr.bf16.mxu0 0
        %3032 = vmatpush1.bf16.msra.mxu0 0
        %3033 = vmatprep.mubr.bf16.mxu0 0
        %3034 = vmatmul.mubr.bf16.gmra.mrb[0].mxu0 %v2996
        %v3035 = vpop.f32.mrb[0].mxu0
        %v3036 = vadd.f32 0.0, %v3035
        %v3037 = vpop.f32.mrb[0].mxu0
        %v3038 = vpop.f32.mrb[0].mxu0
        %v3039 = vpop.f32.mrb[0].mxu0
        %3040 = vdwg.mxu0
        %v3041 = vpack.c.bf16 %v2714, %v2714
        %v3042 = vpack.c.bf16 %v2760, %v2760
        %v3043 = vpack.c.bf16 %v2806, %v2806
        %v3044 = vpack.c.bf16 %v2852, %v2852
        %v3045 = vpack.c.bf16 %v2898, %v2898
        %v3046 = vpack.c.bf16 %v2944, %v2944
        %v3047 = vpack.c.bf16 %v2990, %v2990
        %v3048 = vpack.c.bf16 %v3036, %v3036
        %v3049 = vld [vmem:[#allocation8] sm:$0xf]
        %v3050 = vld [vmem:[#allocation8 + $0x4] sm:$0xf]
        %v3051 = vld [vmem:[#allocation8 + $0x8] sm:$0xf]
        %v3052 = vld [vmem:[#allocation8 + $0xc] sm:$0xf]
        %v3053 = vld [vmem:[#allocation8 + $0x10] sm:$0xf]
        %v3054 = vld [vmem:[#allocation8 + $0x14] sm:$0xf]
        %v3055 = vld [vmem:[#allocation8 + $0x18] sm:$0xf]
        %v3056 = vld [vmem:[#allocation8 + $0x1c] sm:$0xf]
        %v3057 = vld [vmem:[#allocation8 + $0x20] sm:$0xf]
        %v3058 = vld [vmem:[#allocation8 + $0x24] sm:$0xf]
        %v3059 = vld [vmem:[#allocation8 + $0x28] sm:$0xf]
        %v3060 = vld [vmem:[#allocation8 + $0x2c] sm:$0xf]
        %v3061 = vld [vmem:[#allocation8 + $0x30] sm:$0xf]
        %v3062 = vld [vmem:[#allocation8 + $0x34] sm:$0xf]
        %v3063 = vld [vmem:[#allocation8 + $0x38] sm:$0xf]
        %v3064 = vld [vmem:[#allocation8 + $0x3c] sm:$0xf]
        %v3065 = vld [vmem:[#allocation8 + $0x40] sm:$0xf]
        %v3066 = vld [vmem:[#allocation8 + $0x44] sm:$0xf]
        %v3067 = vld [vmem:[#allocation8 + $0x48] sm:$0xf]
        %v3068 = vld [vmem:[#allocation8 + $0x4c] sm:$0xf]
        %v3069 = vld [vmem:[#allocation8 + $0x50] sm:$0xf]
        %v3070 = vld [vmem:[#allocation8 + $0x54] sm:$0xf]
        %v3071 = vld [vmem:[#allocation8 + $0x58] sm:$0xf]
        %v3072 = vld [vmem:[#allocation8 + $0x5c] sm:$0xf]
        %v3073 = vld [vmem:[#allocation8 + $0x60] sm:$0xf]
        %v3074 = vld [vmem:[#allocation8 + $0x64] sm:$0xf]
        %v3075 = vld [vmem:[#allocation8 + $0x68] sm:$0xf]
        %v3076 = vld [vmem:[#allocation8 + $0x6c] sm:$0xf]
        %v3077 = vld [vmem:[#allocation8 + $0x70] sm:$0xf]
        %v3078 = vld [vmem:[#allocation8 + $0x74] sm:$0xf]
        %v3079 = vld [vmem:[#allocation8 + $0x78] sm:$0xf]
        %v3080 = vld [vmem:[#allocation8 + $0x7c] sm:$0xf]
        %v3081 = vld [vmem:[#allocation8 + $0x80] sm:$0xf]
        %v3082 = vld [vmem:[#allocation8 + $0x84] sm:$0xf]
        %v3083 = vld [vmem:[#allocation8 + $0x88] sm:$0xf]
        %v3084 = vld [vmem:[#allocation8 + $0x8c] sm:$0xf]
        %v3085 = vld [vmem:[#allocation8 + $0x90] sm:$0xf]
        %v3086 = vld [vmem:[#allocation8 + $0x94] sm:$0xf]
        %v3087 = vld [vmem:[#allocation8 + $0x98] sm:$0xf]
        %v3088 = vld [vmem:[#allocation8 + $0x9c] sm:$0xf]
        %v3089 = vld [vmem:[#allocation8 + $0xa0] sm:$0xf]
        %v3090 = vld [vmem:[#allocation8 + $0xa4] sm:$0xf]
        %v3091 = vld [vmem:[#allocation8 + $0xa8] sm:$0xf]
        %v3092 = vld [vmem:[#allocation8 + $0xac] sm:$0xf]
        %v3093 = vld [vmem:[#allocation8 + $0xb0] sm:$0xf]
        %v3094 = vld [vmem:[#allocation8 + $0xb4] sm:$0xf]
        %v3095 = vld [vmem:[#allocation8 + $0xb8] sm:$0xf]
        %v3096 = vld [vmem:[#allocation8 + $0xbc] sm:$0xf]
        %v3097 = vld [vmem:[#allocation8 + $0xc0] sm:$0xf]
        %v3098 = vld [vmem:[#allocation8 + $0xc4] sm:$0xf]
        %v3099 = vld [vmem:[#allocation8 + $0xc8] sm:$0xf]
        %v3100 = vld [vmem:[#allocation8 + $0xcc] sm:$0xf]
        %v3101 = vld [vmem:[#allocation8 + $0xd0] sm:$0xf]
        %v3102 = vld [vmem:[#allocation8 + $0xd4] sm:$0xf]
        %v3103 = vld [vmem:[#allocation8 + $0xd8] sm:$0xf]
        %v3104 = vld [vmem:[#allocation8 + $0xdc] sm:$0xf]
        %v3105 = vld [vmem:[#allocation8 + $0xe0] sm:$0xf]
        %v3106 = vld [vmem:[#allocation8 + $0xe4] sm:$0xf]
        %v3107 = vld [vmem:[#allocation8 + $0xe8] sm:$0xf]
        %v3108 = vld [vmem:[#allocation8 + $0xec] sm:$0xf]
        %v3109 = vld [vmem:[#allocation8 + $0xf0] sm:$0xf]
        %v3110 = vld [vmem:[#allocation8 + $0xf4] sm:$0xf]
        %v3111 = vld [vmem:[#allocation8 + $0xf8] sm:$0xf]
        %v3112 = vld [vmem:[#allocation8 + $0xfc] sm:$0xf]
        %v3113 = vld [vmem:[#allocation8 + $0x100] sm:$0xf]
        %v3114 = vld [vmem:[#allocation8 + $0x104] sm:$0xf]
        %v3115 = vld [vmem:[#allocation8 + $0x108] sm:$0xf]
        %v3116 = vld [vmem:[#allocation8 + $0x10c] sm:$0xf]
        %v3117 = vld [vmem:[#allocation8 + $0x110] sm:$0xf]
        %v3118 = vld [vmem:[#allocation8 + $0x114] sm:$0xf]
        %v3119 = vld [vmem:[#allocation8 + $0x118] sm:$0xf]
        %v3120 = vld [vmem:[#allocation8 + $0x11c] sm:$0xf]
        %v3121 = vld [vmem:[#allocation8 + $0x120] sm:$0xf]
        %v3122 = vld [vmem:[#allocation8 + $0x124] sm:$0xf]
        %v3123 = vld [vmem:[#allocation8 + $0x128] sm:$0xf]
        %v3124 = vld [vmem:[#allocation8 + $0x12c] sm:$0xf]
        %v3125 = vld [vmem:[#allocation8 + $0x130] sm:$0xf]
        %v3126 = vld [vmem:[#allocation8 + $0x134] sm:$0xf]
        %v3127 = vld [vmem:[#allocation8 + $0x138] sm:$0xf]
        %v3128 = vld [vmem:[#allocation8 + $0x13c] sm:$0xf]
        %v3129 = vld [vmem:[#allocation8 + $0x140] sm:$0xf]
        %v3130 = vld [vmem:[#allocation8 + $0x144] sm:$0xf]
        %v3131 = vld [vmem:[#allocation8 + $0x148] sm:$0xf]
        %v3132 = vld [vmem:[#allocation8 + $0x14c] sm:$0xf]
        %v3133 = vld [vmem:[#allocation8 + $0x150] sm:$0xf]
        %v3134 = vld [vmem:[#allocation8 + $0x154] sm:$0xf]
        %v3135 = vld [vmem:[#allocation8 + $0x158] sm:$0xf]
        %v3136 = vld [vmem:[#allocation8 + $0x15c] sm:$0xf]
        %v3137 = vld [vmem:[#allocation8 + $0x160] sm:$0xf]
        %v3138 = vld [vmem:[#allocation8 + $0x164] sm:$0xf]
        %v3139 = vld [vmem:[#allocation8 + $0x168] sm:$0xf]
        %v3140 = vld [vmem:[#allocation8 + $0x16c] sm:$0xf]
        %v3141 = vld [vmem:[#allocation8 + $0x170] sm:$0xf]
        %v3142 = vld [vmem:[#allocation8 + $0x174] sm:$0xf]
        %v3143 = vld [vmem:[#allocation8 + $0x178] sm:$0xf]
        %v3144 = vld [vmem:[#allocation8 + $0x17c] sm:$0xf]
        %v3145 = vld [vmem:[#allocation8 + $0x180] sm:$0xf]
        %v3146 = vld [vmem:[#allocation8 + $0x184] sm:$0xf]
        %v3147 = vld [vmem:[#allocation8 + $0x188] sm:$0xf]
        %v3148 = vld [vmem:[#allocation8 + $0x18c] sm:$0xf]
        %v3149 = vld [vmem:[#allocation8 + $0x190] sm:$0xf]
        %v3150 = vld [vmem:[#allocation8 + $0x194] sm:$0xf]
        %v3151 = vld [vmem:[#allocation8 + $0x198] sm:$0xf]
        %v3152 = vld [vmem:[#allocation8 + $0x19c] sm:$0xf]
        %v3153 = vld [vmem:[#allocation8 + $0x1a0] sm:$0xf]
        %v3154 = vld [vmem:[#allocation8 + $0x1a4] sm:$0xf]
        %v3155 = vld [vmem:[#allocation8 + $0x1a8] sm:$0xf]
        %v3156 = vld [vmem:[#allocation8 + $0x1ac] sm:$0xf]
        %v3157 = vld [vmem:[#allocation8 + $0x1b0] sm:$0xf]
        %v3158 = vld [vmem:[#allocation8 + $0x1b4] sm:$0xf]
        %v3159 = vld [vmem:[#allocation8 + $0x1b8] sm:$0xf]
        %v3160 = vld [vmem:[#allocation8 + $0x1bc] sm:$0xf]
        %v3161 = vld [vmem:[#allocation8 + $0x1c0] sm:$0xf]
        %v3162 = vld [vmem:[#allocation8 + $0x1c4] sm:$0xf]
        %v3163 = vld [vmem:[#allocation8 + $0x1c8] sm:$0xf]
        %v3164 = vld [vmem:[#allocation8 + $0x1cc] sm:$0xf]
        %v3165 = vld [vmem:[#allocation8 + $0x1d0] sm:$0xf]
        %v3166 = vld [vmem:[#allocation8 + $0x1d4] sm:$0xf]
        %v3167 = vld [vmem:[#allocation8 + $0x1d8] sm:$0xf]
        %v3168 = vld [vmem:[#allocation8 + $0x1dc] sm:$0xf]
        %v3169 = vld [vmem:[#allocation8 + $0x1e0] sm:$0xf]
        %v3170 = vld [vmem:[#allocation8 + $0x1e4] sm:$0xf]
        %v3171 = vld [vmem:[#allocation8 + $0x1e8] sm:$0xf]
        %v3172 = vld [vmem:[#allocation8 + $0x1ec] sm:$0xf]
        %v3173 = vld [vmem:[#allocation8 + $0x1f0] sm:$0xf]
        %v3174 = vld [vmem:[#allocation8 + $0x1f4] sm:$0xf]
        %v3175 = vld [vmem:[#allocation8 + $0x1f8] sm:$0xf]
        %v3176 = vld [vmem:[#allocation8 + $0x1fc] sm:$0xf]
        %v3305 = vunpack.c.l.b16 %v3049
        %v3306 = vunpack.c.l.b16 %v3050
        %v3307 = vunpack.c.l.b16 %v3051
        %v3308 = vunpack.c.l.b16 %v3052
        %v3309 = vunpack.c.l.b16 %v3053
        %v3310 = vunpack.c.l.b16 %v3054
        %v3311 = vunpack.c.l.b16 %v3055
        %v3312 = vunpack.c.l.b16 %v3056
        %v3313 = vunpack.c.l.b16 %v3057
        %v3314 = vunpack.c.l.b16 %v3058
        %v3315 = vunpack.c.l.b16 %v3059
        %v3316 = vunpack.c.l.b16 %v3060
        %v3317 = vunpack.c.l.b16 %v3061
        %v3318 = vunpack.c.l.b16 %v3062
        %v3319 = vunpack.c.l.b16 %v3063
        %v3320 = vunpack.c.l.b16 %v3064
        %v3321 = vunpack.c.l.b16 %v3065
        %v3322 = vunpack.c.l.b16 %v3066
        %v3323 = vunpack.c.l.b16 %v3067
        %v3324 = vunpack.c.l.b16 %v3068
        %v3325 = vunpack.c.l.b16 %v3069
        %v3326 = vunpack.c.l.b16 %v3070
        %v3327 = vunpack.c.l.b16 %v3071
        %v3328 = vunpack.c.l.b16 %v3072
        %v3329 = vunpack.c.l.b16 %v3073
        %v3330 = vunpack.c.l.b16 %v3074
        %v3331 = vunpack.c.l.b16 %v3075
        %v3332 = vunpack.c.l.b16 %v3076
        %v3333 = vunpack.c.l.b16 %v3077
        %v3334 = vunpack.c.l.b16 %v3078
        %v3335 = vunpack.c.l.b16 %v3079
        %v3336 = vunpack.c.l.b16 %v3080
        %v3337 = vunpack.c.l.b16 %v3081
        %v3338 = vunpack.c.l.b16 %v3082
        %v3339 = vunpack.c.l.b16 %v3083
        %v3340 = vunpack.c.l.b16 %v3084
        %v3341 = vunpack.c.l.b16 %v3085
        %v3342 = vunpack.c.l.b16 %v3086
        %v3343 = vunpack.c.l.b16 %v3087
        %v3344 = vunpack.c.l.b16 %v3088
        %v3345 = vunpack.c.l.b16 %v3089
        %v3346 = vunpack.c.l.b16 %v3090
        %v3347 = vunpack.c.l.b16 %v3091
        %v3348 = vunpack.c.l.b16 %v3092
        %v3349 = vunpack.c.l.b16 %v3093
        %v3350 = vunpack.c.l.b16 %v3094
        %v3351 = vunpack.c.l.b16 %v3095
        %v3352 = vunpack.c.l.b16 %v3096
        %v3353 = vunpack.c.l.b16 %v3097
        %v3354 = vunpack.c.l.b16 %v3098
        %v3355 = vunpack.c.l.b16 %v3099
        %v3356 = vunpack.c.l.b16 %v3100
        %v3357 = vunpack.c.l.b16 %v3101
        %v3358 = vunpack.c.l.b16 %v3102
        %v3359 = vunpack.c.l.b16 %v3103
        %v3360 = vunpack.c.l.b16 %v3104
        %v3361 = vunpack.c.l.b16 %v3105
        %v3362 = vunpack.c.l.b16 %v3106
        %v3363 = vunpack.c.l.b16 %v3107
        %v3364 = vunpack.c.l.b16 %v3108
        %v3365 = vunpack.c.l.b16 %v3109
        %v3366 = vunpack.c.l.b16 %v3110
        %v3367 = vunpack.c.l.b16 %v3111
        %v3368 = vunpack.c.l.b16 %v3112
        %v3369 = vunpack.c.l.b16 %v3113
        %v3370 = vunpack.c.l.b16 %v3114
        %v3371 = vunpack.c.l.b16 %v3115
        %v3372 = vunpack.c.l.b16 %v3116
        %v3373 = vunpack.c.l.b16 %v3117
        %v3374 = vunpack.c.l.b16 %v3118
        %v3375 = vunpack.c.l.b16 %v3119
        %v3376 = vunpack.c.l.b16 %v3120
        %v3377 = vunpack.c.l.b16 %v3121
        %v3378 = vunpack.c.l.b16 %v3122
        %v3379 = vunpack.c.l.b16 %v3123
        %v3380 = vunpack.c.l.b16 %v3124
        %v3381 = vunpack.c.l.b16 %v3125
        %v3382 = vunpack.c.l.b16 %v3126
        %v3383 = vunpack.c.l.b16 %v3127
        %v3384 = vunpack.c.l.b16 %v3128
        %v3385 = vunpack.c.l.b16 %v3129
        %v3386 = vunpack.c.l.b16 %v3130
        %v3387 = vunpack.c.l.b16 %v3131
        %v3388 = vunpack.c.l.b16 %v3132
        %v3389 = vunpack.c.l.b16 %v3133
        %v3390 = vunpack.c.l.b16 %v3134
        %v3391 = vunpack.c.l.b16 %v3135
        %v3392 = vunpack.c.l.b16 %v3136
        %v3393 = vunpack.c.l.b16 %v3137
        %v3394 = vunpack.c.l.b16 %v3138
        %v3395 = vunpack.c.l.b16 %v3139
        %v3396 = vunpack.c.l.b16 %v3140
        %v3397 = vunpack.c.l.b16 %v3141
        %v3398 = vunpack.c.l.b16 %v3142
        %v3399 = vunpack.c.l.b16 %v3143
        %v3400 = vunpack.c.l.b16 %v3144
        %v3401 = vunpack.c.l.b16 %v3145
        %v3402 = vunpack.c.l.b16 %v3146
        %v3403 = vunpack.c.l.b16 %v3147
        %v3404 = vunpack.c.l.b16 %v3148
        %v3405 = vunpack.c.l.b16 %v3149
        %v3406 = vunpack.c.l.b16 %v3150
        %v3407 = vunpack.c.l.b16 %v3151
        %v3408 = vunpack.c.l.b16 %v3152
        %v3409 = vunpack.c.l.b16 %v3153
        %v3410 = vunpack.c.l.b16 %v3154
        %v3411 = vunpack.c.l.b16 %v3155
        %v3412 = vunpack.c.l.b16 %v3156
        %v3413 = vunpack.c.l.b16 %v3157
        %v3414 = vunpack.c.l.b16 %v3158
        %v3415 = vunpack.c.l.b16 %v3159
        %v3416 = vunpack.c.l.b16 %v3160
        %v3417 = vunpack.c.l.b16 %v3161
        %v3418 = vunpack.c.l.b16 %v3162
        %v3419 = vunpack.c.l.b16 %v3163
        %v3420 = vunpack.c.l.b16 %v3164
        %v3421 = vunpack.c.l.b16 %v3165
        %v3422 = vunpack.c.l.b16 %v3166
        %v3423 = vunpack.c.l.b16 %v3167
        %v3424 = vunpack.c.l.b16 %v3168
        %v3425 = vunpack.c.l.b16 %v3169
        %v3426 = vunpack.c.l.b16 %v3170
        %v3427 = vunpack.c.l.b16 %v3171
        %v3428 = vunpack.c.l.b16 %v3172
        %v3429 = vunpack.c.l.b16 %v3173
        %v3430 = vunpack.c.l.b16 %v3174
        %v3431 = vunpack.c.l.b16 %v3175
        %v3432 = vunpack.c.l.b16 %v3176
        %v3433 = vpack.c.b16 %v3306, %v3305
        %v3434 = vpack.c.b16 %v3308, %v3307
        %v3435 = vpack.c.b16 %v3310, %v3309
        %v3436 = vpack.c.b16 %v3312, %v3311
        %v3437 = vpack.c.b16 %v3314, %v3313
        %v3438 = vpack.c.b16 %v3316, %v3315
        %v3439 = vpack.c.b16 %v3318, %v3317
        %v3440 = vpack.c.b16 %v3320, %v3319
        %v3441 = vpack.c.b16 %v3322, %v3321
        %v3442 = vpack.c.b16 %v3324, %v3323
        %v3443 = vpack.c.b16 %v3326, %v3325
        %v3444 = vpack.c.b16 %v3328, %v3327
        %v3445 = vpack.c.b16 %v3330, %v3329
        %v3446 = vpack.c.b16 %v3332, %v3331
        %v3447 = vpack.c.b16 %v3334, %v3333
        %v3448 = vpack.c.b16 %v3336, %v3335
        %v3449 = vpack.c.b16 %v3338, %v3337
        %v3450 = vpack.c.b16 %v3340, %v3339
        %v3451 = vpack.c.b16 %v3342, %v3341
        %v3452 = vpack.c.b16 %v3344, %v3343
        %v3453 = vpack.c.b16 %v3346, %v3345
        %v3454 = vpack.c.b16 %v3348, %v3347
        %v3455 = vpack.c.b16 %v3350, %v3349
        %v3456 = vpack.c.b16 %v3352, %v3351
        %v3457 = vpack.c.b16 %v3354, %v3353
        %v3458 = vpack.c.b16 %v3356, %v3355
        %v3459 = vpack.c.b16 %v3358, %v3357
        %v3460 = vpack.c.b16 %v3360, %v3359
        %v3461 = vpack.c.b16 %v3362, %v3361
        %v3462 = vpack.c.b16 %v3364, %v3363
        %v3463 = vpack.c.b16 %v3366, %v3365
        %v3464 = vpack.c.b16 %v3368, %v3367
        %v3465 = vpack.c.b16 %v3370, %v3369
        %v3466 = vpack.c.b16 %v3372, %v3371
        %v3467 = vpack.c.b16 %v3374, %v3373
        %v3468 = vpack.c.b16 %v3376, %v3375
        %v3469 = vpack.c.b16 %v3378, %v3377
        %v3470 = vpack.c.b16 %v3380, %v3379
        %v3471 = vpack.c.b16 %v3382, %v3381
        %v3472 = vpack.c.b16 %v3384, %v3383
        %v3473 = vpack.c.b16 %v3386, %v3385
        %v3474 = vpack.c.b16 %v3388, %v3387
        %v3475 = vpack.c.b16 %v3390, %v3389
        %v3476 = vpack.c.b16 %v3392, %v3391
        %v3477 = vpack.c.b16 %v3394, %v3393
        %v3478 = vpack.c.b16 %v3396, %v3395
        %v3479 = vpack.c.b16 %v3398, %v3397
        %v3480 = vpack.c.b16 %v3400, %v3399
        %v3481 = vpack.c.b16 %v3402, %v3401
        %v3482 = vpack.c.b16 %v3404, %v3403
        %v3483 = vpack.c.b16 %v3406, %v3405
        %v3484 = vpack.c.b16 %v3408, %v3407
        %v3485 = vpack.c.b16 %v3410, %v3409
        %v3486 = vpack.c.b16 %v3412, %v3411
        %v3487 = vpack.c.b16 %v3414, %v3413
        %v3488 = vpack.c.b16 %v3416, %v3415
        %v3489 = vpack.c.b16 %v3418, %v3417
        %v3490 = vpack.c.b16 %v3420, %v3419
        %v3491 = vpack.c.b16 %v3422, %v3421
        %v3492 = vpack.c.b16 %v3424, %v3423
        %v3493 = vpack.c.b16 %v3426, %v3425
        %v3494 = vpack.c.b16 %v3428, %v3427
        %v3495 = vpack.c.b16 %v3430, %v3429
        %v3496 = vpack.c.b16 %v3432, %v3431
        %3561 = vmatprep.subr.bf16.mxu0 0
        %3562 = vmatpush1.bf16.msra.mxu0 %v3433
        %3563 = vmatprep.subr.bf16.mxu0 0
        %3564 = vmatpush1.bf16.msra.mxu0 %v3434
        %3565 = vmatprep.subr.bf16.mxu0 0
        %3566 = vmatpush1.bf16.msra.mxu0 %v3435
        %3567 = vmatprep.subr.bf16.mxu0 0
        %3568 = vmatpush1.bf16.msra.mxu0 %v3436
        %3569 = vmatprep.subr.bf16.mxu0 0
        %3570 = vmatpush1.bf16.msra.mxu0 %v3437
        %3571 = vmatprep.subr.bf16.mxu0 0
        %3572 = vmatpush1.bf16.msra.mxu0 %v3438
        %3573 = vmatprep.subr.bf16.mxu0 0
        %3574 = vmatpush1.bf16.msra.mxu0 %v3439
        %3575 = vmatprep.subr.bf16.mxu0 0
        %3576 = vmatpush1.bf16.msra.mxu0 %v3440
        %3577 = vmatprep.subr.bf16.mxu0 0
        %3578 = vmatpush1.bf16.msra.mxu0 %v3441
        %3579 = vmatprep.subr.bf16.mxu0 0
        %3580 = vmatpush1.bf16.msra.mxu0 %v3442
        %3581 = vmatprep.subr.bf16.mxu0 0
        %3582 = vmatpush1.bf16.msra.mxu0 %v3443
        %3583 = vmatprep.subr.bf16.mxu0 0
        %3584 = vmatpush1.bf16.msra.mxu0 %v3444
        %3585 = vmatprep.subr.bf16.mxu0 0
        %3586 = vmatpush1.bf16.msra.mxu0 %v3445
        %3587 = vmatprep.subr.bf16.mxu0 0
        %3588 = vmatpush1.bf16.msra.mxu0 %v3446
        %3589 = vmatprep.subr.bf16.mxu0 0
        %3590 = vmatpush1.bf16.msra.mxu0 %v3447
        %3591 = vmatprep.subr.bf16.mxu0 0
        %3592 = vmatpush1.bf16.msra.mxu0 %v3448
        %3593 = vmatprep.mubr.bf16.mxu0 %v3042
        %3594 = vmatmul.mubr.bf16.gmra.mrb[0].mxu0 %v3041
        %v3595 = vpop.f32.mrb[0].mxu0
        %v3596 = vadd.f32 0.0, %v3595
        %v3597 = vpop.f32.mrb[0].mxu0
        %v3598 = vpop.f32.mrb[0].mxu0
        %v3599 = vpop.f32.mrb[0].mxu0
        %3600 = vdwg.mxu0
        %3601 = vmatprep.subr.bf16.mxu0 0
        %3602 = vmatpush1.bf16.msra.mxu0 %v3449
        %3603 = vmatprep.subr.bf16.mxu0 0
        %3604 = vmatpush1.bf16.msra.mxu0 %v3450
        %3605 = vmatprep.subr.bf16.mxu0 0
        %3606 = vmatpush1.bf16.msra.mxu0 %v3451
        %3607 = vmatprep.subr.bf16.mxu0 0
        %3608 = vmatpush1.bf16.msra.mxu0 %v3452
        %3609 = vmatprep.subr.bf16.mxu0 0
        %3610 = vmatpush1.bf16.msra.mxu0 %v3453
        %3611 = vmatprep.subr.bf16.mxu0 0
        %3612 = vmatpush1.bf16.msra.mxu0 %v3454
        %3613 = vmatprep.subr.bf16.mxu0 0
        %3614 = vmatpush1.bf16.msra.mxu0 %v3455
        %3615 = vmatprep.subr.bf16.mxu0 0
        %3616 = vmatpush1.bf16.msra.mxu0 %v3456
        %3617 = vmatprep.subr.bf16.mxu0 0
        %3618 = vmatpush1.bf16.msra.mxu0 %v3457
        %3619 = vmatprep.subr.bf16.mxu0 0
        %3620 = vmatpush1.bf16.msra.mxu0 %v3458
        %3621 = vmatprep.subr.bf16.mxu0 0
        %3622 = vmatpush1.bf16.msra.mxu0 %v3459
        %3623 = vmatprep.subr.bf16.mxu0 0
        %3624 = vmatpush1.bf16.msra.mxu0 %v3460
        %3625 = vmatprep.subr.bf16.mxu0 0
        %3626 = vmatpush1.bf16.msra.mxu0 %v3461
        %3627 = vmatprep.subr.bf16.mxu0 0
        %3628 = vmatpush1.bf16.msra.mxu0 %v3462
        %3629 = vmatprep.subr.bf16.mxu0 0
        %3630 = vmatpush1.bf16.msra.mxu0 %v3463
        %3631 = vmatprep.subr.bf16.mxu0 0
        %3632 = vmatpush1.bf16.msra.mxu0 %v3464
        %3633 = vmatprep.mubr.bf16.mxu0 %v3044
        %3634 = vmatmul.mubr.bf16.gmra.mrb[0].mxu0 %v3043
        %v3635 = vpop.f32.mrb[0].mxu0
        %v3636 = vadd.f32 %v3596, %v3635
        %v3637 = vpop.f32.mrb[0].mxu0
        %v3638 = vpop.f32.mrb[0].mxu0
        %v3639 = vpop.f32.mrb[0].mxu0
        %3640 = vdwg.mxu0
        %3641 = vmatprep.subr.bf16.mxu0 0
        %3642 = vmatpush1.bf16.msra.mxu0 %v3465
        %3643 = vmatprep.subr.bf16.mxu0 0
        %3644 = vmatpush1.bf16.msra.mxu0 %v3466
        %3645 = vmatprep.subr.bf16.mxu0 0
        %3646 = vmatpush1.bf16.msra.mxu0 %v3467
        %3647 = vmatprep.subr.bf16.mxu0 0
        %3648 = vmatpush1.bf16.msra.mxu0 %v3468
        %3649 = vmatprep.subr.bf16.mxu0 0
        %3650 = vmatpush1.bf16.msra.mxu0 %v3469
        %3651 = vmatprep.subr.bf16.mxu0 0
        %3652 = vmatpush1.bf16.msra.mxu0 %v3470
        %3653 = vmatprep.subr.bf16.mxu0 0
        %3654 = vmatpush1.bf16.msra.mxu0 %v3471
        %3655 = vmatprep.subr.bf16.mxu0 0
        %3656 = vmatpush1.bf16.msra.mxu0 %v3472
        %3657 = vmatprep.subr.bf16.mxu0 0
        %3658 = vmatpush1.bf16.msra.mxu0 %v3473
        %3659 = vmatprep.subr.bf16.mxu0 0
        %3660 = vmatpush1.bf16.msra.mxu0 %v3474
        %3661 = vmatprep.subr.bf16.mxu0 0
        %3662 = vmatpush1.bf16.msra.mxu0 %v3475
        %3663 = vmatprep.subr.bf16.mxu0 0
        %3664 = vmatpush1.bf16.msra.mxu0 %v3476
        %3665 = vmatprep.subr.bf16.mxu0 0
        %3666 = vmatpush1.bf16.msra.mxu0 %v3477
        %3667 = vmatprep.subr.bf16.mxu0 0
        %3668 = vmatpush1.bf16.msra.mxu0 %v3478
        %3669 = vmatprep.subr.bf16.mxu0 0
        %3670 = vmatpush1.bf16.msra.mxu0 %v3479
        %3671 = vmatprep.subr.bf16.mxu0 0
        %3672 = vmatpush1.bf16.msra.mxu0 %v3480
        %3673 = vmatprep.mubr.bf16.mxu0 %v3046
        %3674 = vmatmul.mubr.bf16.gmra.mrb[0].mxu0 %v3045
        %v3675 = vpop.f32.mrb[0].mxu0
        %v3676 = vadd.f32 %v3636, %v3675
        %v3677 = vpop.f32.mrb[0].mxu0
        %v3678 = vpop.f32.mrb[0].mxu0
        %v3679 = vpop.f32.mrb[0].mxu0
        %3680 = vdwg.mxu0
        %3681 = vmatprep.subr.bf16.mxu0 0
        %3682 = vmatpush1.bf16.msra.mxu0 %v3481
        %3683 = vmatprep.subr.bf16.mxu0 0
        %3684 = vmatpush1.bf16.msra.mxu0 %v3482
        %3685 = vmatprep.subr.bf16.mxu0 0
        %3686 = vmatpush1.bf16.msra.mxu0 %v3483
        %3687 = vmatprep.subr.bf16.mxu0 0
        %3688 = vmatpush1.bf16.msra.mxu0 %v3484
        %3689 = vmatprep.subr.bf16.mxu0 0
        %3690 = vmatpush1.bf16.msra.mxu0 %v3485
        %3691 = vmatprep.subr.bf16.mxu0 0
        %3692 = vmatpush1.bf16.msra.mxu0 %v3486
        %3693 = vmatprep.subr.bf16.mxu0 0
        %3694 = vmatpush1.bf16.msra.mxu0 %v3487
        %3695 = vmatprep.subr.bf16.mxu0 0
        %3696 = vmatpush1.bf16.msra.mxu0 %v3488
        %3697 = vmatprep.subr.bf16.mxu0 0
        %3698 = vmatpush1.bf16.msra.mxu0 %v3489
        %3699 = vmatprep.subr.bf16.mxu0 0
        %3700 = vmatpush1.bf16.msra.mxu0 %v3490
        %3701 = vmatprep.subr.bf16.mxu0 0
        %3702 = vmatpush1.bf16.msra.mxu0 %v3491
        %3703 = vmatprep.subr.bf16.mxu0 0
        %3704 = vmatpush1.bf16.msra.mxu0 %v3492
        %3705 = vmatprep.subr.bf16.mxu0 0
        %3706 = vmatpush1.bf16.msra.mxu0 %v3493
        %3707 = vmatprep.subr.bf16.mxu0 0
        %3708 = vmatpush1.bf16.msra.mxu0 %v3494
        %3709 = vmatprep.subr.bf16.mxu0 0
        %3710 = vmatpush1.bf16.msra.mxu0 %v3495
        %3711 = vmatprep.subr.bf16.mxu0 0
        %3712 = vmatpush1.bf16.msra.mxu0 %v3496
        %3713 = vmatprep.mubr.bf16.mxu0 %v3048
        %3714 = vmatmul.mubr.bf16.gmra.mrb[0].mxu0 %v3047
        %v3715 = vpop.f32.mrb[0].mxu0
        %v3716 = vadd.f32 %v3676, %v3715
        %v3717 = vpop.f32.mrb[0].mxu0
        %v3718 = vpop.f32.mrb[0].mxu0
        %v3719 = vpop.f32.mrb[0].mxu0
        %3720 = vdwg.mxu0
        %v3721 = vadd.f32 %v525, %v3716
        %3722 = vadd.xlane.f32.xlu0 %v3721
        %v3723 = vpop.xlane.xlu0 %3722
        %v3724 = vrcp.pop 128.0
        %v3725 = vmul.f32 %v3723, %v3724
        %v3726 = vsub.f32 %v3721, %v3725
        %v3727 = vmul.f32 %v3726, %v3726
        %3728 = vadd.xlane.f32.xlu0 %v3727
        %v3729 = vpop.xlane.xlu0 %3728
        %v3730 = vmul.f32 %v3729, %v3724
        %v3731 = vadd.f32 %v3730, 1e-05
        %v3732 = vrsqrt.pop %v3731
        %v3733 = vmul.f32 %v3726, %v3732
        %v3734 = vld [vmem:[%s4] sm:$0x1]
        %v3736 = vlaneseq
        %v3737 = vshrl.u32 %v3736, 7
        %v3738 = vsub.s32 0, %v3737
        %v3739 = vrot.slane %v3734, %v3738
        %v3741 = vmul.f32 %v3733, %v3739
        %v3742 = vld [vmem:[%s5] sm:$0x1]
        %v3744 = vlaneseq
        %v3745 = vshrl.u32 %v3744, 7
        %v3746 = vsub.s32 0, %v3745
        %v3747 = vrot.slane %v3742, %v3746
        %v3749 = vadd.f32 %v3741, %v3747
        %v3750 = vpack.c.bf16 %v3749, %v3749
        %v3751 = vld [vmem:[#allocation10] sm:$0xff]
        %v3752 = vld [vmem:[#allocation10 + $0x8] sm:$0xff]
        %v3753 = vld [vmem:[#allocation10 + $0x10] sm:$0xff]
        %v3754 = vld [vmem:[#allocation10 + $0x18] sm:$0xff]
        %v3755 = vld [vmem:[#allocation10 + $0x20] sm:$0xff]
        %v3756 = vld [vmem:[#allocation10 + $0x28] sm:$0xff]
        %v3757 = vld [vmem:[#allocation10 + $0x30] sm:$0xff]
        %v3758 = vld [vmem:[#allocation10 + $0x38] sm:$0xff]
        %v3759 = vld [vmem:[#allocation10 + $0x40] sm:$0xff]
        %v3760 = vld [vmem:[#allocation10 + $0x48] sm:$0xff]
        %v3761 = vld [vmem:[#allocation10 + $0x50] sm:$0xff]
        %v3762 = vld [vmem:[#allocation10 + $0x58] sm:$0xff]
        %v3763 = vld [vmem:[#allocation10 + $0x60] sm:$0xff]
        %v3764 = vld [vmem:[#allocation10 + $0x68] sm:$0xff]
        %v3765 = vld [vmem:[#allocation10 + $0x70] sm:$0xff]
        %v3766 = vld [vmem:[#allocation10 + $0x78] sm:$0xff]
        %v3767 = vld [vmem:[#allocation10 + $0x80] sm:$0xff]
        %v3768 = vld [vmem:[#allocation10 + $0x88] sm:$0xff]
        %v3769 = vld [vmem:[#allocation10 + $0x90] sm:$0xff]
        %v3770 = vld [vmem:[#allocation10 + $0x98] sm:$0xff]
        %v3771 = vld [vmem:[#allocation10 + $0xa0] sm:$0xff]
        %v3772 = vld [vmem:[#allocation10 + $0xa8] sm:$0xff]
        %v3773 = vld [vmem:[#allocation10 + $0xb0] sm:$0xff]
        %v3774 = vld [vmem:[#allocation10 + $0xb8] sm:$0xff]
        %v3775 = vld [vmem:[#allocation10 + $0xc0] sm:$0xff]
        %v3776 = vld [vmem:[#allocation10 + $0xc8] sm:$0xff]
        %v3777 = vld [vmem:[#allocation10 + $0xd0] sm:$0xff]
        %v3778 = vld [vmem:[#allocation10 + $0xd8] sm:$0xff]
        %v3779 = vld [vmem:[#allocation10 + $0xe0] sm:$0xff]
        %v3780 = vld [vmem:[#allocation10 + $0xe8] sm:$0xff]
        %v3781 = vld [vmem:[#allocation10 + $0xf0] sm:$0xff]
        %v3782 = vld [vmem:[#allocation10 + $0xf8] sm:$0xff]
        %v3783 = vld [vmem:[%s7] sm:$0xf]
        %v3785 = vlaneseq
        %v3786 = vshrl.u32 %v3785, 7
        %v3787 = vsub.s32 0, %v3786
        %v3788 = vrot.slane %v3783, %v3787
        %v3789 = vlaneseq
        %v3790 = vshrl.u32 %v3789, 7
        %v3791 = vsub.s32 1, %v3790
        %v3792 = vrot.slane %v3783, %v3791
        %v3793 = vlaneseq
        %v3794 = vshrl.u32 %v3793, 7
        %v3795 = vsub.s32 2, %v3794
        %v3796 = vrot.slane %v3783, %v3795
        %v3797 = vlaneseq
        %v3798 = vshrl.u32 %v3797, 7
        %v3799 = vsub.s32 3, %v3798
        %v3800 = vrot.slane %v3783, %v3799
        %v3837 = vunpack.c.l.b16 %v3751
        %v3838 = vunpack.c.h.b16 %v3751
        %v3839 = vunpack.c.l.b16 %v3752
        %v3840 = vunpack.c.h.b16 %v3752
        %v3841 = vunpack.c.l.b16 %v3753
        %v3842 = vunpack.c.h.b16 %v3753
        %v3843 = vunpack.c.l.b16 %v3754
        %v3844 = vunpack.c.h.b16 %v3754
        %v3845 = vunpack.c.l.b16 %v3755
        %v3846 = vunpack.c.h.b16 %v3755
        %v3847 = vunpack.c.l.b16 %v3756
        %v3848 = vunpack.c.h.b16 %v3756
        %v3849 = vunpack.c.l.b16 %v3757
        %v3850 = vunpack.c.h.b16 %v3757
        %v3851 = vunpack.c.l.b16 %v3758
        %v3852 = vunpack.c.h.b16 %v3758
        %v3853 = vunpack.c.l.b16 %v3759
        %v3854 = vunpack.c.h.b16 %v3759
        %v3855 = vunpack.c.l.b16 %v3760
        %v3856 = vunpack.c.h.b16 %v3760
        %v3857 = vunpack.c.l.b16 %v3761
        %v3858 = vunpack.c.h.b16 %v3761
        %v3859 = vunpack.c.l.b16 %v3762
        %v3860 = vunpack.c.h.b16 %v3762
        %v3861 = vunpack.c.l.b16 %v3763
        %v3862 = vunpack.c.h.b16 %v3763
        %v3863 = vunpack.c.l.b16 %v3764
        %v3864 = vunpack.c.h.b16 %v3764
        %v3865 = vunpack.c.l.b16 %v3765
        %v3866 = vunpack.c.h.b16 %v3765
        %v3867 = vunpack.c.l.b16 %v3766
        %v3868 = vunpack.c.h.b16 %v3766
        %v3869 = vunpack.c.l.b16 %v3767
        %v3870 = vunpack.c.h.b16 %v3767
        %v3871 = vunpack.c.l.b16 %v3768
        %v3872 = vunpack.c.h.b16 %v3768
        %v3873 = vunpack.c.l.b16 %v3769
        %v3874 = vunpack.c.h.b16 %v3769
        %v3875 = vunpack.c.l.b16 %v3770
        %v3876 = vunpack.c.h.b16 %v3770
        %v3877 = vunpack.c.l.b16 %v3771
        %v3878 = vunpack.c.h.b16 %v3771
        %v3879 = vunpack.c.l.b16 %v3772
        %v3880 = vunpack.c.h.b16 %v3772
        %v3881 = vunpack.c.l.b16 %v3773
        %v3882 = vunpack.c.h.b16 %v3773
        %v3883 = vunpack.c.l.b16 %v3774
        %v3884 = vunpack.c.h.b16 %v3774
        %v3885 = vunpack.c.l.b16 %v3775
        %v3886 = vunpack.c.h.b16 %v3775
        %v3887 = vunpack.c.l.b16 %v3776
        %v3888 = vunpack.c.h.b16 %v3776
        %v3889 = vunpack.c.l.b16 %v3777
        %v3890 = vunpack.c.h.b16 %v3777
        %v3891 = vunpack.c.l.b16 %v3778
        %v3892 = vunpack.c.h.b16 %v3778
        %v3893 = vunpack.c.l.b16 %v3779
        %v3894 = vunpack.c.h.b16 %v3779
        %v3895 = vunpack.c.l.b16 %v3780
        %v3896 = vunpack.c.h.b16 %v3780
        %v3897 = vunpack.c.l.b16 %v3781
        %v3898 = vunpack.c.h.b16 %v3781
        %v3899 = vunpack.c.l.b16 %v3782
        %v3900 = vunpack.c.h.b16 %v3782
        %v3901 = vpack.c.b16 %v3841, %v3837
        %v3902 = vpack.c.b16 %v3842, %v3838
        %v3903 = vpack.c.b16 %v3843, %v3839
        %v3904 = vpack.c.b16 %v3844, %v3840
        %v3905 = vpack.c.b16 %v3849, %v3845
        %v3906 = vpack.c.b16 %v3850, %v3846
        %v3907 = vpack.c.b16 %v3851, %v3847
        %v3908 = vpack.c.b16 %v3852, %v3848
        %v3909 = vpack.c.b16 %v3857, %v3853
        %v3910 = vpack.c.b16 %v3858, %v3854
        %v3911 = vpack.c.b16 %v3859, %v3855
        %v3912 = vpack.c.b16 %v3860, %v3856
        %v3913 = vpack.c.b16 %v3865, %v3861
        %v3914 = vpack.c.b16 %v3866, %v3862
        %v3915 = vpack.c.b16 %v3867, %v3863
        %v3916 = vpack.c.b16 %v3868, %v3864
        %v3917 = vpack.c.b16 %v3873, %v3869
        %v3918 = vpack.c.b16 %v3874, %v3870
        %v3919 = vpack.c.b16 %v3875, %v3871
        %v3920 = vpack.c.b16 %v3876, %v3872
        %v3921 = vpack.c.b16 %v3881, %v3877
        %v3922 = vpack.c.b16 %v3882, %v3878
        %v3923 = vpack.c.b16 %v3883, %v3879
        %v3924 = vpack.c.b16 %v3884, %v3880
        %v3925 = vpack.c.b16 %v3889, %v3885
        %v3926 = vpack.c.b16 %v3890, %v3886
        %v3927 = vpack.c.b16 %v3891, %v3887
        %v3928 = vpack.c.b16 %v3892, %v3888
        %v3929 = vpack.c.b16 %v3897, %v3893
        %v3930 = vpack.c.b16 %v3898, %v3894
        %v3931 = vpack.c.b16 %v3899, %v3895
        %v3932 = vpack.c.b16 %v3900, %v3896
        %3965 = vmatprep.subr.bf16.mxu0 %v3902
        %3966 = vmatpush1.bf16.msra.mxu0 %v3901
        %3967 = vmatprep.subr.bf16.mxu0 %v3906
        %3968 = vmatpush1.bf16.msra.mxu0 %v3905
        %3969 = vmatprep.subr.bf16.mxu0 %v3910
        %3970 = vmatpush1.bf16.msra.mxu0 %v3909
        %3971 = vmatprep.subr.bf16.mxu0 %v3914
        %3972 = vmatpush1.bf16.msra.mxu0 %v3913
        %3973 = vmatprep.subr.bf16.mxu0 %v3918
        %3974 = vmatpush1.bf16.msra.mxu0 %v3917
        %3975 = vmatprep.subr.bf16.mxu0 %v3922
        %3976 = vmatpush1.bf16.msra.mxu0 %v3921
        %3977 = vmatprep.subr.bf16.mxu0 %v3926
        %3978 = vmatpush1.bf16.msra.mxu0 %v3925
        %3979 = vmatprep.subr.bf16.mxu0 %v3930
        %3980 = vmatpush1.bf16.msra.mxu0 %v3929
        %3981 = vmatprep.subr.bf16.mxu0 0
        %3982 = vmatpush1.bf16.msra.mxu0 0
        %3983 = vmatprep.subr.bf16.mxu0 0
        %3984 = vmatpush1.bf16.msra.mxu0 0
        %3985 = vmatprep.subr.bf16.mxu0 0
        %3986 = vmatpush1.bf16.msra.mxu0 0
        %3987 = vmatprep.subr.bf16.mxu0 0
        %3988 = vmatpush1.bf16.msra.mxu0 0
        %3989 = vmatprep.subr.bf16.mxu0 0
        %3990 = vmatpush1.bf16.msra.mxu0 0
        %3991 = vmatprep.subr.bf16.mxu0 0
        %3992 = vmatpush1.bf16.msra.mxu0 0
        %3993 = vmatprep.subr.bf16.mxu0 0
        %3994 = vmatpush1.bf16.msra.mxu0 0
        %3995 = vmatprep.subr.bf16.mxu0 0
        %3996 = vmatpush1.bf16.msra.mxu0 0
        %3997 = vmatprep.mubr.bf16.mxu0 0
        %3998 = vmatmul.mubr.bf16.gmra.mrb[0].mxu0 %v3750
        %v3999 = vpop.f32.mrb[0].mxu0
        %v4000 = vadd.f32 %v3788, %v3999
        %v4001 = vpop.f32.mrb[0].mxu0
        %v4002 = vadd.f32 %v3792, %v4001
        %v4003 = vpop.f32.mrb[0].mxu0
        %v4004 = vpop.f32.mrb[0].mxu0
        %4005 = vdwg.mxu0
        %4006 = vmatprep.subr.bf16.mxu0 %v3904
        %4007 = vmatpush1.bf16.msra.mxu0 %v3903
        %4008 = vmatprep.subr.bf16.mxu0 %v3908
        %4009 = vmatpush1.bf16.msra.mxu0 %v3907
        %4010 = vmatprep.subr.bf16.mxu0 %v3912
        %4011 = vmatpush1.bf16.msra.mxu0 %v3911
        %4012 = vmatprep.subr.bf16.mxu0 %v3916
        %4013 = vmatpush1.bf16.msra.mxu0 %v3915
        %4014 = vmatprep.subr.bf16.mxu0 %v3920
        %4015 = vmatpush1.bf16.msra.mxu0 %v3919
        %4016 = vmatprep.subr.bf16.mxu0 %v3924
        %4017 = vmatpush1.bf16.msra.mxu0 %v3923
        %4018 = vmatprep.subr.bf16.mxu0 %v3928
        %4019 = vmatpush1.bf16.msra.mxu0 %v3927
        %4020 = vmatprep.subr.bf16.mxu0 %v3932
        %4021 = vmatpush1.bf16.msra.mxu0 %v3931
        %4022 = vmatprep.subr.bf16.mxu0 0
        %4023 = vmatpush1.bf16.msra.mxu0 0
        %4024 = vmatprep.subr.bf16.mxu0 0
        %4025 = vmatpush1.bf16.msra.mxu0 0
        %4026 = vmatprep.subr.bf16.mxu0 0
        %4027 = vmatpush1.bf16.msra.mxu0 0
        %4028 = vmatprep.subr.bf16.mxu0 0
        %4029 = vmatpush1.bf16.msra.mxu0 0
        %4030 = vmatprep.subr.bf16.mxu0 0
        %4031 = vmatpush1.bf16.msra.mxu0 0
        %4032 = vmatprep.subr.bf16.mxu0 0
        %4033 = vmatpush1.bf16.msra.mxu0 0
        %4034 = vmatprep.subr.bf16.mxu0 0
        %4035 = vmatpush1.bf16.msra.mxu0 0
        %4036 = vmatprep.subr.bf16.mxu0 0
        %4037 = vmatpush1.bf16.msra.mxu0 0
        %4038 = vmatprep.mubr.bf16.mxu0 0
        %4039 = vmatmul.mubr.bf16.gmra.mrb[0].mxu0 %v3750
        %v4040 = vpop.f32.mrb[0].mxu0
        %v4041 = vadd.f32 %v3796, %v4040
        %v4042 = vpop.f32.mrb[0].mxu0
        %v4043 = vadd.f32 %v3800, %v4042
        %v4044 = vpop.f32.mrb[0].mxu0
        %v4045 = vpop.f32.mrb[0].mxu0
        %4046 = vdwg.mxu0
        %v4047 = vmax.f32 %v4000, 0.0
        %v4048 = vmax.f32 %v4002, 0.0
        %v4049 = vmax.f32 %v4041, 0.0
        %v4050 = vmax.f32 %v4043, 0.0
        %v4051 = vpack.c.bf16 %v4047, %v4047
        %v4052 = vpack.c.bf16 %v4048, %v4048
        %v4053 = vpack.c.bf16 %v4049, %v4049
        %v4054 = vpack.c.bf16 %v4050, %v4050
        %v4055 = vld [vmem:[#allocation11] sm:$0xf]
        %v4056 = vld [vmem:[#allocation11 + $0x4] sm:$0xf]
        %v4057 = vld [vmem:[#allocation11 + $0x8] sm:$0xf]
        %v4058 = vld [vmem:[#allocation11 + $0xc] sm:$0xf]
        %v4059 = vld [vmem:[#allocation11 + $0x10] sm:$0xf]
        %v4060 = vld [vmem:[#allocation11 + $0x14] sm:$0xf]
        %v4061 = vld [vmem:[#allocation11 + $0x18] sm:$0xf]
        %v4062 = vld [vmem:[#allocation11 + $0x1c] sm:$0xf]
        %v4063 = vld [vmem:[#allocation11 + $0x20] sm:$0xf]
        %v4064 = vld [vmem:[#allocation11 + $0x24] sm:$0xf]
        %v4065 = vld [vmem:[#allocation11 + $0x28] sm:$0xf]
        %v4066 = vld [vmem:[#allocation11 + $0x2c] sm:$0xf]
        %v4067 = vld [vmem:[#allocation11 + $0x30] sm:$0xf]
        %v4068 = vld [vmem:[#allocation11 + $0x34] sm:$0xf]
        %v4069 = vld [vmem:[#allocation11 + $0x38] sm:$0xf]
        %v4070 = vld [vmem:[#allocation11 + $0x3c] sm:$0xf]
        %v4071 = vld [vmem:[#allocation11 + $0x40] sm:$0xf]
        %v4072 = vld [vmem:[#allocation11 + $0x44] sm:$0xf]
        %v4073 = vld [vmem:[#allocation11 + $0x48] sm:$0xf]
        %v4074 = vld [vmem:[#allocation11 + $0x4c] sm:$0xf]
        %v4075 = vld [vmem:[#allocation11 + $0x50] sm:$0xf]
        %v4076 = vld [vmem:[#allocation11 + $0x54] sm:$0xf]
        %v4077 = vld [vmem:[#allocation11 + $0x58] sm:$0xf]
        %v4078 = vld [vmem:[#allocation11 + $0x5c] sm:$0xf]
        %v4079 = vld [vmem:[#allocation11 + $0x60] sm:$0xf]
        %v4080 = vld [vmem:[#allocation11 + $0x64] sm:$0xf]
        %v4081 = vld [vmem:[#allocation11 + $0x68] sm:$0xf]
        %v4082 = vld [vmem:[#allocation11 + $0x6c] sm:$0xf]
        %v4083 = vld [vmem:[#allocation11 + $0x70] sm:$0xf]
        %v4084 = vld [vmem:[#allocation11 + $0x74] sm:$0xf]
        %v4085 = vld [vmem:[#allocation11 + $0x78] sm:$0xf]
        %v4086 = vld [vmem:[#allocation11 + $0x7c] sm:$0xf]
        %v4087 = vld [vmem:[#allocation11 + $0x80] sm:$0xf]
        %v4088 = vld [vmem:[#allocation11 + $0x84] sm:$0xf]
        %v4089 = vld [vmem:[#allocation11 + $0x88] sm:$0xf]
        %v4090 = vld [vmem:[#allocation11 + $0x8c] sm:$0xf]
        %v4091 = vld [vmem:[#allocation11 + $0x90] sm:$0xf]
        %v4092 = vld [vmem:[#allocation11 + $0x94] sm:$0xf]
        %v4093 = vld [vmem:[#allocation11 + $0x98] sm:$0xf]
        %v4094 = vld [vmem:[#allocation11 + $0x9c] sm:$0xf]
        %v4095 = vld [vmem:[#allocation11 + $0xa0] sm:$0xf]
        %v4096 = vld [vmem:[#allocation11 + $0xa4] sm:$0xf]
        %v4097 = vld [vmem:[#allocation11 + $0xa8] sm:$0xf]
        %v4098 = vld [vmem:[#allocation11 + $0xac] sm:$0xf]
        %v4099 = vld [vmem:[#allocation11 + $0xb0] sm:$0xf]
        %v4100 = vld [vmem:[#allocation11 + $0xb4] sm:$0xf]
        %v4101 = vld [vmem:[#allocation11 + $0xb8] sm:$0xf]
        %v4102 = vld [vmem:[#allocation11 + $0xbc] sm:$0xf]
        %v4103 = vld [vmem:[#allocation11 + $0xc0] sm:$0xf]
        %v4104 = vld [vmem:[#allocation11 + $0xc4] sm:$0xf]
        %v4105 = vld [vmem:[#allocation11 + $0xc8] sm:$0xf]
        %v4106 = vld [vmem:[#allocation11 + $0xcc] sm:$0xf]
        %v4107 = vld [vmem:[#allocation11 + $0xd0] sm:$0xf]
        %v4108 = vld [vmem:[#allocation11 + $0xd4] sm:$0xf]
        %v4109 = vld [vmem:[#allocation11 + $0xd8] sm:$0xf]
        %v4110 = vld [vmem:[#allocation11 + $0xdc] sm:$0xf]
        %v4111 = vld [vmem:[#allocation11 + $0xe0] sm:$0xf]
        %v4112 = vld [vmem:[#allocation11 + $0xe4] sm:$0xf]
        %v4113 = vld [vmem:[#allocation11 + $0xe8] sm:$0xf]
        %v4114 = vld [vmem:[#allocation11 + $0xec] sm:$0xf]
        %v4115 = vld [vmem:[#allocation11 + $0xf0] sm:$0xf]
        %v4116 = vld [vmem:[#allocation11 + $0xf4] sm:$0xf]
        %v4117 = vld [vmem:[#allocation11 + $0xf8] sm:$0xf]
        %v4118 = vld [vmem:[#allocation11 + $0xfc] sm:$0xf]
        %v4119 = vld [vmem:[%s9] sm:$0x1]
        %v4121 = vlaneseq
        %v4122 = vshrl.u32 %v4121, 7
        %v4123 = vsub.s32 0, %v4122
        %v4124 = vrot.slane %v4119, %v4123
        %v4190 = vunpack.c.l.b16 %v4055
        %v4191 = vunpack.c.l.b16 %v4056
        %v4192 = vunpack.c.l.b16 %v4057
        %v4193 = vunpack.c.l.b16 %v4058
        %v4194 = vunpack.c.l.b16 %v4059
        %v4195 = vunpack.c.l.b16 %v4060
        %v4196 = vunpack.c.l.b16 %v4061
        %v4197 = vunpack.c.l.b16 %v4062
        %v4198 = vunpack.c.l.b16 %v4063
        %v4199 = vunpack.c.l.b16 %v4064
        %v4200 = vunpack.c.l.b16 %v4065
        %v4201 = vunpack.c.l.b16 %v4066
        %v4202 = vunpack.c.l.b16 %v4067
        %v4203 = vunpack.c.l.b16 %v4068
        %v4204 = vunpack.c.l.b16 %v4069
        %v4205 = vunpack.c.l.b16 %v4070
        %v4206 = vunpack.c.l.b16 %v4071
        %v4207 = vunpack.c.l.b16 %v4072
        %v4208 = vunpack.c.l.b16 %v4073
        %v4209 = vunpack.c.l.b16 %v4074
        %v4210 = vunpack.c.l.b16 %v4075
        %v4211 = vunpack.c.l.b16 %v4076
        %v4212 = vunpack.c.l.b16 %v4077
        %v4213 = vunpack.c.l.b16 %v4078
        %v4214 = vunpack.c.l.b16 %v4079
        %v4215 = vunpack.c.l.b16 %v4080
        %v4216 = vunpack.c.l.b16 %v4081
        %v4217 = vunpack.c.l.b16 %v4082
        %v4218 = vunpack.c.l.b16 %v4083
        %v4219 = vunpack.c.l.b16 %v4084
        %v4220 = vunpack.c.l.b16 %v4085
        %v4221 = vunpack.c.l.b16 %v4086
        %v4222 = vunpack.c.l.b16 %v4087
        %v4223 = vunpack.c.l.b16 %v4088
        %v4224 = vunpack.c.l.b16 %v4089
        %v4225 = vunpack.c.l.b16 %v4090
        %v4226 = vunpack.c.l.b16 %v4091
        %v4227 = vunpack.c.l.b16 %v4092
        %v4228 = vunpack.c.l.b16 %v4093
        %v4229 = vunpack.c.l.b16 %v4094
        %v4230 = vunpack.c.l.b16 %v4095
        %v4231 = vunpack.c.l.b16 %v4096
        %v4232 = vunpack.c.l.b16 %v4097
        %v4233 = vunpack.c.l.b16 %v4098
        %v4234 = vunpack.c.l.b16 %v4099
        %v4235 = vunpack.c.l.b16 %v4100
        %v4236 = vunpack.c.l.b16 %v4101
        %v4237 = vunpack.c.l.b16 %v4102
        %v4238 = vunpack.c.l.b16 %v4103
        %v4239 = vunpack.c.l.b16 %v4104
        %v4240 = vunpack.c.l.b16 %v4105
        %v4241 = vunpack.c.l.b16 %v4106
        %v4242 = vunpack.c.l.b16 %v4107
        %v4243 = vunpack.c.l.b16 %v4108
        %v4244 = vunpack.c.l.b16 %v4109
        %v4245 = vunpack.c.l.b16 %v4110
        %v4246 = vunpack.c.l.b16 %v4111
        %v4247 = vunpack.c.l.b16 %v4112
        %v4248 = vunpack.c.l.b16 %v4113
        %v4249 = vunpack.c.l.b16 %v4114
        %v4250 = vunpack.c.l.b16 %v4115
        %v4251 = vunpack.c.l.b16 %v4116
        %v4252 = vunpack.c.l.b16 %v4117
        %v4253 = vunpack.c.l.b16 %v4118
        %v4254 = vpack.c.b16 %v4191, %v4190
        %v4255 = vpack.c.b16 %v4193, %v4192
        %v4256 = vpack.c.b16 %v4195, %v4194
        %v4257 = vpack.c.b16 %v4197, %v4196
        %v4258 = vpack.c.b16 %v4199, %v4198
        %v4259 = vpack.c.b16 %v4201, %v4200
        %v4260 = vpack.c.b16 %v4203, %v4202
        %v4261 = vpack.c.b16 %v4205, %v4204
        %v4262 = vpack.c.b16 %v4207, %v4206
        %v4263 = vpack.c.b16 %v4209, %v4208
        %v4264 = vpack.c.b16 %v4211, %v4210
        %v4265 = vpack.c.b16 %v4213, %v4212
        %v4266 = vpack.c.b16 %v4215, %v4214
        %v4267 = vpack.c.b16 %v4217, %v4216
        %v4268 = vpack.c.b16 %v4219, %v4218
        %v4269 = vpack.c.b16 %v4221, %v4220
        %v4270 = vpack.c.b16 %v4223, %v4222
        %v4271 = vpack.c.b16 %v4225, %v4224
        %v4272 = vpack.c.b16 %v4227, %v4226
        %v4273 = vpack.c.b16 %v4229, %v4228
        %v4274 = vpack.c.b16 %v4231, %v4230
        %v4275 = vpack.c.b16 %v4233, %v4232
        %v4276 = vpack.c.b16 %v4235, %v4234
        %v4277 = vpack.c.b16 %v4237, %v4236
        %v4278 = vpack.c.b16 %v4239, %v4238
        %v4279 = vpack.c.b16 %v4241, %v4240
        %v4280 = vpack.c.b16 %v4243, %v4242
        %v4281 = vpack.c.b16 %v4245, %v4244
        %v4282 = vpack.c.b16 %v4247, %v4246
        %v4283 = vpack.c.b16 %v4249, %v4248
        %v4284 = vpack.c.b16 %v4251, %v4250
        %v4285 = vpack.c.b16 %v4253, %v4252
        %4318 = vmatprep.subr.bf16.mxu0 0
        %4319 = vmatpush1.bf16.msra.mxu0 %v4254
        %4320 = vmatprep.subr.bf16.mxu0 0
        %4321 = vmatpush1.bf16.msra.mxu0 %v4255
        %4322 = vmatprep.subr.bf16.mxu0 0
        %4323 = vmatpush1.bf16.msra.mxu0 %v4256
        %4324 = vmatprep.subr.bf16.mxu0 0
        %4325 = vmatpush1.bf16.msra.mxu0 %v4257
        %4326 = vmatprep.subr.bf16.mxu0 0
        %4327 = vmatpush1.bf16.msra.mxu0 %v4258
        %4328 = vmatprep.subr.bf16.mxu0 0
        %4329 = vmatpush1.bf16.msra.mxu0 %v4259
        %4330 = vmatprep.subr.bf16.mxu0 0
        %4331 = vmatpush1.bf16.msra.mxu0 %v4260
        %4332 = vmatprep.subr.bf16.mxu0 0
        %4333 = vmatpush1.bf16.msra.mxu0 %v4261
        %4334 = vmatprep.subr.bf16.mxu0 0
        %4335 = vmatpush1.bf16.msra.mxu0 %v4262
        %4336 = vmatprep.subr.bf16.mxu0 0
        %4337 = vmatpush1.bf16.msra.mxu0 %v4263
        %4338 = vmatprep.subr.bf16.mxu0 0
        %4339 = vmatpush1.bf16.msra.mxu0 %v4264
        %4340 = vmatprep.subr.bf16.mxu0 0
        %4341 = vmatpush1.bf16.msra.mxu0 %v4265
        %4342 = vmatprep.subr.bf16.mxu0 0
        %4343 = vmatpush1.bf16.msra.mxu0 %v4266
        %4344 = vmatprep.subr.bf16.mxu0 0
        %4345 = vmatpush1.bf16.msra.mxu0 %v4267
        %4346 = vmatprep.subr.bf16.mxu0 0
        %4347 = vmatpush1.bf16.msra.mxu0 %v4268
        %4348 = vmatprep.subr.bf16.mxu0 0
        %4349 = vmatpush1.bf16.msra.mxu0 %v4269
        %4350 = vmatprep.mubr.bf16.mxu0 %v4052
        %4351 = vmatmul.mubr.bf16.gmra.mrb[0].mxu0 %v4051
        %v4352 = vpop.f32.mrb[0].mxu0
        %v4353 = vadd.f32 %v4124, %v4352
        %v4354 = vpop.f32.mrb[0].mxu0
        %v4355 = vpop.f32.mrb[0].mxu0
        %v4356 = vpop.f32.mrb[0].mxu0
        %4357 = vdwg.mxu0
        %4358 = vmatprep.subr.bf16.mxu0 0
        %4359 = vmatpush1.bf16.msra.mxu0 %v4270
        %4360 = vmatprep.subr.bf16.mxu0 0
        %4361 = vmatpush1.bf16.msra.mxu0 %v4271
        %4362 = vmatprep.subr.bf16.mxu0 0
        %4363 = vmatpush1.bf16.msra.mxu0 %v4272
        %4364 = vmatprep.subr.bf16.mxu0 0
        %4365 = vmatpush1.bf16.msra.mxu0 %v4273
        %4366 = vmatprep.subr.bf16.mxu0 0
        %4367 = vmatpush1.bf16.msra.mxu0 %v4274
        %4368 = vmatprep.subr.bf16.mxu0 0
        %4369 = vmatpush1.bf16.msra.mxu0 %v4275
        %4370 = vmatprep.subr.bf16.mxu0 0
        %4371 = vmatpush1.bf16.msra.mxu0 %v4276
        %4372 = vmatprep.subr.bf16.mxu0 0
        %4373 = vmatpush1.bf16.msra.mxu0 %v4277
        %4374 = vmatprep.subr.bf16.mxu0 0
        %4375 = vmatpush1.bf16.msra.mxu0 %v4278
        %4376 = vmatprep.subr.bf16.mxu0 0
        %4377 = vmatpush1.bf16.msra.mxu0 %v4279
        %4378 = vmatprep.subr.bf16.mxu0 0
        %4379 = vmatpush1.bf16.msra.mxu0 %v4280
        %4380 = vmatprep.subr.bf16.mxu0 0
        %4381 = vmatpush1.bf16.msra.mxu0 %v4281
        %4382 = vmatprep.subr.bf16.mxu0 0
        %4383 = vmatpush1.bf16.msra.mxu0 %v4282
        %4384 = vmatprep.subr.bf16.mxu0 0
        %4385 = vmatpush1.bf16.msra.mxu0 %v4283
        %4386 = vmatprep.subr.bf16.mxu0 0
        %4387 = vmatpush1.bf16.msra.mxu0 %v4284
        %4388 = vmatprep.subr.bf16.mxu0 0
        %4389 = vmatpush1.bf16.msra.mxu0 %v4285
        %4390 = vmatprep.mubr.bf16.mxu0 %v4054
        %4391 = vmatmul.mubr.bf16.gmra.mrb[0].mxu0 %v4053
        %v4392 = vpop.f32.mrb[0].mxu0
        %v4393 = vadd.f32 %v4353, %v4392
        %v4394 = vpop.f32.mrb[0].mxu0
        %v4395 = vpop.f32.mrb[0].mxu0
        %v4396 = vpop.f32.mrb[0].mxu0
        %4397 = vdwg.mxu0
        %v4398 = vadd.f32 %v3749, %v4393
        %4399 = vadd.xlane.f32.xlu0 %v4398
        %v4400 = vpop.xlane.xlu0 %4399
        %v4401 = vmul.f32 %v4400, %v3724
        %v4402 = vsub.f32 %v4398, %v4401
        %v4403 = vmul.f32 %v4402, %v4402
        %4404 = vadd.xlane.f32.xlu0 %v4403
        %v4405 = vpop.xlane.xlu0 %4404
        %v4406 = vmul.f32 %v4405, %v3724
        %v4407 = vadd.f32 %v4406, 1e-05
        %v4408 = vrsqrt.pop %v4407
        %v4409 = vmul.f32 %v4402, %v4408
        %v4410 = vld [vmem:[%s10] sm:$0x1]
        %v4412 = vlaneseq
        %v4413 = vshrl.u32 %v4412, 7
        %v4414 = vsub.s32 0, %v4413
        %v4415 = vrot.slane %v4410, %v4414
        %v4417 = vmul.f32 %v4409, %v4415
        %v4418 = vld [vmem:[%s11] sm:$0x1]
        %v4420 = vlaneseq
        %v4421 = vshrl.u32 %v4420, 7
        %v4422 = vsub.s32 0, %v4421
        %v4423 = vrot.slane %v4418, %v4422
        %v4425 = vadd.f32 %v4417, %v4423
        %4426 = vst [vmem:[%s523] sm:$0xff] %v4425
        %s4427 = sand.u32 %s304, 1
        %s4428 = scalar_lea.sflag [#allocation4], %s4427
        %s4429 = sand.u32 %s304, 1
        %s4430 = smul.addr %s4429, 8
        %s4431 = scalar_lea.vmem [#allocation13], %s4430
        // Predicated region
        $region93: #{tpu_custom_call.1} parent=67 // pred_check
          %p4432 = pneg %p314
        $region94: #{tpu_custom_call.1} parent=67 // pred_check_branch
          %4434 = sbr.rel (%p4432) target = $region96
        $region95: #{tpu_custom_call.1} parent=67 // pred_region
          %s4436 = ssub.s32 128, 128
          %4437 = vsyncadd %s4428, %s4436
          %s4438 = smul.addr %s34, 128
          %s4439 = scalar_lea.hbm %s12, %s4438
          %s4441 = sshll.u32 %s4431, 4
          %s4442 = int_to_ptr.vmem [resolvable:$true] %s4441
          %4444 = dma.vmem_to_hbm [thread:$0]  %s4442, 128, %s4439, %s4428
        $region96: #{tpu_custom_call.1} parent=67 // pred_fallthru
          _
      $region68: #{tpu_custom_call.1} parent=5 // pred_fallthru
        _
      %p4445 = scmp.le.s32.totalorder 2, %s29
      // Predicated region
      $region97: #{tpu_custom_call.1} parent=5 // pred_check
        %p4446 = pneg %p4445
      $region98: #{tpu_custom_call.1} parent=5 // pred_check_branch
        %4448 = sbr.rel (%p4446) target = $region100
      $region99: #{tpu_custom_call.1} parent=5 // pred_region
        %s4449 = ssub.s32 %s29, 2
        // Predicated region
        $region101: #{tpu_custom_call.1} parent=99 // pred_check
          %p4450 = pneg %p320
        $region102: #{tpu_custom_call.1} parent=99 // pred_check_branch
          %4452 = sbr.rel (%p4450) target = $region104
        $region103: #{tpu_custom_call.1} parent=99 // pred_region
          %s4453 = sand.u32 %s305, 1
          %s4454 = scalar_lea.sflag [#allocation4], %s4453
          %s4455 = sand.u32 %s305, 1
          %s4456 = smul.addr %s4455, 8
          %s4457 = scalar_lea.vmem [#allocation13], %s4456
          %4458 = dma.done %s4454, 128
        $region104: #{tpu_custom_call.1} parent=99 // pred_fallthru
          _
      $region100: #{tpu_custom_call.1} parent=5 // pred_fallthru
        _
    $region6: #{tpu_custom_call.1} parent=1 // loop_footer
      %s33 = sadd.s32 1, %s29
    $region7: #{tpu_custom_call.1} parent=1 // loop_footer_branch
      %28 = sbr.rel target = $region3
    $region8: #{tpu_custom_call.1} parent=1 // loop_exit
      _
    %4459 = vsyncpa [#allocation3], 1
    %s4460 = scalar_lea.sflag [#allocation3], 1
    %4461 = vsyncpa %s4460, 1
    %4462 = vsyncpa [#allocation6], 1
    %s4463 = scalar_lea.sflag [#allocation6], 1
    %4464 = vsyncpa %s4463, 1
    %4465 = vsyncpa [#allocation9], 1
    %4466 = vsyncpa [#allocation12], 1
    %4467 = vsyncpa [#allocation4], 1
    %s4468 = scalar_lea.sflag [#allocation4], 1
    %4469 = vsyncpa %s4468, 1

</llo_original>
